<compile_context>
chip_gen: v5e
topology: v5e:2x2
jax: 0.10.0
libtpu: 0.0.40
codegen_flags: <defaults>
</compile_context>

<pallas_src>
import functools

import jax
import jax.numpy as jnp
from jax.experimental import pallas as pl
from jax.experimental.pallas import tpu as pltpu


def _round_up(x, m):
    return ((x + m - 1) // m) * m


def encoder_kernel(x_ref,
                   w0, b0, w1, b1, w2, b2, w3, b3, w4, b4,
                   wg, bg,
                   out_ref,
                   *, act_dtype):
    """One row-tile of the per-pixel MLP chain: 5x (matmul+bias+swish), matmul, tanh."""
    h = x_ref[...]
    for w_ref, b_ref in ((w0, b0), (w1, b1), (w2, b2), (w3, b3), (w4, b4)):
        wv = w_ref[...]
        z = jnp.dot(h.astype(wv.dtype), wv,
                    preferred_element_type=jnp.float32) + b_ref[...]
        # Swish: z * sigmoid(z).  Sigmoid via a single EUP tanh push (instead of
        # exp + reciprocal); elementwise math stays f32 (v5e has no bf16 VPU/EUP).
        sig = 0.5 * jnp.tanh(0.5 * z) + 0.5
        h = (z * sig).astype(act_dtype)   # bf16 between layers on the bf16 path
    wv = wg[...]
    z = jnp.dot(h.astype(wv.dtype), wv,
                preferred_element_type=jnp.float32) + bg[...]
    out_ref[...] = jnp.tanh(z)


def init_params(key, hop):
    """Deterministic synthetic Conv2d(1x1) + BatchNorm2d parameters (inference mode)."""
    dim = 4 * hop // 2 + 1
    chans = [dim,
             hop * 2 + 32,
             hop * 2 + 64,
             hop * 2 + 64 + 64,
             hop * 2 + 128 + 64,
             hop * 2 + 128 + 128,
             128]
    eps = 1e-5
    layers = []
    for i in range(5):
        key, k1, k2, k3, k4, k5, k6 = jax.random.split(key, 7)
        cin, cout = chans[i], chans[i + 1]
        w = 0.05 * jax.random.normal(k1, (cin, cout), jnp.float32)
        b = 0.05 * jax.random.normal(k2, (1, cout), jnp.float32)
        gamma = 1.0 + 0.1 * jax.random.normal(k3, (1, cout), jnp.float32)
        beta = 0.1 * jax.random.normal(k4, (1, cout), jnp.float32)
        mean = 0.1 * jax.random.normal(k5, (1, cout), jnp.float32)
        var = jnp.abs(1.0 + 0.1 * jax.random.normal(k6, (1, cout), jnp.float32))
        scale = gamma / jnp.sqrt(var + eps)
        shift = beta - mean * scale
        layers.append((w, b, scale, shift))
    key, k1, k2 = jax.random.split(key, 3)
    wg = 0.05 * jax.random.normal(k1, (chans[5], chans[6]), jnp.float32)
    bg = 0.05 * jax.random.normal(k2, (1, chans[6]), jnp.float32)
    return layers, (wg, bg), dim


def _fold_and_pad_params(layers, final, in_dim_padded, matmul_dtype):
    """Fold BN affine into (w, b) and zero-pad in/out dims to lane-dense sizes.

    Padded columns get zero weight & zero bias => swish(0) = 0, and the padded
    input rows of the next weight are zero, so the math is exact.
    """
    params = []
    prev_dim = in_dim_padded            # first layer's K dim (lane-padded feature axis)
    for (w, b, s, t) in layers:
        cin, cout = w.shape
        wf = w * s                      # BN column scale
        bf = b * s + t                  # folded bias
        cout_pad = _round_up(cout, 128)
        wp = jnp.zeros((prev_dim, cout_pad), jnp.float32).at[:cin, :cout].set(wf)
        bp = jnp.zeros((1, cout_pad), jnp.float32).at[:, :cout].set(bf)
        params.append((wp.astype(matmul_dtype), bp))   # bias stays f32
        prev_dim = cout_pad
    wg, bg = final
    cin, cout = wg.shape                # cout == 128, already lane-dense
    wgp = jnp.zeros((prev_dim, cout), jnp.float32).at[:cin, :].set(wg)
    params.append((wgp.astype(matmul_dtype), bg))
    return params


def encoder_forward(x, layers, final, *,
                    tile_rows=512,
                    matmul_dtype=jnp.bfloat16):
    """x: (B, C, H, W) float32 with W == 4*hop//2 + 1 (PyTorch NCHW input)."""
    B, C, H, W = x.shape
    out_ch = final[0].shape[1]          # 128 (lane-dense output)

    # The per-pixel MLP is row-order independent: feed rows in the input's native
    # (b, c, h) order (no host-side pre-transpose) and undo the ordering in the
    # cheap, 128-wide output reshape.
    rows = x.reshape(B * C * H, W).astype(jnp.float32)
    n = rows.shape[0]

    # Lane-dense layer-0 LHS: pad the feature axis to a multiple of 128.
    w_pad = _round_up(W, 128)

    # Row tiling: big tiles amortize per-step overhead and MXU weight pushes;
    # clamp to the problem size, and keep >= 2 grid steps when possible so both
    # TensorCores of a v7x (and megacore sharding in general) get work.
    n_rounded = _round_up(n, 8)
    tile_rows = max(8, min(_round_up(tile_rows, 8), n_rounded))
    if tile_rows >= n_rounded and n_rounded >= 16:
        tile_rows = _round_up(pl.cdiv(n_rounded, 2), 8)
    n_pad = _round_up(n, tile_rows)
    rows = jnp.pad(rows, ((0, n_pad - n), (0, w_pad - W)))

    params = _fold_and_pad_params(layers, final, w_pad, matmul_dtype)
    flat_params = [p for pair in params for p in pair]

    # Advisory cost estimate so XLA schedules the surrounding layout glue well.
    dims = [w_pad] + [p[0].shape[1] for p in params]
    flops = 2 * n_pad * sum(dims[i] * dims[i + 1] for i in range(len(dims) - 1))
    transc = n_pad * sum(dims[1:])      # one tanh per output element per layer
    param_bytes = sum(int(p.size) * p.dtype.itemsize for p in flat_params)
    bytes_accessed = int(rows.size) * 4 + param_bytes + n_pad * out_ch * 4
    max_width = max(dims)

    kernel = functools.partial(encoder_kernel, act_dtype=matmul_dtype)
    grid = (n_pad // tile_rows,)

    def run(weight_mode, weight_bufs):
        # Explicit VMEM budget: resident params (x buffer count) + double-buffered
        # row tiles in/out + f32 intermediates, with headroom.
        vmem_budget = (weight_bufs * param_bytes
                       + 2 * tile_rows * w_pad * 4
                       + 2 * tile_rows * out_ch * 4
                       + 4 * tile_rows * max_width * 4
                       + (4 << 20))
        vmem_budget = int(min(max(vmem_budget, 16 << 20), 64 << 20))

        in_specs = [pl.BlockSpec((tile_rows, w_pad), lambda i: (i, 0))]
        for p in flat_params:
            # Whole (lane-dense) parameter array resident in VMEM, constant
            # index_map; single-buffered when supported (halves weight VMEM).
            in_specs.append(pl.BlockSpec(p.shape, lambda i: (0, 0),
                                         pipeline_mode=weight_mode))
        return pl.pallas_call(
            kernel,
            out_shape=jax.ShapeDtypeStruct((n_pad, out_ch), jnp.float32),
            grid_spec=pltpu.PrefetchScalarGridSpec(
                num_scalar_prefetch=0,
                grid=grid,
                in_specs=in_specs,
                out_specs=pl.BlockSpec((tile_rows, out_ch), lambda i: (i, 0)),
            ),
            compiler_params=pltpu.CompilerParams(
                dimension_semantics=("parallel",),   # megacore-shard the row tiles
                vmem_limit_bytes=vmem_budget),
            cost_estimate=pl.CostEstimate(
                flops=int(flops), transcendentals=int(transc),
                bytes_accessed=int(bytes_accessed)),
        )(rows, *flat_params)

    try:
        y = run(pl.Buffered(1), 1)
    except Exception:
        # Fallback if single-buffered pipeline_mode is unsupported on this jax.
        y = run(None, 2)

    # Rows were fed in (b, c, h) order -> (B, C, H, 128) -> NCHW-style (B, 128, H, C).
    y = y[:n].reshape(B, C, H, out_ch).transpose(0, 3, 2, 1)
    # torch.split(x, H//2, dim=-2) then concat along dim 1 (pure layout glue).
    half = H // 2
    out = jnp.concatenate([y[:, :, :half, :], y[:, :, half:, :]], axis=1)
    return out.astype(jnp.float32)      # (B, 256, H//2, C)


def encoder_reference(x, layers, final):
    """Pure-JAX reference with the ORIGINAL (unfolded, unpadded) math."""
    B, C, H, W = x.shape
    h = x.reshape(-1, W).astype(jnp.float32)
    for w, b, s, t in layers:
        h = h @ w + b
        h = h * s + t
        h = h * (1.0 / (1.0 + jnp.exp(-h)))
    h = jnp.tanh(h @ final[0] + final[1])
    y = h.reshape(B, C, H, final[0].shape[1]).transpose(0, 3, 2, 1)
    half = H // 2
    return jnp.concatenate([y[:, :, :half, :], y[:, :, half:, :]],
                           axis=1).astype(jnp.float32)


if __name__ == "__main__":
    hop = 4                       # dim = 4*hop//2 + 1 = 9
    B, C, H = 2, 4, 8             # H must be even for the split/concat
    key = jax.random.PRNGKey(0)
    kp, kx = jax.random.split(key)
    layers, final, dim = init_params(kp, hop)
    x = jax.random.normal(kx, (B, C, H, dim), jnp.float32)

    ref = encoder_reference(x, layers, final)

    # Default path: bf16 weights/intermediates on the MXU, f32 accumulation.
    out = encoder_forward(x, layers, final)
    out = jax.block_until_ready(out)
    assert out.shape == (B, 2 * 128, H // 2, C), out.shape
    assert out.dtype == jnp.float32
    err = float(jnp.max(jnp.abs(out - ref)))
    assert jnp.allclose(out, ref, atol=5e-2, rtol=5e-2), err

    # f32 path (test-only strict check; exact BN fold + zero padding).
    out_f32 = encoder_forward(x, layers, final, matmul_dtype=jnp.float32)
    out_f32 = jax.block_until_ready(out_f32)
    err_f32 = float(jnp.max(jnp.abs(out_f32 - ref)))
    assert jnp.allclose(out_f32, ref, atol=1e-3, rtol=1e-3), err_f32

    print("KERNEL_OK")
</pallas_src>

<mosaic_0001>
module attributes {stable_mosaic.version = 11 : i64} {
  func.func @encoder_kernel(%arg0: i32, %arg1: memref<32x128xf32, #tpu.memory_space<vmem>>, %arg2: memref<128x128xbf16, #tpu.memory_space<vmem>>, %arg3: memref<1x128xf32, #tpu.memory_space<vmem>>, %arg4: memref<128x128xbf16, #tpu.memory_space<vmem>>, %arg5: memref<1x128xf32, #tpu.memory_space<vmem>>, %arg6: memref<128x256xbf16, #tpu.memory_space<vmem>>, %arg7: memref<1x256xf32, #tpu.memory_space<vmem>>, %arg8: memref<256x256xbf16, #tpu.memory_space<vmem>>, %arg9: memref<1x256xf32, #tpu.memory_space<vmem>>, %arg10: memref<256x384xbf16, #tpu.memory_space<vmem>>, %arg11: memref<1x384xf32, #tpu.memory_space<vmem>>, %arg12: memref<384x128xbf16, #tpu.memory_space<vmem>>, %arg13: memref<1x128xf32, #tpu.memory_space<vmem>>, %arg14: memref<32x128xf32, #tpu.memory_space<vmem>>) attributes {dimension_semantics = [#tpu.dimension_semantics<parallel>], iteration_bounds = array<i64: 2>, scalar_prefetch = 0 : i64, scratch_operands = 0 : i64, tpu.core_type = #tpu.core_type<tc>, window_params = [{transform_indices = @transform_0, window_bounds = array<i64: 32, 128>}, {pipeline_mode = #tpu.pipeline_mode<synchronous>, transform_indices = @transform_1, window_bounds = array<i64: 128, 128>}, {pipeline_mode = #tpu.pipeline_mode<synchronous>, transform_indices = @transform_2, window_bounds = array<i64: 1, 128>}, {pipeline_mode = #tpu.pipeline_mode<synchronous>, transform_indices = @transform_3, window_bounds = array<i64: 128, 128>}, {pipeline_mode = #tpu.pipeline_mode<synchronous>, transform_indices = @transform_4, window_bounds = array<i64: 1, 128>}, {pipeline_mode = #tpu.pipeline_mode<synchronous>, transform_indices = @transform_5, window_bounds = array<i64: 128, 256>}, {pipeline_mode = #tpu.pipeline_mode<synchronous>, transform_indices = @transform_6, window_bounds = array<i64: 1, 256>}, {pipeline_mode = #tpu.pipeline_mode<synchronous>, transform_indices = @transform_7, window_bounds = array<i64: 256, 256>}, {pipeline_mode = #tpu.pipeline_mode<synchronous>, transform_indices = @transform_8, window_bounds = array<i64: 1, 256>}, {pipeline_mode = #tpu.pipeline_mode<synchronous>, transform_indices = @transform_9, window_bounds = array<i64: 256, 384>}, {pipeline_mode = #tpu.pipeline_mode<synchronous>, transform_indices = @transform_10, window_bounds = array<i64: 1, 384>}, {pipeline_mode = #tpu.pipeline_mode<synchronous>, transform_indices = @transform_11, window_bounds = array<i64: 384, 128>}, {pipeline_mode = #tpu.pipeline_mode<synchronous>, transform_indices = @transform_12, window_bounds = array<i64: 1, 128>}, {transform_indices = @transform_13, window_bounds = array<i64: 32, 128>}]} {
    %c0 = arith.constant 0 : index
    %c0_0 = arith.constant 0 : index
    %0 = vector.load %arg1[%c0, %c0_0] : memref<32x128xf32, #tpu.memory_space<vmem>>, vector<32x128xf32>
    %c0_1 = arith.constant 0 : index
    %c0_2 = arith.constant 0 : index
    %1 = vector.load %arg2[%c0_1, %c0_2] : memref<128x128xbf16, #tpu.memory_space<vmem>>, vector<128x128xbf16>
    %2 = arith.truncf %0 : vector<32x128xf32> to vector<32x128xbf16>
    %cst = arith.constant dense<0.000000e+00> : vector<32x128xf32>
    %3 = tpu.matmul %2, %1, %cst {dimension_numbers = #tpu.dot_dimension_numbers<[1], [0], [0], [1], [0, 0, 1, 1], [], []>} : vector<32x128xbf16>, vector<128x128xbf16>, vector<32x128xf32> -> vector<32x128xf32>
    %c0_3 = arith.constant 0 : index
    %c0_4 = arith.constant 0 : index
    %4 = vector.load %arg3[%c0_3, %c0_4] : memref<1x128xf32, #tpu.memory_space<vmem>>, vector<1x128xf32>
    %5 = vector.broadcast %4 : vector<1x128xf32> to vector<32x128xf32>
    %6 = arith.addf %3, %5 : vector<32x128xf32>
    %cst_5 = arith.constant 5.000000e-01 : f32
    %7 = vector.broadcast %cst_5 : f32 to vector<32x128xf32>
    %8 = arith.mulf %7, %6 : vector<32x128xf32>
    %9 = math.tanh %8 : vector<32x128xf32>
    %cst_6 = arith.constant 5.000000e-01 : f32
    %10 = vector.broadcast %cst_6 : f32 to vector<32x128xf32>
    %11 = arith.mulf %10, %9 : vector<32x128xf32>
    %cst_7 = arith.constant 5.000000e-01 : f32
    %12 = vector.broadcast %cst_7 : f32 to vector<32x128xf32>
    %13 = arith.addf %11, %12 : vector<32x128xf32>
    %14 = arith.mulf %6, %13 : vector<32x128xf32>
    %15 = arith.truncf %14 : vector<32x128xf32> to vector<32x128xbf16>
    %c0_8 = arith.constant 0 : index
    %c0_9 = arith.constant 0 : index
    %16 = vector.load %arg4[%c0_8, %c0_9] : memref<128x128xbf16, #tpu.memory_space<vmem>>, vector<128x128xbf16>
    %cst_10 = arith.constant dense<0.000000e+00> : vector<32x128xf32>
    %17 = tpu.matmul %15, %16, %cst_10 {dimension_numbers = #tpu.dot_dimension_numbers<[1], [0], [0], [1], [0, 0, 1, 1], [], []>} : vector<32x128xbf16>, vector<128x128xbf16>, vector<32x128xf32> -> vector<32x128xf32>
    %c0_11 = arith.constant 0 : index
    %c0_12 = arith.constant 0 : index
    %18 = vector.load %arg5[%c0_11, %c0_12] : memref<1x128xf32, #tpu.memory_space<vmem>>, vector<1x128xf32>
    %19 = vector.broadcast %18 : vector<1x128xf32> to vector<32x128xf32>
    %20 = arith.addf %17, %19 : vector<32x128xf32>
    %cst_13 = arith.constant 5.000000e-01 : f32
    %21 = vector.broadcast %cst_13 : f32 to vector<32x128xf32>
    %22 = arith.mulf %21, %20 : vector<32x128xf32>
    %23 = math.tanh %22 : vector<32x128xf32>
    %cst_14 = arith.constant 5.000000e-01 : f32
    %24 = vector.broadcast %cst_14 : f32 to vector<32x128xf32>
    %25 = arith.mulf %24, %23 : vector<32x128xf32>
    %cst_15 = arith.constant 5.000000e-01 : f32
    %26 = vector.broadcast %cst_15 : f32 to vector<32x128xf32>
    %27 = arith.addf %25, %26 : vector<32x128xf32>
    %28 = arith.mulf %20, %27 : vector<32x128xf32>
    %29 = arith.truncf %28 : vector<32x128xf32> to vector<32x128xbf16>
    %c0_16 = arith.constant 0 : index
    %c0_17 = arith.constant 0 : index
    %30 = vector.load %arg6[%c0_16, %c0_17] : memref<128x256xbf16, #tpu.memory_space<vmem>>, vector<128x256xbf16>
    %cst_18 = arith.constant dense<0.000000e+00> : vector<32x256xf32>
    %31 = tpu.matmul %29, %30, %cst_18 {dimension_numbers = #tpu.dot_dimension_numbers<[1], [0], [0], [1], [0, 0, 1, 1], [], []>} : vector<32x128xbf16>, vector<128x256xbf16>, vector<32x256xf32> -> vector<32x256xf32>
    %c0_19 = arith.constant 0 : index
    %c0_20 = arith.constant 0 : index
    %32 = vector.load %arg7[%c0_19, %c0_20] : memref<1x256xf32, #tpu.memory_space<vmem>>, vector<1x256xf32>
    %33 = vector.broadcast %32 : vector<1x256xf32> to vector<32x256xf32>
    %34 = arith.addf %31, %33 : vector<32x256xf32>
    %cst_21 = arith.constant 5.000000e-01 : f32
    %35 = vector.broadcast %cst_21 : f32 to vector<32x256xf32>
    %36 = arith.mulf %35, %34 : vector<32x256xf32>
    %37 = math.tanh %36 : vector<32x256xf32>
    %cst_22 = arith.constant 5.000000e-01 : f32
    %38 = vector.broadcast %cst_22 : f32 to vector<32x256xf32>
    %39 = arith.mulf %38, %37 : vector<32x256xf32>
    %cst_23 = arith.constant 5.000000e-01 : f32
    %40 = vector.broadcast %cst_23 : f32 to vector<32x256xf32>
    %41 = arith.addf %39, %40 : vector<32x256xf32>
    %42 = arith.mulf %34, %41 : vector<32x256xf32>
    %43 = arith.truncf %42 : vector<32x256xf32> to vector<32x256xbf16>
    %c0_24 = arith.constant 0 : index
    %c0_25 = arith.constant 0 : index
    %44 = vector.load %arg8[%c0_24, %c0_25] : memref<256x256xbf16, #tpu.memory_space<vmem>>, vector<256x256xbf16>
    %cst_26 = arith.constant dense<0.000000e+00> : vector<32x256xf32>
    %45 = tpu.matmul %43, %44, %cst_26 {dimension_numbers = #tpu.dot_dimension_numbers<[1], [0], [0], [1], [0, 0, 1, 1], [], []>} : vector<32x256xbf16>, vector<256x256xbf16>, vector<32x256xf32> -> vector<32x256xf32>
    %c0_27 = arith.constant 0 : index
    %c0_28 = arith.constant 0 : index
    %46 = vector.load %arg9[%c0_27, %c0_28] : memref<1x256xf32, #tpu.memory_space<vmem>>, vector<1x256xf32>
    %47 = vector.broadcast %46 : vector<1x256xf32> to vector<32x256xf32>
    %48 = arith.addf %45, %47 : vector<32x256xf32>
    %cst_29 = arith.constant 5.000000e-01 : f32
    %49 = vector.broadcast %cst_29 : f32 to vector<32x256xf32>
    %50 = arith.mulf %49, %48 : vector<32x256xf32>
    %51 = math.tanh %50 : vector<32x256xf32>
    %cst_30 = arith.constant 5.000000e-01 : f32
    %52 = vector.broadcast %cst_30 : f32 to vector<32x256xf32>
    %53 = arith.mulf %52, %51 : vector<32x256xf32>
    %cst_31 = arith.constant 5.000000e-01 : f32
    %54 = vector.broadcast %cst_31 : f32 to vector<32x256xf32>
    %55 = arith.addf %53, %54 : vector<32x256xf32>
    %56 = arith.mulf %48, %55 : vector<32x256xf32>
    %57 = arith.truncf %56 : vector<32x256xf32> to vector<32x256xbf16>
    %c0_32 = arith.constant 0 : index
    %c0_33 = arith.constant 0 : index
    %58 = vector.load %arg10[%c0_32, %c0_33] : memref<256x384xbf16, #tpu.memory_space<vmem>>, vector<256x384xbf16>
    %cst_34 = arith.constant dense<0.000000e+00> : vector<32x384xf32>
    %59 = tpu.matmul %57, %58, %cst_34 {dimension_numbers = #tpu.dot_dimension_numbers<[1], [0], [0], [1], [0, 0, 1, 1], [], []>} : vector<32x256xbf16>, vector<256x384xbf16>, vector<32x384xf32> -> vector<32x384xf32>
    %c0_35 = arith.constant 0 : index
    %c0_36 = arith.constant 0 : index
    %60 = vector.load %arg11[%c0_35, %c0_36] : memref<1x384xf32, #tpu.memory_space<vmem>>, vector<1x384xf32>
    %61 = vector.broadcast %60 : vector<1x384xf32> to vector<32x384xf32>
    %62 = arith.addf %59, %61 : vector<32x384xf32>
    %cst_37 = arith.constant 5.000000e-01 : f32
    %63 = vector.broadcast %cst_37 : f32 to vector<32x384xf32>
    %64 = arith.mulf %63, %62 : vector<32x384xf32>
    %65 = math.tanh %64 : vector<32x384xf32>
    %cst_38 = arith.constant 5.000000e-01 : f32
    %66 = vector.broadcast %cst_38 : f32 to vector<32x384xf32>
    %67 = arith.mulf %66, %65 : vector<32x384xf32>
    %cst_39 = arith.constant 5.000000e-01 : f32
    %68 = vector.broadcast %cst_39 : f32 to vector<32x384xf32>
    %69 = arith.addf %67, %68 : vector<32x384xf32>
    %70 = arith.mulf %62, %69 : vector<32x384xf32>
    %71 = arith.truncf %70 : vector<32x384xf32> to vector<32x384xbf16>
    %c0_40 = arith.constant 0 : index
    %c0_41 = arith.constant 0 : index
    %72 = vector.load %arg12[%c0_40, %c0_41] : memref<384x128xbf16, #tpu.memory_space<vmem>>, vector<384x128xbf16>
    %cst_42 = arith.constant dense<0.000000e+00> : vector<32x128xf32>
    %73 = tpu.matmul %71, %72, %cst_42 {dimension_numbers = #tpu.dot_dimension_numbers<[1], [0], [0], [1], [0, 0, 1, 1], [], []>} : vector<32x384xbf16>, vector<384x128xbf16>, vector<32x128xf32> -> vector<32x128xf32>
    %c0_43 = arith.constant 0 : index
    %c0_44 = arith.constant 0 : index
    %74 = vector.load %arg13[%c0_43, %c0_44] : memref<1x128xf32, #tpu.memory_space<vmem>>, vector<1x128xf32>
    %75 = vector.broadcast %74 : vector<1x128xf32> to vector<32x128xf32>
    %76 = arith.addf %73, %75 : vector<32x128xf32>
    %77 = math.tanh %76 : vector<32x128xf32>
    %c0_45 = arith.constant 0 : index
    %c0_46 = arith.constant 0 : index
    %78 = vector.load %arg14[%c0_45, %c0_46] : memref<32x128xf32, #tpu.memory_space<vmem>>, vector<32x128xf32>
    tpu.vector_store %arg14[%c0_45, %c0_46], %77 {strides = array<i32>} : memref<32x128xf32, #tpu.memory_space<vmem>>, vector<32x128xf32>,
    return
  }
  func.func @transform_0(%arg0: i32) -> (i32, i32) {
    %c0_i32 = arith.constant 0 : i32
    %c0_i32_0 = arith.constant 0 : i32
    return %arg0, %c0_i32 : i32, i32
  }
  func.func @transform_1(%arg0: i32) -> (i32, i32) {
    %c0_i32 = arith.constant 0 : i32
    %c0_i32_0 = arith.constant 0 : i32
    %c0_i32_1 = arith.constant 0 : i32
    return %c0_i32, %c0_i32_0 : i32, i32
  }
  func.func @transform_2(%arg0: i32) -> (i32, i32) {
    %c0_i32 = arith.constant 0 : i32
    %c0_i32_0 = arith.constant 0 : i32
    %c0_i32_1 = arith.constant 0 : i32
    return %c0_i32, %c0_i32_0 : i32, i32
  }
  func.func @transform_3(%arg0: i32) -> (i32, i32) {
    %c0_i32 = arith.constant 0 : i32
    %c0_i32_0 = arith.constant 0 : i32
    %c0_i32_1 = arith.constant 0 : i32
    return %c0_i32, %c0_i32_0 : i32, i32
  }
  func.func @transform_4(%arg0: i32) -> (i32, i32) {
    %c0_i32 = arith.constant 0 : i32
    %c0_i32_0 = arith.constant 0 : i32
    %c0_i32_1 = arith.constant 0 : i32
    return %c0_i32, %c0_i32_0 : i32, i32
  }
  func.func @transform_5(%arg0: i32) -> (i32, i32) {
    %c0_i32 = arith.constant 0 : i32
    %c0_i32_0 = arith.constant 0 : i32
    %c0_i32_1 = arith.constant 0 : i32
    return %c0_i32, %c0_i32_0 : i32, i32
  }
  func.func @transform_6(%arg0: i32) -> (i32, i32) {
    %c0_i32 = arith.constant 0 : i32
    %c0_i32_0 = arith.constant 0 : i32
    %c0_i32_1 = arith.constant 0 : i32
    return %c0_i32, %c0_i32_0 : i32, i32
  }
  func.func @transform_7(%arg0: i32) -> (i32, i32) {
    %c0_i32 = arith.constant 0 : i32
    %c0_i32_0 = arith.constant 0 : i32
    %c0_i32_1 = arith.constant 0 : i32
    return %c0_i32, %c0_i32_0 : i32, i32
  }
  func.func @transform_8(%arg0: i32) -> (i32, i32) {
    %c0_i32 = arith.constant 0 : i32
    %c0_i32_0 = arith.constant 0 : i32
    %c0_i32_1 = arith.constant 0 : i32
    return %c0_i32, %c0_i32_0 : i32, i32
  }
  func.func @transform_9(%arg0: i32) -> (i32, i32) {
    %c0_i32 = arith.constant 0 : i32
    %c0_i32_0 = arith.constant 0 : i32
    %c0_i32_1 = arith.constant 0 : i32
    return %c0_i32, %c0_i32_0 : i32, i32
  }
  func.func @transform_10(%arg0: i32) -> (i32, i32) {
    %c0_i32 = arith.constant 0 : i32
    %c0_i32_0 = arith.constant 0 : i32
    %c0_i32_1 = arith.constant 0 : i32
    return %c0_i32, %c0_i32_0 : i32, i32
  }
  func.func @transform_11(%arg0: i32) -> (i32, i32) {
    %c0_i32 = arith.constant 0 : i32
    %c0_i32_0 = arith.constant 0 : i32
    %c0_i32_1 = arith.constant 0 : i32
    return %c0_i32, %c0_i32_0 : i32, i32
  }
  func.func @transform_12(%arg0: i32) -> (i32, i32) {
    %c0_i32 = arith.constant 0 : i32
    %c0_i32_0 = arith.constant 0 : i32
    %c0_i32_1 = arith.constant 0 : i32
    return %c0_i32, %c0_i32_0 : i32, i32
  }
  func.func @transform_13(%arg0: i32) -> (i32, i32) {
    %c0_i32 = arith.constant 0 : i32
    %c0_i32_0 = arith.constant 0 : i32
    return %arg0, %c0_i32 : i32, i32
  }
}

module attributes {stable_mosaic.version = 11 : i64} {
  func.func @encoder_kernel(%arg0: i32, %arg1: memref<32x128xf32, #tpu.memory_space<vmem>>, %arg2: memref<128x128xbf16, #tpu.memory_space<vmem>>, %arg3: memref<1x128xf32, #tpu.memory_space<vmem>>, %arg4: memref<128x128xbf16, #tpu.memory_space<vmem>>, %arg5: memref<1x128xf32, #tpu.memory_space<vmem>>, %arg6: memref<128x256xbf16, #tpu.memory_space<vmem>>, %arg7: memref<1x256xf32, #tpu.memory_space<vmem>>, %arg8: memref<256x256xbf16, #tpu.memory_space<vmem>>, %arg9: memref<1x256xf32, #tpu.memory_space<vmem>>, %arg10: memref<256x384xbf16, #tpu.memory_space<vmem>>, %arg11: memref<1x384xf32, #tpu.memory_space<vmem>>, %arg12: memref<384x128xbf16, #tpu.memory_space<vmem>>, %arg13: memref<1x128xf32, #tpu.memory_space<vmem>>, %arg14: memref<32x128xf32, #tpu.memory_space<vmem>>) attributes {dimension_semantics = [#tpu.dimension_semantics<parallel>], iteration_bounds = array<i64: 2>, scalar_prefetch = 0 : i64, scratch_operands = 0 : i64, tpu.core_type = #tpu.core_type<tc>, window_params = [{transform_indices = @transform_0, window_bounds = array<i64: 32, 128>}, {pipeline_mode = #tpu.pipeline_mode<synchronous>, transform_indices = @transform_1, window_bounds = array<i64: 128, 128>}, {pipeline_mode = #tpu.pipeline_mode<synchronous>, transform_indices = @transform_2, window_bounds = array<i64: 1, 128>}, {pipeline_mode = #tpu.pipeline_mode<synchronous>, transform_indices = @transform_3, window_bounds = array<i64: 128, 128>}, {pipeline_mode = #tpu.pipeline_mode<synchronous>, transform_indices = @transform_4, window_bounds = array<i64: 1, 128>}, {pipeline_mode = #tpu.pipeline_mode<synchronous>, transform_indices = @transform_5, window_bounds = array<i64: 128, 256>}, {pipeline_mode = #tpu.pipeline_mode<synchronous>, transform_indices = @transform_6, window_bounds = array<i64: 1, 256>}, {pipeline_mode = #tpu.pipeline_mode<synchronous>, transform_indices = @transform_7, window_bounds = array<i64: 256, 256>}, {pipeline_mode = #tpu.pipeline_mode<synchronous>, transform_indices = @transform_8, window_bounds = array<i64: 1, 256>}, {pipeline_mode = #tpu.pipeline_mode<synchronous>, transform_indices = @transform_9, window_bounds = array<i64: 256, 384>}, {pipeline_mode = #tpu.pipeline_mode<synchronous>, transform_indices = @transform_10, window_bounds = array<i64: 1, 384>}, {pipeline_mode = #tpu.pipeline_mode<synchronous>, transform_indices = @transform_11, window_bounds = array<i64: 384, 128>}, {pipeline_mode = #tpu.pipeline_mode<synchronous>, transform_indices = @transform_12, window_bounds = array<i64: 1, 128>}, {transform_indices = @transform_13, window_bounds = array<i64: 32, 128>}]} {
    %c0 = arith.constant 0 : index
    %c0_0 = arith.constant 0 : index
    %0 = vector.load %arg1[%c0, %c0_0] : memref<32x128xf32, #tpu.memory_space<vmem>>, vector<32x128xf32>
    %c0_1 = arith.constant 0 : index
    %c0_2 = arith.constant 0 : index
    %1 = vector.load %arg2[%c0_1, %c0_2] : memref<128x128xbf16, #tpu.memory_space<vmem>>, vector<128x128xbf16>
    %2 = arith.truncf %0 : vector<32x128xf32> to vector<32x128xbf16>
    %cst = arith.constant dense<0.000000e+00> : vector<32x128xf32>
    %3 = tpu.matmul %2, %1, %cst {dimension_numbers = #tpu.dot_dimension_numbers<[1], [0], [0], [1], [0, 0, 1, 1], [], []>} : vector<32x128xbf16>, vector<128x128xbf16>, vector<32x128xf32> -> vector<32x128xf32>
    %c0_3 = arith.constant 0 : index
    %c0_4 = arith.constant 0 : index
    %4 = vector.load %arg3[%c0_3, %c0_4] : memref<1x128xf32, #tpu.memory_space<vmem>>, vector<1x128xf32>
    %5 = vector.broadcast %4 : vector<1x128xf32> to vector<32x128xf32>
    %6 = arith.addf %3, %5 : vector<32x128xf32>
    %cst_5 = arith.constant 5.000000e-01 : f32
    %7 = vector.broadcast %cst_5 : f32 to vector<32x128xf32>
    %8 = arith.mulf %7, %6 : vector<32x128xf32>
    %9 = math.tanh %8 : vector<32x128xf32>
    %cst_6 = arith.constant 5.000000e-01 : f32
    %10 = vector.broadcast %cst_6 : f32 to vector<32x128xf32>
    %11 = arith.mulf %10, %9 : vector<32x128xf32>
    %cst_7 = arith.constant 5.000000e-01 : f32
    %12 = vector.broadcast %cst_7 : f32 to vector<32x128xf32>
    %13 = arith.addf %11, %12 : vector<32x128xf32>
    %14 = arith.mulf %6, %13 : vector<32x128xf32>
    %15 = arith.truncf %14 : vector<32x128xf32> to vector<32x128xbf16>
    %c0_8 = arith.constant 0 : index
    %c0_9 = arith.constant 0 : index
    %16 = vector.load %arg4[%c0_8, %c0_9] : memref<128x128xbf16, #tpu.memory_space<vmem>>, vector<128x128xbf16>
    %cst_10 = arith.constant dense<0.000000e+00> : vector<32x128xf32>
    %17 = tpu.matmul %15, %16, %cst_10 {dimension_numbers = #tpu.dot_dimension_numbers<[1], [0], [0], [1], [0, 0, 1, 1], [], []>} : vector<32x128xbf16>, vector<128x128xbf16>, vector<32x128xf32> -> vector<32x128xf32>
    %c0_11 = arith.constant 0 : index
    %c0_12 = arith.constant 0 : index
    %18 = vector.load %arg5[%c0_11, %c0_12] : memref<1x128xf32, #tpu.memory_space<vmem>>, vector<1x128xf32>
    %19 = vector.broadcast %18 : vector<1x128xf32> to vector<32x128xf32>
    %20 = arith.addf %17, %19 : vector<32x128xf32>
    %cst_13 = arith.constant 5.000000e-01 : f32
    %21 = vector.broadcast %cst_13 : f32 to vector<32x128xf32>
    %22 = arith.mulf %21, %20 : vector<32x128xf32>
    %23 = math.tanh %22 : vector<32x128xf32>
    %cst_14 = arith.constant 5.000000e-01 : f32
    %24 = vector.broadcast %cst_14 : f32 to vector<32x128xf32>
    %25 = arith.mulf %24, %23 : vector<32x128xf32>
    %cst_15 = arith.constant 5.000000e-01 : f32
    %26 = vector.broadcast %cst_15 : f32 to vector<32x128xf32>
    %27 = arith.addf %25, %26 : vector<32x128xf32>
    %28 = arith.mulf %20, %27 : vector<32x128xf32>
    %29 = arith.truncf %28 : vector<32x128xf32> to vector<32x128xbf16>
    %c0_16 = arith.constant 0 : index
    %c0_17 = arith.constant 0 : index
    %30 = vector.load %arg6[%c0_16, %c0_17] : memref<128x256xbf16, #tpu.memory_space<vmem>>, vector<128x256xbf16>
    %cst_18 = arith.constant dense<0.000000e+00> : vector<32x256xf32>
    %31 = tpu.matmul %29, %30, %cst_18 {dimension_numbers = #tpu.dot_dimension_numbers<[1], [0], [0], [1], [0, 0, 1, 1], [], []>} : vector<32x128xbf16>, vector<128x256xbf16>, vector<32x256xf32> -> vector<32x256xf32>
    %c0_19 = arith.constant 0 : index
    %c0_20 = arith.constant 0 : index
    %32 = vector.load %arg7[%c0_19, %c0_20] : memref<1x256xf32, #tpu.memory_space<vmem>>, vector<1x256xf32>
    %33 = vector.broadcast %32 : vector<1x256xf32> to vector<32x256xf32>
    %34 = arith.addf %31, %33 : vector<32x256xf32>
    %cst_21 = arith.constant 5.000000e-01 : f32
    %35 = vector.broadcast %cst_21 : f32 to vector<32x256xf32>
    %36 = arith.mulf %35, %34 : vector<32x256xf32>
    %37 = math.tanh %36 : vector<32x256xf32>
    %cst_22 = arith.constant 5.000000e-01 : f32
    %38 = vector.broadcast %cst_22 : f32 to vector<32x256xf32>
    %39 = arith.mulf %38, %37 : vector<32x256xf32>
    %cst_23 = arith.constant 5.000000e-01 : f32
    %40 = vector.broadcast %cst_23 : f32 to vector<32x256xf32>
    %41 = arith.addf %39, %40 : vector<32x256xf32>
    %42 = arith.mulf %34, %41 : vector<32x256xf32>
    %43 = arith.truncf %42 : vector<32x256xf32> to vector<32x256xbf16>
    %c0_24 = arith.constant 0 : index
    %c0_25 = arith.constant 0 : index
    %44 = vector.load %arg8[%c0_24, %c0_25] : memref<256x256xbf16, #tpu.memory_space<vmem>>, vector<256x256xbf16>
    %cst_26 = arith.constant dense<0.000000e+00> : vector<32x256xf32>
    %45 = tpu.matmul %43, %44, %cst_26 {dimension_numbers = #tpu.dot_dimension_numbers<[1], [0], [0], [1], [0, 0, 1, 1], [], []>} : vector<32x256xbf16>, vector<256x256xbf16>, vector<32x256xf32> -> vector<32x256xf32>
    %c0_27 = arith.constant 0 : index
    %c0_28 = arith.constant 0 : index
    %46 = vector.load %arg9[%c0_27, %c0_28] : memref<1x256xf32, #tpu.memory_space<vmem>>, vector<1x256xf32>
    %47 = vector.broadcast %46 : vector<1x256xf32> to vector<32x256xf32>
    %48 = arith.addf %45, %47 : vector<32x256xf32>
    %cst_29 = arith.constant 5.000000e-01 : f32
    %49 = vector.broadcast %cst_29 : f32 to vector<32x256xf32>
    %50 = arith.mulf %49, %48 : vector<32x256xf32>
    %51 = math.tanh %50 : vector<32x256xf32>
    %cst_30 = arith.constant 5.000000e-01 : f32
    %52 = vector.broadcast %cst_30 : f32 to vector<32x256xf32>
    %53 = arith.mulf %52, %51 : vector<32x256xf32>
    %cst_31 = arith.constant 5.000000e-01 : f32
    %54 = vector.broadcast %cst_31 : f32 to vector<32x256xf32>
    %55 = arith.addf %53, %54 : vector<32x256xf32>
    %56 = arith.mulf %48, %55 : vector<32x256xf32>
    %57 = arith.truncf %56 : vector<32x256xf32> to vector<32x256xbf16>
    %c0_32 = arith.constant 0 : index
    %c0_33 = arith.constant 0 : index
    %58 = vector.load %arg10[%c0_32, %c0_33] : memref<256x384xbf16, #tpu.memory_space<vmem>>, vector<256x384xbf16>
    %cst_34 = arith.constant dense<0.000000e+00> : vector<32x384xf32>
    %59 = tpu.matmul %57, %58, %cst_34 {dimension_numbers = #tpu.dot_dimension_numbers<[1], [0], [0], [1], [0, 0, 1, 1], [], []>} : vector<32x256xbf16>, vector<256x384xbf16>, vector<32x384xf32> -> vector<32x384xf32>
    %c0_35 = arith.constant 0 : index
    %c0_36 = arith.constant 0 : index
    %60 = vector.load %arg11[%c0_35, %c0_36] : memref<1x384xf32, #tpu.memory_space<vmem>>, vector<1x384xf32>
    %61 = vector.broadcast %60 : vector<1x384xf32> to vector<32x384xf32>
    %62 = arith.addf %59, %61 : vector<32x384xf32>
    %cst_37 = arith.constant 5.000000e-01 : f32
    %63 = vector.broadcast %cst_37 : f32 to vector<32x384xf32>
    %64 = arith.mulf %63, %62 : vector<32x384xf32>
    %65 = math.tanh %64 : vector<32x384xf32>
    %cst_38 = arith.constant 5.000000e-01 : f32
    %66 = vector.broadcast %cst_38 : f32 to vector<32x384xf32>
    %67 = arith.mulf %66, %65 : vector<32x384xf32>
    %cst_39 = arith.constant 5.000000e-01 : f32
    %68 = vector.broadcast %cst_39 : f32 to vector<32x384xf32>
    %69 = arith.addf %67, %68 : vector<32x384xf32>
    %70 = arith.mulf %62, %69 : vector<32x384xf32>
    %71 = arith.truncf %70 : vector<32x384xf32> to vector<32x384xbf16>
    %c0_40 = arith.constant 0 : index
    %c0_41 = arith.constant 0 : index
    %72 = vector.load %arg12[%c0_40, %c0_41] : memref<384x128xbf16, #tpu.memory_space<vmem>>, vector<384x128xbf16>
    %cst_42 = arith.constant dense<0.000000e+00> : vector<32x128xf32>
    %73 = tpu.matmul %71, %72, %cst_42 {dimension_numbers = #tpu.dot_dimension_numbers<[1], [0], [0], [1], [0, 0, 1, 1], [], []>} : vector<32x384xbf16>, vector<384x128xbf16>, vector<32x128xf32> -> vector<32x128xf32>
    %c0_43 = arith.constant 0 : index
    %c0_44 = arith.constant 0 : index
    %74 = vector.load %arg13[%c0_43, %c0_44] : memref<1x128xf32, #tpu.memory_space<vmem>>, vector<1x128xf32>
    %75 = vector.broadcast %74 : vector<1x128xf32> to vector<32x128xf32>
    %76 = arith.addf %73, %75 : vector<32x128xf32>
    %77 = math.tanh %76 : vector<32x128xf32>
    %c0_45 = arith.constant 0 : index
    %c0_46 = arith.constant 0 : index
    %78 = vector.load %arg14[%c0_45, %c0_46] : memref<32x128xf32, #tpu.memory_space<vmem>>, vector<32x128xf32>
    tpu.vector_store %arg14[%c0_45, %c0_46], %77 {strides = array<i32>} : memref<32x128xf32, #tpu.memory_space<vmem>>, vector<32x128xf32>,
    return
  }
  func.func @transform_0(%arg0: i32) -> (i32, i32) {
    %c0_i32 = arith.constant 0 : i32
    %c0_i32_0 = arith.constant 0 : i32
    return %arg0, %c0_i32 : i32, i32
  }
  func.func @transform_1(%arg0: i32) -> (i32, i32) {
    %c0_i32 = arith.constant 0 : i32
    %c0_i32_0 = arith.constant 0 : i32
    %c0_i32_1 = arith.constant 0 : i32
    return %c0_i32, %c0_i32_0 : i32, i32
  }
  func.func @transform_2(%arg0: i32) -> (i32, i32) {
    %c0_i32 = arith.constant 0 : i32
    %c0_i32_0 = arith.constant 0 : i32
    %c0_i32_1 = arith.constant 0 : i32
    return %c0_i32, %c0_i32_0 : i32, i32
  }
  func.func @transform_3(%arg0: i32) -> (i32, i32) {
    %c0_i32 = arith.constant 0 : i32
    %c0_i32_0 = arith.constant 0 : i32
    %c0_i32_1 = arith.constant 0 : i32
    return %c0_i32, %c0_i32_0 : i32, i32
  }
  func.func @transform_4(%arg0: i32) -> (i32, i32) {
    %c0_i32 = arith.constant 0 : i32
    %c0_i32_0 = arith.constant 0 : i32
    %c0_i32_1 = arith.constant 0 : i32
    return %c0_i32, %c0_i32_0 : i32, i32
  }
  func.func @transform_5(%arg0: i32) -> (i32, i32) {
    %c0_i32 = arith.constant 0 : i32
    %c0_i32_0 = arith.constant 0 : i32
    %c0_i32_1 = arith.constant 0 : i32
    return %c0_i32, %c0_i32_0 : i32, i32
  }
  func.func @transform_6(%arg0: i32) -> (i32, i32) {
    %c0_i32 = arith.constant 0 : i32
    %c0_i32_0 = arith.constant 0 : i32
    %c0_i32_1 = arith.constant 0 : i32
    return %c0_i32, %c0_i32_0 : i32, i32
  }
  func.func @transform_7(%arg0: i32) -> (i32, i32) {
    %c0_i32 = arith.constant 0 : i32
    %c0_i32_0 = arith.constant 0 : i32
    %c0_i32_1 = arith.constant 0 : i32
    return %c0_i32, %c0_i32_0 : i32, i32
  }
  func.func @transform_8(%arg0: i32) -> (i32, i32) {
    %c0_i32 = arith.constant 0 : i32
    %c0_i32_0 = arith.constant 0 : i32
    %c0_i32_1 = arith.constant 0 : i32
    return %c0_i32, %c0_i32_0 : i32, i32
  }
  func.func @transform_9(%arg0: i32) -> (i32, i32) {
    %c0_i32 = arith.constant 0 : i32
    %c0_i32_0 = arith.constant 0 : i32
    %c0_i32_1 = arith.constant 0 : i32
    return %c0_i32, %c0_i32_0 : i32, i32
  }
  func.func @transform_10(%arg0: i32) -> (i32, i32) {
    %c0_i32 = arith.constant 0 : i32
    %c0_i32_0 = arith.constant 0 : i32
    %c0_i32_1 = arith.constant 0 : i32
    return %c0_i32, %c0_i32_0 : i32, i32
  }
  func.func @transform_11(%arg0: i32) -> (i32, i32) {
    %c0_i32 = arith.constant 0 : i32
    %c0_i32_0 = arith.constant 0 : i32
    %c0_i32_1 = arith.constant 0 : i32
    return %c0_i32, %c0_i32_0 : i32, i32
  }
  func.func @transform_12(%arg0: i32) -> (i32, i32) {
    %c0_i32 = arith.constant 0 : i32
    %c0_i32_0 = arith.constant 0 : i32
    %c0_i32_1 = arith.constant 0 : i32
    return %c0_i32, %c0_i32_0 : i32, i32
  }
  func.func @transform_13(%arg0: i32) -> (i32, i32) {
    %c0_i32 = arith.constant 0 : i32
    %c0_i32_0 = arith.constant 0 : i32
    return %arg0, %c0_i32 : i32, i32
  }
}

</mosaic_0001>

<llo_original>
// kernel: tpu_custom_call.1
$region0: #{tpu_custom_call.1}
  #allocation0 [shape = 'u32[]', space=smem, size = 0x4, offset = 0x4, fixed_abs, tag = 'smem constant byte address 0x4 - core index']
  #allocation1 [shape = 'u32[72,128]{1,0:T(1,128)}', space=vmem, size = 0x9000, scoped, tag = 'internal scratch']
  %s0 = inlined_call_operand.hbm [shape: f32[64,128], index: 0, kind: input, shape index: {}]
  %s1 = inlined_call_operand.hbm [shape: bf16[128,128], index: 1, kind: input, shape index: {}]
  %s2 = inlined_call_operand.hbm [shape: f32[1,128], index: 2, kind: input, shape index: {}]
  %s3 = inlined_call_operand.hbm [shape: bf16[128,128], index: 3, kind: input, shape index: {}]
  %s4 = inlined_call_operand.hbm [shape: f32[1,128], index: 4, kind: input, shape index: {}]
  %s5 = inlined_call_operand.hbm [shape: bf16[128,256], index: 5, kind: input, shape index: {}]
  %s6 = inlined_call_operand.vmem [shape: f32[1,256], index: 6, kind: input, shape index: {}]
  %s7 = inlined_call_operand.hbm [shape: bf16[256,256], index: 7, kind: input, shape index: {}]
  %s8 = inlined_call_operand.vmem [shape: f32[1,256], index: 8, kind: input, shape index: {}]
  %s9 = inlined_call_operand.hbm [shape: bf16[256,384], index: 9, kind: input, shape index: {}]
  %s10 = inlined_call_operand.vmem [shape: f32[1,384], index: 10, kind: input, shape index: {}]
  %s11 = inlined_call_operand.hbm [shape: bf16[384,128], index: 11, kind: input, shape index: {}]
  %s12 = inlined_call_operand.vmem [shape: f32[1,128], index: 12, kind: input, shape index: {}]
  %s13 = inlined_call_operand.hbm [shape: f32[64,128], index: 13, kind: output, shape index: {}]
  %s14 = sld [smem:[#allocation0]]
  $region121: #{tpu_custom_call.1} parent=0
    _
  %s16 = ssub.s32 1, %s14
  %s17 = scalar_select 0, %s16, %s14
  $region1: #{tpu_custom_call.1} parent=0
    #allocation2 [shape = 'u8[32768]{0}', space=vmem, size = 0x8000, scoped, tag = 'input window, operand 0']
    #allocation3 [shape = 's32[2]{0}', space=sflag, size = 0x8, scoped, tag = 'scoped memory for tpu_custom_call.1']
    #allocation4 [shape = 's32[2]{0}', space=sflag, size = 0x8, scoped, tag = 'scoped memory for tpu_custom_call.1']
    #allocation5 [shape = 'u8[32768]{0}', space=vmem, size = 0x8000, scoped, tag = 'input window, operand 1, single buffered']
    #allocation6 [shape = 's32[1]{0}', space=sflag, size = 0x4, scoped, tag = 'scoped memory for tpu_custom_call.1']
    #allocation7 [shape = 'u8[512]{0}', space=vmem, size = 0x400, scoped, tag = 'input window, operand 2, single buffered']
    #allocation8 [shape = 'u8[32768]{0}', space=vmem, size = 0x8000, scoped, tag = 'input window, operand 3, single buffered']
    #allocation9 [shape = 's32[1]{0}', space=sflag, size = 0x4, scoped, tag = 'scoped memory for tpu_custom_call.1']
    #allocation10 [shape = 'u8[512]{0}', space=vmem, size = 0x400, scoped, tag = 'input window, operand 4, single buffered']
    #allocation11 [shape = 'u8[65536]{0}', space=vmem, size = 0x10000, scoped, tag = 'input window, operand 5, single buffered']
    #allocation12 [shape = 's32[1]{0}', space=sflag, size = 0x4, scoped, tag = 'scoped memory for tpu_custom_call.1']
    #allocation13 [shape = 'u8[131072]{0}', space=vmem, size = 0x20000, scoped, tag = 'input window, operand 7, single buffered']
    #allocation14 [shape = 'u8[196608]{0}', space=vmem, size = 0x30000, scoped, tag = 'input window, operand 9, single buffered']
    #allocation15 [shape = 's32[1]{0}', space=sflag, size = 0x4, scoped, tag = 'scoped memory for tpu_custom_call.1']
    #allocation16 [shape = 'u8[98304]{0}', space=vmem, size = 0x18000, scoped, tag = 'input window, operand 11, single buffered']
    #allocation17 [shape = 'u8[32768]{0}', space=vmem, size = 0x8000, scoped, tag = 'output window, operand 0']
    %18 = vsyncpa [#allocation3], 0
    %s19 = scalar_lea.sflag [#allocation3], 1
    %20 = vsyncpa %s19, 0
    %21 = vsyncpa [#allocation6], 0
    %22 = vsyncpa [#allocation9], 0
    %23 = vsyncpa [#allocation12], 0
    %24 = vsyncpa [#allocation15], 0
    %25 = vsyncpa [#allocation4], 0
    %s26 = scalar_lea.sflag [#allocation4], 1
    %27 = vsyncpa %s26, 0
    loop: start=0, step=1, limit=4
    $region2: #{tpu_custom_call.1} parent=1 // loop_pre_header
      _
    $region3: #{tpu_custom_call.1} parent=1 // loop_header
      %s29 = sphi 0, %s33
      %p30 = scmp.ge.s32.totalorder %s29, 4
      %s39 = sphi 0, %s41
      %s42 = sphi 0, %s39
      %s43 = sphi 0, %s42
      %s59 = sphi 0, %s43
      %s63 = sphi 0, %s63
      %s65 = sphi 0, %s63
      %s66 = sphi 0, %s65
      %s80 = sphi 0, %s66
      %s84 = sphi 0, %s84
      %s86 = sphi 0, %s84
      %s87 = sphi 0, %s86
      %s101 = sphi 0, %s87
      %s105 = sphi 0, %s105
      %s107 = sphi 0, %s105
      %s108 = sphi 0, %s107
      %s122 = sphi 0, %s108
      %s126 = sphi 0, %s126
      %s128 = sphi 0, %s126
      %s129 = sphi 0, %s128
      %s143 = sphi 0, %s129
      %s147 = sphi 0, %s147
      %s149 = sphi 0, %s147
      %s150 = sphi 0, %s149
      %s164 = sphi 0, %s150
      %s168 = sphi 0, %s168
      %s170 = sphi 0, %s168
      %s171 = sphi 0, %s170
      %s185 = sphi 0, %s171
      %s189 = sphi 0, %s189
      %s191 = sphi 0, %s189
      %s192 = sphi 0, %s191
      %s206 = sphi 0, %s192
      %s210 = sphi 0, %s210
      %s212 = sphi 0, %s210
      %s213 = sphi 0, %s212
      %s227 = sphi 0, %s213
      %s231 = sphi 0, %s231
      %s233 = sphi 0, %s231
      %s234 = sphi 0, %s233
      %s248 = sphi 0, %s234
      %s252 = sphi 0, %s252
      %s254 = sphi 0, %s252
      %s255 = sphi 0, %s254
      %s269 = sphi 0, %s255
      %s273 = sphi 0, %s273
      %s275 = sphi 0, %s273
      %s276 = sphi 0, %s275
      %s290 = sphi 0, %s276
      %s294 = sphi 0, %s294
      %s296 = sphi 0, %s294
      %s297 = sphi 0, %s296
      %s311 = sphi 0, %s297
      %s317 = sphi 0, %s319
      %s320 = sphi 0, %s317
      %s321 = sphi 0, %s320
      %s337 = sphi 0, %s321
    $region4: #{tpu_custom_call.1} parent=1 // loop_header_branch
      %32 = sbr.rel (%p30) target = $region8
    $region5: #{tpu_custom_call.1} parent=1 // loop_body
      %s34 = ssub.s32 %s29, 1
      %s35 = ssub.s32 %s29, 2
      %s36 = sadd.s32 %s29, 1
      %s37 = ssub.s32 %s29, %s36
      %p38 = scmp.eq.s32.totalorder %s37, 0
      %s40 = sadd.s32 %s39, 1
      %s41 = scalar_select %p38, %s39, %s40
      %p44 = pneg %p38
      %p45 = scmp.eq.s32.totalorder %s29, 1
      %p46 = por %p44, %p45
      %p47 = scmp.ne.s32.totalorder %s39, %s42
      %p48 = scmp.eq.s32.totalorder %s29, 0
      %p49 = por %p47, %p48
      %p50 = scmp.ne.s32.totalorder %s39, %s42
      %p51 = scmp.eq.s32.totalorder %s34, 1
      %p52 = por %p50, %p51
      %p53 = scmp.ne.s32.totalorder %s42, %s43
      %p54 = scmp.eq.s32.totalorder %s34, 0
      %p55 = por %p53, %p54
      %p56 = scmp.ne.s32.totalorder %s42, %s43
      %p57 = scmp.eq.s32.totalorder %s35, 1
      %p58 = por %p56, %p57
      %p60 = scmp.ne.s32.totalorder %s43, %s59
      %p61 = scmp.eq.s32.totalorder %s35, 0
      %p62 = por %p60, %p61
      %s64 = sadd.s32 %s63, 1
      %p67 = scmp.eq.s32.totalorder %s29, 1
      %p68 = scmp.ne.s32.totalorder %s63, %s65
      %p69 = scmp.eq.s32.totalorder %s29, 0
      %p70 = por %p68, %p69
      %p71 = scmp.ne.s32.totalorder %s63, %s65
      %p72 = scmp.eq.s32.totalorder %s34, 1
      %p73 = por %p71, %p72
      %p74 = scmp.ne.s32.totalorder %s65, %s66
      %p75 = scmp.eq.s32.totalorder %s34, 0
      %p76 = por %p74, %p75
      %p77 = scmp.ne.s32.totalorder %s65, %s66
      %p78 = scmp.eq.s32.totalorder %s35, 1
      %p79 = por %p77, %p78
      %p81 = scmp.ne.s32.totalorder %s66, %s80
      %p82 = scmp.eq.s32.totalorder %s35, 0
      %p83 = por %p81, %p82
      %s85 = sadd.s32 %s84, 1
      %p88 = scmp.eq.s32.totalorder %s29, 1
      %p89 = scmp.ne.s32.totalorder %s84, %s86
      %p90 = scmp.eq.s32.totalorder %s29, 0
      %p91 = por %p89, %p90
      %p92 = scmp.ne.s32.totalorder %s84, %s86
      %p93 = scmp.eq.s32.totalorder %s34, 1
      %p94 = por %p92, %p93
      %p95 = scmp.ne.s32.totalorder %s86, %s87
      %p96 = scmp.eq.s32.totalorder %s34, 0
      %p97 = por %p95, %p96
      %p98 = scmp.ne.s32.totalorder %s86, %s87
      %p99 = scmp.eq.s32.totalorder %s35, 1
      %p100 = por %p98, %p99
      %p102 = scmp.ne.s32.totalorder %s87, %s101
      %p103 = scmp.eq.s32.totalorder %s35, 0
      %p104 = por %p102, %p103
      %s106 = sadd.s32 %s105, 1
      %p109 = scmp.eq.s32.totalorder %s29, 1
      %p110 = scmp.ne.s32.totalorder %s105, %s107
      %p111 = scmp.eq.s32.totalorder %s29, 0
      %p112 = por %p110, %p111
      %p113 = scmp.ne.s32.totalorder %s105, %s107
      %p114 = scmp.eq.s32.totalorder %s34, 1
      %p115 = por %p113, %p114
      %p116 = scmp.ne.s32.totalorder %s107, %s108
      %p117 = scmp.eq.s32.totalorder %s34, 0
      %p118 = por %p116, %p117
      %p119 = scmp.ne.s32.totalorder %s107, %s108
      %p120 = scmp.eq.s32.totalorder %s35, 1
      %p121 = por %p119, %p120
      %p123 = scmp.ne.s32.totalorder %s108, %s122
      %p124 = scmp.eq.s32.totalorder %s35, 0
      %p125 = por %p123, %p124
      %s127 = sadd.s32 %s126, 1
      %p130 = scmp.eq.s32.totalorder %s29, 1
      %p131 = scmp.ne.s32.totalorder %s126, %s128
      %p132 = scmp.eq.s32.totalorder %s29, 0
      %p133 = por %p131, %p132
      %p134 = scmp.ne.s32.totalorder %s126, %s128
      %p135 = scmp.eq.s32.totalorder %s34, 1
      %p136 = por %p134, %p135
      %p137 = scmp.ne.s32.totalorder %s128, %s129
      %p138 = scmp.eq.s32.totalorder %s34, 0
      %p139 = por %p137, %p138
      %p140 = scmp.ne.s32.totalorder %s128, %s129
      %p141 = scmp.eq.s32.totalorder %s35, 1
      %p142 = por %p140, %p141
      %p144 = scmp.ne.s32.totalorder %s129, %s143
      %p145 = scmp.eq.s32.totalorder %s35, 0
      %p146 = por %p144, %p145
      %s148 = sadd.s32 %s147, 1
      %p151 = scmp.eq.s32.totalorder %s29, 1
      %p152 = scmp.ne.s32.totalorder %s147, %s149
      %p153 = scmp.eq.s32.totalorder %s29, 0
      %p154 = por %p152, %p153
      %p155 = scmp.ne.s32.totalorder %s147, %s149
      %p156 = scmp.eq.s32.totalorder %s34, 1
      %p157 = por %p155, %p156
      %p158 = scmp.ne.s32.totalorder %s149, %s150
      %p159 = scmp.eq.s32.totalorder %s34, 0
      %p160 = por %p158, %p159
      %p161 = scmp.ne.s32.totalorder %s149, %s150
      %p162 = scmp.eq.s32.totalorder %s35, 1
      %p163 = por %p161, %p162
      %p165 = scmp.ne.s32.totalorder %s150, %s164
      %p166 = scmp.eq.s32.totalorder %s35, 0
      %p167 = por %p165, %p166
      %s169 = sadd.s32 %s168, 1
      %p172 = scmp.eq.s32.totalorder %s29, 1
      %p173 = scmp.ne.s32.totalorder %s168, %s170
      %p174 = scmp.eq.s32.totalorder %s29, 0
      %p175 = por %p173, %p174
      %p176 = scmp.ne.s32.totalorder %s168, %s170
      %p177 = scmp.eq.s32.totalorder %s34, 1
      %p178 = por %p176, %p177
      %p179 = scmp.ne.s32.totalorder %s170, %s171
      %p180 = scmp.eq.s32.totalorder %s34, 0
      %p181 = por %p179, %p180
      %p182 = scmp.ne.s32.totalorder %s170, %s171
      %p183 = scmp.eq.s32.totalorder %s35, 1
      %p184 = por %p182, %p183
      %p186 = scmp.ne.s32.totalorder %s171, %s185
      %p187 = scmp.eq.s32.totalorder %s35, 0
      %p188 = por %p186, %p187
      %s190 = sadd.s32 %s189, 1
      %p193 = scmp.eq.s32.totalorder %s29, 1
      %p194 = scmp.ne.s32.totalorder %s189, %s191
      %p195 = scmp.eq.s32.totalorder %s29, 0
      %p196 = por %p194, %p195
      %p197 = scmp.ne.s32.totalorder %s189, %s191
      %p198 = scmp.eq.s32.totalorder %s34, 1
      %p199 = por %p197, %p198
      %p200 = scmp.ne.s32.totalorder %s191, %s192
      %p201 = scmp.eq.s32.totalorder %s34, 0
      %p202 = por %p200, %p201
      %p203 = scmp.ne.s32.totalorder %s191, %s192
      %p204 = scmp.eq.s32.totalorder %s35, 1
      %p205 = por %p203, %p204
      %p207 = scmp.ne.s32.totalorder %s192, %s206
      %p208 = scmp.eq.s32.totalorder %s35, 0
      %p209 = por %p207, %p208
      %s211 = sadd.s32 %s210, 1
      %p214 = scmp.eq.s32.totalorder %s29, 1
      %p215 = scmp.ne.s32.totalorder %s210, %s212
      %p216 = scmp.eq.s32.totalorder %s29, 0
      %p217 = por %p215, %p216
      %p218 = scmp.ne.s32.totalorder %s210, %s212
      %p219 = scmp.eq.s32.totalorder %s34, 1
      %p220 = por %p218, %p219
      %p221 = scmp.ne.s32.totalorder %s212, %s213
      %p222 = scmp.eq.s32.totalorder %s34, 0
      %p223 = por %p221, %p222
      %p224 = scmp.ne.s32.totalorder %s212, %s213
      %p225 = scmp.eq.s32.totalorder %s35, 1
      %p226 = por %p224, %p225
      %p228 = scmp.ne.s32.totalorder %s213, %s227
      %p229 = scmp.eq.s32.totalorder %s35, 0
      %p230 = por %p228, %p229
      %s232 = sadd.s32 %s231, 1
      %p235 = scmp.eq.s32.totalorder %s29, 1
      %p236 = scmp.ne.s32.totalorder %s231, %s233
      %p237 = scmp.eq.s32.totalorder %s29, 0
      %p238 = por %p236, %p237
      %p239 = scmp.ne.s32.totalorder %s231, %s233
      %p240 = scmp.eq.s32.totalorder %s34, 1
      %p241 = por %p239, %p240
      %p242 = scmp.ne.s32.totalorder %s233, %s234
      %p243 = scmp.eq.s32.totalorder %s34, 0
      %p244 = por %p242, %p243
      %p245 = scmp.ne.s32.totalorder %s233, %s234
      %p246 = scmp.eq.s32.totalorder %s35, 1
      %p247 = por %p245, %p246
      %p249 = scmp.ne.s32.totalorder %s234, %s248
      %p250 = scmp.eq.s32.totalorder %s35, 0
      %p251 = por %p249, %p250
      %s253 = sadd.s32 %s252, 1
      %p256 = scmp.eq.s32.totalorder %s29, 1
      %p257 = scmp.ne.s32.totalorder %s252, %s254
      %p258 = scmp.eq.s32.totalorder %s29, 0
      %p259 = por %p257, %p258
      %p260 = scmp.ne.s32.totalorder %s252, %s254
      %p261 = scmp.eq.s32.totalorder %s34, 1
      %p262 = por %p260, %p261
      %p263 = scmp.ne.s32.totalorder %s254, %s255
      %p264 = scmp.eq.s32.totalorder %s34, 0
      %p265 = por %p263, %p264
      %p266 = scmp.ne.s32.totalorder %s254, %s255
      %p267 = scmp.eq.s32.totalorder %s35, 1
      %p268 = por %p266, %p267
      %p270 = scmp.ne.s32.totalorder %s255, %s269
      %p271 = scmp.eq.s32.totalorder %s35, 0
      %p272 = por %p270, %p271
      %s274 = sadd.s32 %s273, 1
      %p277 = scmp.eq.s32.totalorder %s29, 1
      %p278 = scmp.ne.s32.totalorder %s273, %s275
      %p279 = scmp.eq.s32.totalorder %s29, 0
      %p280 = por %p278, %p279
      %p281 = scmp.ne.s32.totalorder %s273, %s275
      %p282 = scmp.eq.s32.totalorder %s34, 1
      %p283 = por %p281, %p282
      %p284 = scmp.ne.s32.totalorder %s275, %s276
      %p285 = scmp.eq.s32.totalorder %s34, 0
      %p286 = por %p284, %p285
      %p287 = scmp.ne.s32.totalorder %s275, %s276
      %p288 = scmp.eq.s32.totalorder %s35, 1
      %p289 = por %p287, %p288
      %p291 = scmp.ne.s32.totalorder %s276, %s290
      %p292 = scmp.eq.s32.totalorder %s35, 0
      %p293 = por %p291, %p292
      %s295 = sadd.s32 %s294, 1
      %p298 = scmp.eq.s32.totalorder %s29, 1
      %p299 = scmp.ne.s32.totalorder %s294, %s296
      %p300 = scmp.eq.s32.totalorder %s29, 0
      %p301 = por %p299, %p300
      %p302 = scmp.ne.s32.totalorder %s294, %s296
      %p303 = scmp.eq.s32.totalorder %s34, 1
      %p304 = por %p302, %p303
      %p305 = scmp.ne.s32.totalorder %s296, %s297
      %p306 = scmp.eq.s32.totalorder %s34, 0
      %p307 = por %p305, %p306
      %p308 = scmp.ne.s32.totalorder %s296, %s297
      %p309 = scmp.eq.s32.totalorder %s35, 1
      %p310 = por %p308, %p309
      %p312 = scmp.ne.s32.totalorder %s297, %s311
      %p313 = scmp.eq.s32.totalorder %s35, 0
      %p314 = por %p312, %p313
      %s315 = ssub.s32 %s29, %s36
      %p316 = scmp.eq.s32.totalorder %s315, 0
      %s318 = sadd.s32 %s317, 1
      %s319 = scalar_select %p316, %s317, %s318
      %p322 = pneg %p316
      %p323 = scmp.eq.s32.totalorder %s29, 1
      %p324 = por %p322, %p323
      %p325 = scmp.ne.s32.totalorder %s317, %s320
      %p326 = scmp.eq.s32.totalorder %s29, 0
      %p327 = por %p325, %p326
      %p328 = scmp.ne.s32.totalorder %s317, %s320
      %p329 = scmp.eq.s32.totalorder %s34, 1
      %p330 = por %p328, %p329
      %p331 = scmp.ne.s32.totalorder %s320, %s321
      %p332 = scmp.eq.s32.totalorder %s34, 0
      %p333 = por %p331, %p332
      %p334 = scmp.ne.s32.totalorder %s320, %s321
      %p335 = scmp.eq.s32.totalorder %s35, 1
      %p336 = por %p334, %p335
      %p338 = scmp.ne.s32.totalorder %s321, %s337
      %p339 = scmp.eq.s32.totalorder %s35, 0
      %p340 = por %p338, %p339
      %p341 = scmp.le.s32.totalorder 1, %s29
      %p342 = scmp.lt.s32.totalorder %s29, 3
      %p343 = pnand %p341, %p342
      %p344 = pneg %p343
      // Predicated region
      $region9: #{tpu_custom_call.1} parent=5 // pred_check
        _
      $region10: #{tpu_custom_call.1} parent=5 // pred_check_branch
        %346 = sbr.rel (%p343) target = $region12
      $region11: #{tpu_custom_call.1} parent=5 // pred_region
        %s347 = ssub.s32 %s29, 1
        // Predicated region
        $region13: #{tpu_custom_call.1} parent=11 // pred_check
          %p348 = pneg %p76
        $region14: #{tpu_custom_call.1} parent=11 // pred_check_branch
          %350 = sbr.rel (%p348) target = $region16
        $region15: #{tpu_custom_call.1} parent=11 // pred_region
          %352 = vsyncadd [#allocation6], 0
          %s353 = sshll.u32 %s1, 4
          %s354 = int_to_ptr.hbm [resolvable:$true] %s353
          %s355 = sshll.u32 [#allocation5], 4
          %s356 = int_to_ptr.vmem [resolvable:$true] %s355
          %361 = dma.hbm_to_vmem [thread:$0]  %s354, 1024, %s356, [#allocation6], 64, 64, 4
        $region16: #{tpu_custom_call.1} parent=11 // pred_fallthru
          _
        // Predicated region
        $region17: #{tpu_custom_call.1} parent=11 // pred_check
          %p362 = pneg %p97
        $region18: #{tpu_custom_call.1} parent=11 // pred_check_branch
          %364 = sbr.rel (%p362) target = $region20
        $region19: #{tpu_custom_call.1} parent=11 // pred_region
          %366 = vsyncadd [#allocation6], 0
          %s368 = sshll.u32 %s2, 4
          %s369 = int_to_ptr.hbm [resolvable:$true] %s368
          %s370 = sshll.u32 [#allocation7], 4
          %s371 = int_to_ptr.vmem [resolvable:$true] %s370
          %373 = dma.hbm_to_vmem [thread:$0]  %s369, 16, %s371, [#allocation6]
        $region20: #{tpu_custom_call.1} parent=11 // pred_fallthru
          _
        // Predicated region
        $region21: #{tpu_custom_call.1} parent=11 // pred_check
          %p374 = pneg %p118
        $region22: #{tpu_custom_call.1} parent=11 // pred_check_branch
          %376 = sbr.rel (%p374) target = $region24
        $region23: #{tpu_custom_call.1} parent=11 // pred_region
          %378 = vsyncadd [#allocation9], 0
          %s379 = sshll.u32 %s3, 4
          %s380 = int_to_ptr.hbm [resolvable:$true] %s379
          %s381 = sshll.u32 [#allocation8], 4
          %s382 = int_to_ptr.vmem [resolvable:$true] %s381
          %387 = dma.hbm_to_vmem [thread:$0]  %s380, 1024, %s382, [#allocation9], 64, 64, 4
        $region24: #{tpu_custom_call.1} parent=11 // pred_fallthru
          _
        // Predicated region
        $region25: #{tpu_custom_call.1} parent=11 // pred_check
          %p388 = pneg %p139
        $region26: #{tpu_custom_call.1} parent=11 // pred_check_branch
          %390 = sbr.rel (%p388) target = $region28
        $region27: #{tpu_custom_call.1} parent=11 // pred_region
          %392 = vsyncadd [#allocation9], 0
          %s394 = sshll.u32 %s4, 4
          %s395 = int_to_ptr.hbm [resolvable:$true] %s394
          %s396 = sshll.u32 [#allocation10], 4
          %s397 = int_to_ptr.vmem [resolvable:$true] %s396
          %399 = dma.hbm_to_vmem [thread:$0]  %s395, 16, %s397, [#allocation9]
        $region28: #{tpu_custom_call.1} parent=11 // pred_fallthru
          _
        // Predicated region
        $region29: #{tpu_custom_call.1} parent=11 // pred_check
          %p400 = pneg %p160
        $region30: #{tpu_custom_call.1} parent=11 // pred_check_branch
          %402 = sbr.rel (%p400) target = $region32
        $region31: #{tpu_custom_call.1} parent=11 // pred_region
          %404 = vsyncadd [#allocation12], 0
          %s405 = sshll.u32 %s5, 4
          %s406 = int_to_ptr.hbm [resolvable:$true] %s405
          %s407 = sshll.u32 [#allocation11], 4
          %s408 = int_to_ptr.vmem [resolvable:$true] %s407
          %413 = dma.hbm_to_vmem [thread:$0]  %s406, 2048, %s408, [#allocation12], 128, 128, 8
        $region32: #{tpu_custom_call.1} parent=11 // pred_fallthru
          _
        // Predicated region
        $region33: #{tpu_custom_call.1} parent=11 // pred_check
          %p414 = pneg %p181
        $region34: #{tpu_custom_call.1} parent=11 // pred_check_branch
          %416 = sbr.rel (%p414) target = $region36
        $region35: #{tpu_custom_call.1} parent=11 // pred_region
          _
        $region36: #{tpu_custom_call.1} parent=11 // pred_fallthru
          _
        // Predicated region
        $region37: #{tpu_custom_call.1} parent=11 // pred_check
          %p417 = pneg %p202
        $region38: #{tpu_custom_call.1} parent=11 // pred_check_branch
          %419 = sbr.rel (%p417) target = $region40
        $region39: #{tpu_custom_call.1} parent=11 // pred_region
          %421 = vsyncadd [#allocation12], 0
          %s422 = sshll.u32 %s7, 4
          %s423 = int_to_ptr.hbm [resolvable:$true] %s422
          %s424 = sshll.u32 [#allocation13], 4
          %s425 = int_to_ptr.vmem [resolvable:$true] %s424
          %430 = dma.hbm_to_vmem [thread:$0]  %s423, 4096, %s425, [#allocation12], 128, 128, 8
        $region40: #{tpu_custom_call.1} parent=11 // pred_fallthru
          _
        // Predicated region
        $region41: #{tpu_custom_call.1} parent=11 // pred_check
          %p431 = pneg %p223
        $region42: #{tpu_custom_call.1} parent=11 // pred_check_branch
          %433 = sbr.rel (%p431) target = $region44
        $region43: #{tpu_custom_call.1} parent=11 // pred_region
          _
        $region44: #{tpu_custom_call.1} parent=11 // pred_fallthru
          _
        // Predicated region
        $region45: #{tpu_custom_call.1} parent=11 // pred_check
          %p434 = pneg %p244
        $region46: #{tpu_custom_call.1} parent=11 // pred_check_branch
          %436 = sbr.rel (%p434) target = $region48
        $region47: #{tpu_custom_call.1} parent=11 // pred_region
          %438 = vsyncadd [#allocation15], 0
          %s439 = sshll.u32 %s9, 4
          %s440 = int_to_ptr.hbm [resolvable:$true] %s439
          %s441 = sshll.u32 [#allocation14], 4
          %s442 = int_to_ptr.vmem [resolvable:$true] %s441
          %447 = dma.hbm_to_vmem [thread:$0]  %s440, 6144, %s442, [#allocation15], 192, 192, 12
        $region48: #{tpu_custom_call.1} parent=11 // pred_fallthru
          _
        // Predicated region
        $region49: #{tpu_custom_call.1} parent=11 // pred_check
          %p448 = pneg %p265
        $region50: #{tpu_custom_call.1} parent=11 // pred_check_branch
          %450 = sbr.rel (%p448) target = $region52
        $region51: #{tpu_custom_call.1} parent=11 // pred_region
          _
        $region52: #{tpu_custom_call.1} parent=11 // pred_fallthru
          _
        // Predicated region
        $region53: #{tpu_custom_call.1} parent=11 // pred_check
          %p451 = pneg %p286
        $region54: #{tpu_custom_call.1} parent=11 // pred_check_branch
          %453 = sbr.rel (%p451) target = $region56
        $region55: #{tpu_custom_call.1} parent=11 // pred_region
          %455 = vsyncadd [#allocation15], 0
          %s456 = sshll.u32 %s11, 4
          %s457 = int_to_ptr.hbm [resolvable:$true] %s456
          %s458 = sshll.u32 [#allocation16], 4
          %s459 = int_to_ptr.vmem [resolvable:$true] %s458
          %464 = dma.hbm_to_vmem [thread:$0]  %s457, 3072, %s459, [#allocation15], 64, 64, 4
        $region56: #{tpu_custom_call.1} parent=11 // pred_fallthru
          _
        // Predicated region
        $region57: #{tpu_custom_call.1} parent=11 // pred_check
          %p465 = pneg %p307
        $region58: #{tpu_custom_call.1} parent=11 // pred_check_branch
          %467 = sbr.rel (%p465) target = $region60
        $region59: #{tpu_custom_call.1} parent=11 // pred_region
          _
        $region60: #{tpu_custom_call.1} parent=11 // pred_fallthru
          _
      $region12: #{tpu_custom_call.1} parent=5 // pred_fallthru
        _
      %p468 = scmp.lt.s32.totalorder %s29, 2
      // Predicated region
      $region61: #{tpu_custom_call.1} parent=5 // pred_check
        %p469 = pneg %p468
      $region62: #{tpu_custom_call.1} parent=5 // pred_check_branch
        %471 = sbr.rel (%p469) target = $region64
      $region63: #{tpu_custom_call.1} parent=5 // pred_region
        // Predicated region
        $region65: #{tpu_custom_call.1} parent=63 // pred_check
          %p472 = pneg %p49
        $region66: #{tpu_custom_call.1} parent=63 // pred_check_branch
          %474 = sbr.rel (%p472) target = $region68
        $region67: #{tpu_custom_call.1} parent=63 // pred_region
          %s475 = sand.u32 %s39, 1
          %s476 = scalar_lea.sflag [#allocation3], %s475
          %s477 = sand.u32 %s39, 1
          %s478 = smul.addr %s477, 32
          %s479 = scalar_lea.vmem [#allocation2], %s478
          %s480 = smul.u32 4, %s29
          %482 = vsyncadd %s476, 0
          %s483 = smul.addr %s480, 8
          %s484 = scalar_lea.hbm %s0, %s483
          %s485 = sshll.u32 %s484, 4
          %s486 = int_to_ptr.hbm [resolvable:$true] %s485
          %s487 = sshll.u32 %s479, 4
          %s488 = int_to_ptr.vmem [resolvable:$true] %s487
          %493 = dma.hbm_to_vmem [thread:$0]  %s486, 512, %s488, %s476, 128, 128, 8
        $region68: #{tpu_custom_call.1} parent=63 // pred_fallthru
          _
      $region64: #{tpu_custom_call.1} parent=5 // pred_fallthru
        _
      %p494 = scmp.le.s32.totalorder 1, %s29
      %p495 = scmp.lt.s32.totalorder %s29, 3
      %p496 = pnand %p494, %p495
      %p497 = pneg %p496
      // Predicated region
      $region69: #{tpu_custom_call.1} parent=5 // pred_check
        _
      $region70: #{tpu_custom_call.1} parent=5 // pred_check_branch
        %499 = sbr.rel (%p496) target = $region72
      $region71: #{tpu_custom_call.1} parent=5 // pred_region
        %s500 = ssub.s32 %s29, 1
        %s501 = sand.u32 %s42, 1
        %s502 = scalar_lea.sflag [#allocation3], %s501
        %s503 = sand.u32 %s42, 1
        %s504 = smul.addr %s503, 32
        %s505 = scalar_lea.vmem [#allocation2], %s504
        // Predicated region
        $region73: #{tpu_custom_call.1} parent=71 // pred_check
          %p506 = pneg %p55
        $region74: #{tpu_custom_call.1} parent=71 // pred_check_branch
          %508 = sbr.rel (%p506) target = $region76
        $region75: #{tpu_custom_call.1} parent=71 // pred_region
          %510 = dma.done %s502, 512
        $region76: #{tpu_custom_call.1} parent=71 // pred_fallthru
          _
        // Predicated region
        $region77: #{tpu_custom_call.1} parent=71 // pred_check
          %p511 = pneg %p76
        $region78: #{tpu_custom_call.1} parent=71 // pred_check_branch
          %513 = sbr.rel (%p511) target = $region80
        $region79: #{tpu_custom_call.1} parent=71 // pred_region
          %515 = dma.done [#allocation6], 1024
        $region80: #{tpu_custom_call.1} parent=71 // pred_fallthru
          _
        // Predicated region
        $region81: #{tpu_custom_call.1} parent=71 // pred_check
          %p516 = pneg %p97
        $region82: #{tpu_custom_call.1} parent=71 // pred_check_branch
          %518 = sbr.rel (%p516) target = $region84
        $region83: #{tpu_custom_call.1} parent=71 // pred_region
          %520 = dma.done [#allocation6], 16
        $region84: #{tpu_custom_call.1} parent=71 // pred_fallthru
          _
        // Predicated region
        $region85: #{tpu_custom_call.1} parent=71 // pred_check
          %p521 = pneg %p118
        $region86: #{tpu_custom_call.1} parent=71 // pred_check_branch
          %523 = sbr.rel (%p521) target = $region88
        $region87: #{tpu_custom_call.1} parent=71 // pred_region
          %525 = dma.done [#allocation9], 1024
        $region88: #{tpu_custom_call.1} parent=71 // pred_fallthru
          _
        // Predicated region
        $region89: #{tpu_custom_call.1} parent=71 // pred_check
          %p526 = pneg %p139
        $region90: #{tpu_custom_call.1} parent=71 // pred_check_branch
          %528 = sbr.rel (%p526) target = $region92
        $region91: #{tpu_custom_call.1} parent=71 // pred_region
          %530 = dma.done [#allocation9], 16
        $region92: #{tpu_custom_call.1} parent=71 // pred_fallthru
          _
        // Predicated region
        $region93: #{tpu_custom_call.1} parent=71 // pred_check
          %p531 = pneg %p160
        $region94: #{tpu_custom_call.1} parent=71 // pred_check_branch
          %533 = sbr.rel (%p531) target = $region96
        $region95: #{tpu_custom_call.1} parent=71 // pred_region
          %535 = dma.done [#allocation12], 2048
        $region96: #{tpu_custom_call.1} parent=71 // pred_fallthru
          _
        // Predicated region
        $region97: #{tpu_custom_call.1} parent=71 // pred_check
          %p536 = pneg %p202
        $region98: #{tpu_custom_call.1} parent=71 // pred_check_branch
          %538 = sbr.rel (%p536) target = $region100
        $region99: #{tpu_custom_call.1} parent=71 // pred_region
          %540 = dma.done [#allocation12], 4096
        $region100: #{tpu_custom_call.1} parent=71 // pred_fallthru
          _
        // Predicated region
        $region101: #{tpu_custom_call.1} parent=71 // pred_check
          %p541 = pneg %p244
        $region102: #{tpu_custom_call.1} parent=71 // pred_check_branch
          %543 = sbr.rel (%p541) target = $region104
        $region103: #{tpu_custom_call.1} parent=71 // pred_region
          %545 = dma.done [#allocation15], 6144
        $region104: #{tpu_custom_call.1} parent=71 // pred_fallthru
          _
        // Predicated region
        $region105: #{tpu_custom_call.1} parent=71 // pred_check
          %p546 = pneg %p286
        $region106: #{tpu_custom_call.1} parent=71 // pred_check_branch
          %548 = sbr.rel (%p546) target = $region108
        $region107: #{tpu_custom_call.1} parent=71 // pred_region
          %550 = dma.done [#allocation15], 3072
        $region108: #{tpu_custom_call.1} parent=71 // pred_fallthru
          _
        %s551 = sand.u32 %s42, 1
        %s552 = scalar_lea.sflag [#allocation3], %s551
        %s553 = sand.u32 %s42, 1
        %s554 = smul.addr %s553, 32
        %s555 = scalar_lea.vmem [#allocation2], %s554
        %p556 = pneg %p55
        %p557 = pneg %p52
        %p558 = pneg %p76
        %p559 = pneg %p73
        %p560 = pneg %p97
        %p561 = pneg %p94
        %p562 = pneg %p118
        %p563 = pneg %p115
        %p564 = pneg %p139
        %p565 = pneg %p136
        %p566 = pneg %p160
        %p567 = pneg %p157
        %p568 = pneg %p181
        %p569 = pneg %p178
        %p570 = pneg %p202
        %p571 = pneg %p199
        %p572 = pneg %p223
        %p573 = pneg %p220
        %p574 = pneg %p244
        %p575 = pneg %p241
        %p576 = pneg %p265
        %p577 = pneg %p262
        %p578 = pneg %p286
        %p579 = pneg %p283
        %p580 = pneg %p307
        %p581 = pneg %p304
        %p582 = pneg %p333
        %p583 = pneg %p330
        %s584 = sand.u32 %s320, 1
        %s585 = scalar_lea.sflag [#allocation4], %s584
        %s586 = sand.u32 %s320, 1
        %s587 = smul.addr %s586, 32
        %s588 = scalar_lea.vmem [#allocation17], %s587
        %s589 = smul.u32 4, %s34
        %s590 = smul.u32 4, %s34
        %v591 = vld [vmem:[%s505] sm:$0xff]
        %v592 = vld [vmem:[%s505 + $0x8] sm:$0xff]
        %v593 = vld [vmem:[%s505 + $0x10] sm:$0xff]
        %v594 = vld [vmem:[%s505 + $0x18] sm:$0xff]
        %v595 = vld [vmem:[#allocation5] sm:$0xf]
        %v596 = vld [vmem:[#allocation5 + $0x4] sm:$0xf]
        %v597 = vld [vmem:[#allocation5 + $0x8] sm:$0xf]
        %v598 = vld [vmem:[#allocation5 + $0xc] sm:$0xf]
        %v599 = vld [vmem:[#allocation5 + $0x10] sm:$0xf]
        %v600 = vld [vmem:[#allocation5 + $0x14] sm:$0xf]
        %v601 = vld [vmem:[#allocation5 + $0x18] sm:$0xf]
        %v602 = vld [vmem:[#allocation5 + $0x1c] sm:$0xf]
        %v603 = vld [vmem:[#allocation5 + $0x20] sm:$0xf]
        %v604 = vld [vmem:[#allocation5 + $0x24] sm:$0xf]
        %v605 = vld [vmem:[#allocation5 + $0x28] sm:$0xf]
        %v606 = vld [vmem:[#allocation5 + $0x2c] sm:$0xf]
        %v607 = vld [vmem:[#allocation5 + $0x30] sm:$0xf]
        %v608 = vld [vmem:[#allocation5 + $0x34] sm:$0xf]
        %v609 = vld [vmem:[#allocation5 + $0x38] sm:$0xf]
        %v610 = vld [vmem:[#allocation5 + $0x3c] sm:$0xf]
        %v611 = vpack.c.bf16 %v592, %v591
        %v612 = vpack.c.bf16 %v594, %v593
        %v613 = vld [vmem:[#allocation7] sm:$0x1]
        %v615 = vperm.slane %v613, 0
        %v633 = vunpack.c.l.b16 %v595
        %v634 = vunpack.c.l.b16 %v596
        %v635 = vunpack.c.l.b16 %v597
        %v636 = vunpack.c.l.b16 %v598
        %v637 = vunpack.c.l.b16 %v599
        %v638 = vunpack.c.l.b16 %v600
        %v639 = vunpack.c.l.b16 %v601
        %v640 = vunpack.c.l.b16 %v602
        %v641 = vunpack.c.l.b16 %v603
        %v642 = vunpack.c.l.b16 %v604
        %v643 = vunpack.c.l.b16 %v605
        %v644 = vunpack.c.l.b16 %v606
        %v645 = vunpack.c.l.b16 %v607
        %v646 = vunpack.c.l.b16 %v608
        %v647 = vunpack.c.l.b16 %v609
        %v648 = vunpack.c.l.b16 %v610
        %v649 = vpack.c.b16 %v634, %v633
        %v650 = vpack.c.b16 %v636, %v635
        %v651 = vpack.c.b16 %v638, %v637
        %v652 = vpack.c.b16 %v640, %v639
        %v653 = vpack.c.b16 %v642, %v641
        %v654 = vpack.c.b16 %v644, %v643
        %v655 = vpack.c.b16 %v646, %v645
        %v656 = vpack.c.b16 %v648, %v647
        %665 = vmatpush.bf16.msra.mxu0 %v656
        %666 = vmatpush.bf16.msra.mxu0 %v655
        %667 = vmatpush.bf16.msra.mxu0 %v654
        %668 = vmatpush.bf16.msra.mxu0 %v653
        %669 = vmatpush.bf16.msra.mxu0 %v652
        %670 = vmatpush.bf16.msra.mxu0 %v651
        %671 = vmatpush.bf16.msra.mxu0 %v650
        %672 = vmatpush.bf16.msra.mxu0 %v649
        %673 = vmatmul.bf16.gmra.mxu0 %v611
        %v674 = vpop.f32.mrf.mxu0
        %v675 = vadd.f32 %v615, %v674
        %v676 = vpop.f32.mrf.mxu0
        %v677 = vadd.f32 %v615, %v676
        %678 = vmatmul.bf16.gmra.mxu0 %v612
        %v679 = vpop.f32.mrf.mxu0
        %v680 = vadd.f32 %v615, %v679
        %v681 = vpop.f32.mrf.mxu0
        %v682 = vadd.f32 %v615, %v681
        %683 = vdwg.mxu0
        %v684 = vmul.f32 %v675, 0.5
        %v685 = vmul.f32 %v677, 0.5
        %v686 = vmul.f32 %v680, 0.5
        %v687 = vmul.f32 %v682, 0.5
        %v688 = vtanh.pop %v684
        %v689 = vtanh.pop %v685
        %v690 = vtanh.pop %v686
        %v691 = vtanh.pop %v687
        %v692 = vmul.f32 %v688, 0.5
        %v693 = vmul.f32 %v689, 0.5
        %v694 = vmul.f32 %v690, 0.5
        %v695 = vmul.f32 %v691, 0.5
        %v696 = vadd.f32 %v692, 0.5
        %v697 = vadd.f32 %v693, 0.5
        %v698 = vadd.f32 %v694, 0.5
        %v699 = vadd.f32 %v695, 0.5
        %v700 = vmul.f32 %v675, %v696
        %v701 = vmul.f32 %v677, %v697
        %v702 = vmul.f32 %v680, %v698
        %v703 = vmul.f32 %v682, %v699
        %v704 = vpack.c.bf16 %v701, %v700
        %v705 = vpack.c.bf16 %v703, %v702
        %v706 = vld [vmem:[#allocation8] sm:$0xf]
        %v707 = vld [vmem:[#allocation8 + $0x4] sm:$0xf]
        %v708 = vld [vmem:[#allocation8 + $0x8] sm:$0xf]
        %v709 = vld [vmem:[#allocation8 + $0xc] sm:$0xf]
        %v710 = vld [vmem:[#allocation8 + $0x10] sm:$0xf]
        %v711 = vld [vmem:[#allocation8 + $0x14] sm:$0xf]
        %v712 = vld [vmem:[#allocation8 + $0x18] sm:$0xf]
        %v713 = vld [vmem:[#allocation8 + $0x1c] sm:$0xf]
        %v714 = vld [vmem:[#allocation8 + $0x20] sm:$0xf]
        %v715 = vld [vmem:[#allocation8 + $0x24] sm:$0xf]
        %v716 = vld [vmem:[#allocation8 + $0x28] sm:$0xf]
        %v717 = vld [vmem:[#allocation8 + $0x2c] sm:$0xf]
        %v718 = vld [vmem:[#allocation8 + $0x30] sm:$0xf]
        %v719 = vld [vmem:[#allocation8 + $0x34] sm:$0xf]
        %v720 = vld [vmem:[#allocation8 + $0x38] sm:$0xf]
        %v721 = vld [vmem:[#allocation8 + $0x3c] sm:$0xf]
        %v722 = vld [vmem:[#allocation10] sm:$0x1]
        %v724 = vperm.slane %v722, 0
        %v742 = vunpack.c.l.b16 %v706
        %v743 = vunpack.c.l.b16 %v707
        %v744 = vunpack.c.l.b16 %v708
        %v745 = vunpack.c.l.b16 %v709
        %v746 = vunpack.c.l.b16 %v710
        %v747 = vunpack.c.l.b16 %v711
        %v748 = vunpack.c.l.b16 %v712
        %v749 = vunpack.c.l.b16 %v713
        %v750 = vunpack.c.l.b16 %v714
        %v751 = vunpack.c.l.b16 %v715
        %v752 = vunpack.c.l.b16 %v716
        %v753 = vunpack.c.l.b16 %v717
        %v754 = vunpack.c.l.b16 %v718
        %v755 = vunpack.c.l.b16 %v719
        %v756 = vunpack.c.l.b16 %v720
        %v757 = vunpack.c.l.b16 %v721
        %v758 = vpack.c.b16 %v743, %v742
        %v759 = vpack.c.b16 %v745, %v744
        %v760 = vpack.c.b16 %v747, %v746
        %v761 = vpack.c.b16 %v749, %v748
        %v762 = vpack.c.b16 %v751, %v750
        %v763 = vpack.c.b16 %v753, %v752
        %v764 = vpack.c.b16 %v755, %v754
        %v765 = vpack.c.b16 %v757, %v756
        %774 = vmatpush.bf16.msra.mxu0 %v765
        %775 = vmatpush.bf16.msra.mxu0 %v764
        %776 = vmatpush.bf16.msra.mxu0 %v763
        %777 = vmatpush.bf16.msra.mxu0 %v762
        %778 = vmatpush.bf16.msra.mxu0 %v761
        %779 = vmatpush.bf16.msra.mxu0 %v760
        %780 = vmatpush.bf16.msra.mxu0 %v759
        %781 = vmatpush.bf16.msra.mxu0 %v758
        %782 = vmatmul.bf16.gmra.mxu0 %v704
        %v783 = vpop.f32.mrf.mxu0
        %v784 = vadd.f32 %v724, %v783
        %v785 = vpop.f32.mrf.mxu0
        %v786 = vadd.f32 %v724, %v785
        %787 = vmatmul.bf16.gmra.mxu0 %v705
        %v788 = vpop.f32.mrf.mxu0
        %v789 = vadd.f32 %v724, %v788
        %v790 = vpop.f32.mrf.mxu0
        %v791 = vadd.f32 %v724, %v790
        %792 = vdwg.mxu0
        %v793 = vmul.f32 %v784, 0.5
        %v794 = vmul.f32 %v786, 0.5
        %v795 = vmul.f32 %v789, 0.5
        %v796 = vmul.f32 %v791, 0.5
        %v797 = vtanh.pop %v793
        %v798 = vtanh.pop %v794
        %v799 = vtanh.pop %v795
        %v800 = vtanh.pop %v796
        %v801 = vmul.f32 %v797, 0.5
        %v802 = vmul.f32 %v798, 0.5
        %v803 = vmul.f32 %v799, 0.5
        %v804 = vmul.f32 %v800, 0.5
        %v805 = vadd.f32 %v801, 0.5
        %v806 = vadd.f32 %v802, 0.5
        %v807 = vadd.f32 %v803, 0.5
        %v808 = vadd.f32 %v804, 0.5
        %v809 = vmul.f32 %v784, %v805
        %v810 = vmul.f32 %v786, %v806
        %v811 = vmul.f32 %v789, %v807
        %v812 = vmul.f32 %v791, %v808
        %v813 = vpack.c.bf16 %v810, %v809
        %v814 = vpack.c.bf16 %v812, %v811
        %v815 = vld [vmem:[#allocation11] sm:$0xff]
        %v816 = vld [vmem:[#allocation11 + $0x8] sm:$0xff]
        %v817 = vld [vmem:[#allocation11 + $0x10] sm:$0xff]
        %v818 = vld [vmem:[#allocation11 + $0x18] sm:$0xff]
        %v819 = vld [vmem:[#allocation11 + $0x20] sm:$0xff]
        %v820 = vld [vmem:[#allocation11 + $0x28] sm:$0xff]
        %v821 = vld [vmem:[#allocation11 + $0x30] sm:$0xff]
        %v822 = vld [vmem:[#allocation11 + $0x38] sm:$0xff]
        %v823 = vld [vmem:[#allocation11 + $0x40] sm:$0xff]
        %v824 = vld [vmem:[#allocation11 + $0x48] sm:$0xff]
        %v825 = vld [vmem:[#allocation11 + $0x50] sm:$0xff]
        %v826 = vld [vmem:[#allocation11 + $0x58] sm:$0xff]
        %v827 = vld [vmem:[#allocation11 + $0x60] sm:$0xff]
        %v828 = vld [vmem:[#allocation11 + $0x68] sm:$0xff]
        %v829 = vld [vmem:[#allocation11 + $0x70] sm:$0xff]
        %v830 = vld [vmem:[#allocation11 + $0x78] sm:$0xff]
        %v831 = vld [vmem:[%s6] sm:$0x3]
        %v833 = vperm.slane %v831, 0
        %v834 = vperm.slane %v831, 1
        %v853 = vunpack.c.l.b16 %v815
        %v854 = vunpack.c.h.b16 %v815
        %v855 = vunpack.c.l.b16 %v816
        %v856 = vunpack.c.h.b16 %v816
        %v857 = vunpack.c.l.b16 %v817
        %v858 = vunpack.c.h.b16 %v817
        %v859 = vunpack.c.l.b16 %v818
        %v860 = vunpack.c.h.b16 %v818
        %v861 = vunpack.c.l.b16 %v819
        %v862 = vunpack.c.h.b16 %v819
        %v863 = vunpack.c.l.b16 %v820
        %v864 = vunpack.c.h.b16 %v820
        %v865 = vunpack.c.l.b16 %v821
        %v866 = vunpack.c.h.b16 %v821
        %v867 = vunpack.c.l.b16 %v822
        %v868 = vunpack.c.h.b16 %v822
        %v869 = vunpack.c.l.b16 %v823
        %v870 = vunpack.c.h.b16 %v823
        %v871 = vunpack.c.l.b16 %v824
        %v872 = vunpack.c.h.b16 %v824
        %v873 = vunpack.c.l.b16 %v825
        %v874 = vunpack.c.h.b16 %v825
        %v875 = vunpack.c.l.b16 %v826
        %v876 = vunpack.c.h.b16 %v826
        %v877 = vunpack.c.l.b16 %v827
        %v878 = vunpack.c.h.b16 %v827
        %v879 = vunpack.c.l.b16 %v828
        %v880 = vunpack.c.h.b16 %v828
        %v881 = vunpack.c.l.b16 %v829
        %v882 = vunpack.c.h.b16 %v829
        %v883 = vunpack.c.l.b16 %v830
        %v884 = vunpack.c.h.b16 %v830
        %v885 = vpack.c.b16 %v855, %v853
        %v886 = vpack.c.b16 %v856, %v854
        %v887 = vpack.c.b16 %v859, %v857
        %v888 = vpack.c.b16 %v860, %v858
        %v889 = vpack.c.b16 %v863, %v861
        %v890 = vpack.c.b16 %v864, %v862
        %v891 = vpack.c.b16 %v867, %v865
        %v892 = vpack.c.b16 %v868, %v866
        %v893 = vpack.c.b16 %v871, %v869
        %v894 = vpack.c.b16 %v872, %v870
        %v895 = vpack.c.b16 %v875, %v873
        %v896 = vpack.c.b16 %v876, %v874
        %v897 = vpack.c.b16 %v879, %v877
        %v898 = vpack.c.b16 %v880, %v878
        %v899 = vpack.c.b16 %v883, %v881
        %v900 = vpack.c.b16 %v884, %v882
        %917 = vmatpush.bf16.msra.mxu0 %v899
        %918 = vmatpush.bf16.msra.mxu0 %v897
        %919 = vmatpush.bf16.msra.mxu0 %v895
        %920 = vmatpush.bf16.msra.mxu0 %v893
        %921 = vmatpush.bf16.msra.mxu0 %v891
        %922 = vmatpush.bf16.msra.mxu0 %v889
        %923 = vmatpush.bf16.msra.mxu0 %v887
        %924 = vmatpush.bf16.msra.mxu0 %v885
        %925 = vmatmul.bf16.gmra.mxu0 %v813
        %v926 = vpop.f32.mrf.mxu0
        %v927 = vadd.f32 %v833, %v926
        %v928 = vpop.f32.mrf.mxu0
        %v929 = vadd.f32 %v833, %v928
        %930 = vmatmul.bf16.gmra.mxu0 %v814
        %v931 = vpop.f32.mrf.mxu0
        %v932 = vadd.f32 %v833, %v931
        %v933 = vpop.f32.mrf.mxu0
        %v934 = vadd.f32 %v833, %v933
        %935 = vdwg.mxu0
        %936 = vmatpush.bf16.msra.mxu0 %v900
        %937 = vmatpush.bf16.msra.mxu0 %v898
        %938 = vmatpush.bf16.msra.mxu0 %v896
        %939 = vmatpush.bf16.msra.mxu0 %v894
        %940 = vmatpush.bf16.msra.mxu0 %v892
        %941 = vmatpush.bf16.msra.mxu0 %v890
        %942 = vmatpush.bf16.msra.mxu0 %v888
        %943 = vmatpush.bf16.msra.mxu0 %v886
        %944 = vmatmul.bf16.gmra.mxu0 %v813
        %v945 = vpop.f32.mrf.mxu0
        %v946 = vadd.f32 %v834, %v945
        %v947 = vpop.f32.mrf.mxu0
        %v948 = vadd.f32 %v834, %v947
        %949 = vmatmul.bf16.gmra.mxu0 %v814
        %v950 = vpop.f32.mrf.mxu0
        %v951 = vadd.f32 %v834, %v950
        %v952 = vpop.f32.mrf.mxu0
        %v953 = vadd.f32 %v834, %v952
        %954 = vdwg.mxu0
        %v955 = vmul.f32 %v927, 0.5
        %v956 = vmul.f32 %v946, 0.5
        %v957 = vmul.f32 %v929, 0.5
        %v958 = vmul.f32 %v948, 0.5
        %v959 = vmul.f32 %v932, 0.5
        %v960 = vmul.f32 %v951, 0.5
        %v961 = vmul.f32 %v934, 0.5
        %v962 = vmul.f32 %v953, 0.5
        %v963 = vtanh.pop %v955
        %v964 = vtanh.pop %v956
        %v965 = vtanh.pop %v957
        %v966 = vtanh.pop %v958
        %v967 = vtanh.pop %v959
        %v968 = vtanh.pop %v960
        %v969 = vtanh.pop %v961
        %v970 = vtanh.pop %v962
        %v971 = vmul.f32 %v963, 0.5
        %v972 = vmul.f32 %v964, 0.5
        %v973 = vmul.f32 %v965, 0.5
        %v974 = vmul.f32 %v966, 0.5
        %v975 = vmul.f32 %v967, 0.5
        %v976 = vmul.f32 %v968, 0.5
        %v977 = vmul.f32 %v969, 0.5
        %v978 = vmul.f32 %v970, 0.5
        %v979 = vadd.f32 %v971, 0.5
        %v980 = vadd.f32 %v972, 0.5
        %v981 = vadd.f32 %v973, 0.5
        %v982 = vadd.f32 %v974, 0.5
        %v983 = vadd.f32 %v975, 0.5
        %v984 = vadd.f32 %v976, 0.5
        %v985 = vadd.f32 %v977, 0.5
        %v986 = vadd.f32 %v978, 0.5
        %v987 = vmul.f32 %v927, %v979
        %v988 = vmul.f32 %v946, %v980
        %v989 = vmul.f32 %v929, %v981
        %v990 = vmul.f32 %v948, %v982
        %v991 = vmul.f32 %v932, %v983
        %v992 = vmul.f32 %v951, %v984
        %v993 = vmul.f32 %v934, %v985
        %v994 = vmul.f32 %v953, %v986
        %v995 = vpack.c.bf16 %v989, %v987
        %v996 = vpack.c.bf16 %v990, %v988
        %v997 = vpack.c.bf16 %v993, %v991
        %v998 = vpack.c.bf16 %v994, %v992
        %v999 = vld [vmem:[#allocation13] sm:$0xff]
        %v1000 = vld [vmem:[#allocation13 + $0x8] sm:$0xff]
        %v1001 = vld [vmem:[#allocation13 + $0x10] sm:$0xff]
        %v1002 = vld [vmem:[#allocation13 + $0x18] sm:$0xff]
        %v1003 = vld [vmem:[#allocation13 + $0x20] sm:$0xff]
        %v1004 = vld [vmem:[#allocation13 + $0x28] sm:$0xff]
        %v1005 = vld [vmem:[#allocation13 + $0x30] sm:$0xff]
        %v1006 = vld [vmem:[#allocation13 + $0x38] sm:$0xff]
        %v1007 = vld [vmem:[#allocation13 + $0x40] sm:$0xff]
        %v1008 = vld [vmem:[#allocation13 + $0x48] sm:$0xff]
        %v1009 = vld [vmem:[#allocation13 + $0x50] sm:$0xff]
        %v1010 = vld [vmem:[#allocation13 + $0x58] sm:$0xff]
        %v1011 = vld [vmem:[#allocation13 + $0x60] sm:$0xff]
        %v1012 = vld [vmem:[#allocation13 + $0x68] sm:$0xff]
        %v1013 = vld [vmem:[#allocation13 + $0x70] sm:$0xff]
        %v1014 = vld [vmem:[#allocation13 + $0x78] sm:$0xff]
        %v1015 = vld [vmem:[#allocation13 + $0x80] sm:$0xff]
        %v1016 = vld [vmem:[#allocation13 + $0x88] sm:$0xff]
        %v1017 = vld [vmem:[#allocation13 + $0x90] sm:$0xff]
        %v1018 = vld [vmem:[#allocation13 + $0x98] sm:$0xff]
        %v1019 = vld [vmem:[#allocation13 + $0xa0] sm:$0xff]
        %v1020 = vld [vmem:[#allocation13 + $0xa8] sm:$0xff]
        %v1021 = vld [vmem:[#allocation13 + $0xb0] sm:$0xff]
        %v1022 = vld [vmem:[#allocation13 + $0xb8] sm:$0xff]
        %v1023 = vld [vmem:[#allocation13 + $0xc0] sm:$0xff]
        %v1024 = vld [vmem:[#allocation13 + $0xc8] sm:$0xff]
        %v1025 = vld [vmem:[#allocation13 + $0xd0] sm:$0xff]
        %v1026 = vld [vmem:[#allocation13 + $0xd8] sm:$0xff]
        %v1027 = vld [vmem:[#allocation13 + $0xe0] sm:$0xff]
        %v1028 = vld [vmem:[#allocation13 + $0xe8] sm:$0xff]
        %v1029 = vld [vmem:[#allocation13 + $0xf0] sm:$0xff]
        %v1030 = vld [vmem:[#allocation13 + $0xf8] sm:$0xff]
        %v1031 = vld [vmem:[%s8] sm:$0x3]
        %v1033 = vperm.slane %v1031, 0
        %v1034 = vperm.slane %v1031, 1
        %v1069 = vunpack.c.l.b16 %v999
        %v1070 = vunpack.c.h.b16 %v999
        %v1071 = vunpack.c.l.b16 %v1000
        %v1072 = vunpack.c.h.b16 %v1000
        %v1073 = vunpack.c.l.b16 %v1001
        %v1074 = vunpack.c.h.b16 %v1001
        %v1075 = vunpack.c.l.b16 %v1002
        %v1076 = vunpack.c.h.b16 %v1002
        %v1077 = vunpack.c.l.b16 %v1003
        %v1078 = vunpack.c.h.b16 %v1003
        %v1079 = vunpack.c.l.b16 %v1004
        %v1080 = vunpack.c.h.b16 %v1004
        %v1081 = vunpack.c.l.b16 %v1005
        %v1082 = vunpack.c.h.b16 %v1005
        %v1083 = vunpack.c.l.b16 %v1006
        %v1084 = vunpack.c.h.b16 %v1006
        %v1085 = vunpack.c.l.b16 %v1007
        %v1086 = vunpack.c.h.b16 %v1007
        %v1087 = vunpack.c.l.b16 %v1008
        %v1088 = vunpack.c.h.b16 %v1008
        %v1089 = vunpack.c.l.b16 %v1009
        %v1090 = vunpack.c.h.b16 %v1009
        %v1091 = vunpack.c.l.b16 %v1010
        %v1092 = vunpack.c.h.b16 %v1010
        %v1093 = vunpack.c.l.b16 %v1011
        %v1094 = vunpack.c.h.b16 %v1011
        %v1095 = vunpack.c.l.b16 %v1012
        %v1096 = vunpack.c.h.b16 %v1012
        %v1097 = vunpack.c.l.b16 %v1013
        %v1098 = vunpack.c.h.b16 %v1013
        %v1099 = vunpack.c.l.b16 %v1014
        %v1100 = vunpack.c.h.b16 %v1014
        %v1101 = vunpack.c.l.b16 %v1015
        %v1102 = vunpack.c.h.b16 %v1015
        %v1103 = vunpack.c.l.b16 %v1016
        %v1104 = vunpack.c.h.b16 %v1016
        %v1105 = vunpack.c.l.b16 %v1017
        %v1106 = vunpack.c.h.b16 %v1017
        %v1107 = vunpack.c.l.b16 %v1018
        %v1108 = vunpack.c.h.b16 %v1018
        %v1109 = vunpack.c.l.b16 %v1019
        %v1110 = vunpack.c.h.b16 %v1019
        %v1111 = vunpack.c.l.b16 %v1020
        %v1112 = vunpack.c.h.b16 %v1020
        %v1113 = vunpack.c.l.b16 %v1021
        %v1114 = vunpack.c.h.b16 %v1021
        %v1115 = vunpack.c.l.b16 %v1022
        %v1116 = vunpack.c.h.b16 %v1022
        %v1117 = vunpack.c.l.b16 %v1023
        %v1118 = vunpack.c.h.b16 %v1023
        %v1119 = vunpack.c.l.b16 %v1024
        %v1120 = vunpack.c.h.b16 %v1024
        %v1121 = vunpack.c.l.b16 %v1025
        %v1122 = vunpack.c.h.b16 %v1025
        %v1123 = vunpack.c.l.b16 %v1026
        %v1124 = vunpack.c.h.b16 %v1026
        %v1125 = vunpack.c.l.b16 %v1027
        %v1126 = vunpack.c.h.b16 %v1027
        %v1127 = vunpack.c.l.b16 %v1028
        %v1128 = vunpack.c.h.b16 %v1028
        %v1129 = vunpack.c.l.b16 %v1029
        %v1130 = vunpack.c.h.b16 %v1029
        %v1131 = vunpack.c.l.b16 %v1030
        %v1132 = vunpack.c.h.b16 %v1030
        %v1133 = vpack.c.b16 %v1071, %v1069
        %v1134 = vpack.c.b16 %v1072, %v1070
        %v1135 = vpack.c.b16 %v1075, %v1073
        %v1136 = vpack.c.b16 %v1076, %v1074
        %v1137 = vpack.c.b16 %v1079, %v1077
        %v1138 = vpack.c.b16 %v1080, %v1078
        %v1139 = vpack.c.b16 %v1083, %v1081
        %v1140 = vpack.c.b16 %v1084, %v1082
        %v1141 = vpack.c.b16 %v1087, %v1085
        %v1142 = vpack.c.b16 %v1088, %v1086
        %v1143 = vpack.c.b16 %v1091, %v1089
        %v1144 = vpack.c.b16 %v1092, %v1090
        %v1145 = vpack.c.b16 %v1095, %v1093
        %v1146 = vpack.c.b16 %v1096, %v1094
        %v1147 = vpack.c.b16 %v1099, %v1097
        %v1148 = vpack.c.b16 %v1100, %v1098
        %v1149 = vpack.c.b16 %v1103, %v1101
        %v1150 = vpack.c.b16 %v1104, %v1102
        %v1151 = vpack.c.b16 %v1107, %v1105
        %v1152 = vpack.c.b16 %v1108, %v1106
        %v1153 = vpack.c.b16 %v1111, %v1109
        %v1154 = vpack.c.b16 %v1112, %v1110
        %v1155 = vpack.c.b16 %v1115, %v1113
        %v1156 = vpack.c.b16 %v1116, %v1114
        %v1157 = vpack.c.b16 %v1119, %v1117
        %v1158 = vpack.c.b16 %v1120, %v1118
        %v1159 = vpack.c.b16 %v1123, %v1121
        %v1160 = vpack.c.b16 %v1124, %v1122
        %v1161 = vpack.c.b16 %v1127, %v1125
        %v1162 = vpack.c.b16 %v1128, %v1126
        %v1163 = vpack.c.b16 %v1131, %v1129
        %v1164 = vpack.c.b16 %v1132, %v1130
        %1197 = vmatpush.bf16.msra.mxu0 %v1147
        %1198 = vmatpush.bf16.msra.mxu0 %v1145
        %1199 = vmatpush.bf16.msra.mxu0 %v1143
        %1200 = vmatpush.bf16.msra.mxu0 %v1141
        %1201 = vmatpush.bf16.msra.mxu0 %v1139
        %1202 = vmatpush.bf16.msra.mxu0 %v1137
        %1203 = vmatpush.bf16.msra.mxu0 %v1135
        %1204 = vmatpush.bf16.msra.mxu0 %v1133
        %1205 = vmatmul.bf16.gmra.mxu0 %v995
        %v1206 = vpop.f32.mrf.mxu0
        %v1207 = vadd.f32 %v1033, %v1206
        %v1208 = vpop.f32.mrf.mxu0
        %v1209 = vadd.f32 %v1033, %v1208
        %1210 = vmatmul.bf16.gmra.mxu0 %v997
        %v1211 = vpop.f32.mrf.mxu0
        %v1212 = vadd.f32 %v1033, %v1211
        %v1213 = vpop.f32.mrf.mxu0
        %v1214 = vadd.f32 %v1033, %v1213
        %1215 = vdwg.mxu0
        %1216 = vmatpush.bf16.msra.mxu0 %v1163
        %1217 = vmatpush.bf16.msra.mxu0 %v1161
        %1218 = vmatpush.bf16.msra.mxu0 %v1159
        %1219 = vmatpush.bf16.msra.mxu0 %v1157
        %1220 = vmatpush.bf16.msra.mxu0 %v1155
        %1221 = vmatpush.bf16.msra.mxu0 %v1153
        %1222 = vmatpush.bf16.msra.mxu0 %v1151
        %1223 = vmatpush.bf16.msra.mxu0 %v1149
        %1224 = vmatmul.bf16.gmra.mxu0 %v996
        %v1225 = vpop.f32.mrf.mxu0
        %v1226 = vadd.f32 %v1207, %v1225
        %v1227 = vpop.f32.mrf.mxu0
        %v1228 = vadd.f32 %v1209, %v1227
        %1229 = vmatmul.bf16.gmra.mxu0 %v998
        %v1230 = vpop.f32.mrf.mxu0
        %v1231 = vadd.f32 %v1212, %v1230
        %v1232 = vpop.f32.mrf.mxu0
        %v1233 = vadd.f32 %v1214, %v1232
        %1234 = vdwg.mxu0
        %1235 = vmatpush.bf16.msra.mxu0 %v1148
        %1236 = vmatpush.bf16.msra.mxu0 %v1146
        %1237 = vmatpush.bf16.msra.mxu0 %v1144
        %1238 = vmatpush.bf16.msra.mxu0 %v1142
        %1239 = vmatpush.bf16.msra.mxu0 %v1140
        %1240 = vmatpush.bf16.msra.mxu0 %v1138
        %1241 = vmatpush.bf16.msra.mxu0 %v1136
        %1242 = vmatpush.bf16.msra.mxu0 %v1134
        %1243 = vmatmul.bf16.gmra.mxu0 %v995
        %v1244 = vpop.f32.mrf.mxu0
        %v1245 = vadd.f32 %v1034, %v1244
        %v1246 = vpop.f32.mrf.mxu0
        %v1247 = vadd.f32 %v1034, %v1246
        %1248 = vmatmul.bf16.gmra.mxu0 %v997
        %v1249 = vpop.f32.mrf.mxu0
        %v1250 = vadd.f32 %v1034, %v1249
        %v1251 = vpop.f32.mrf.mxu0
        %v1252 = vadd.f32 %v1034, %v1251
        %1253 = vdwg.mxu0
        %1254 = vmatpush.bf16.msra.mxu0 %v1164
        %1255 = vmatpush.bf16.msra.mxu0 %v1162
        %1256 = vmatpush.bf16.msra.mxu0 %v1160
        %1257 = vmatpush.bf16.msra.mxu0 %v1158
        %1258 = vmatpush.bf16.msra.mxu0 %v1156
        %1259 = vmatpush.bf16.msra.mxu0 %v1154
        %1260 = vmatpush.bf16.msra.mxu0 %v1152
        %1261 = vmatpush.bf16.msra.mxu0 %v1150
        %1262 = vmatmul.bf16.gmra.mxu0 %v996
        %v1263 = vpop.f32.mrf.mxu0
        %v1264 = vadd.f32 %v1245, %v1263
        %v1265 = vpop.f32.mrf.mxu0
        %v1266 = vadd.f32 %v1247, %v1265
        %1267 = vmatmul.bf16.gmra.mxu0 %v998
        %v1268 = vpop.f32.mrf.mxu0
        %v1269 = vadd.f32 %v1250, %v1268
        %v1270 = vpop.f32.mrf.mxu0
        %v1271 = vadd.f32 %v1252, %v1270
        %1272 = vdwg.mxu0
        %v1273 = vmul.f32 %v1226, 0.5
        %v1274 = vmul.f32 %v1264, 0.5
        %v1275 = vmul.f32 %v1228, 0.5
        %v1276 = vmul.f32 %v1266, 0.5
        %v1277 = vmul.f32 %v1231, 0.5
        %v1278 = vmul.f32 %v1269, 0.5
        %v1279 = vmul.f32 %v1233, 0.5
        %v1280 = vmul.f32 %v1271, 0.5
        %v1281 = vtanh.pop %v1273
        %v1282 = vtanh.pop %v1274
        %v1283 = vtanh.pop %v1275
        %v1284 = vtanh.pop %v1276
        %v1285 = vtanh.pop %v1277
        %v1286 = vtanh.pop %v1278
        %v1287 = vtanh.pop %v1279
        %v1288 = vtanh.pop %v1280
        %v1289 = vmul.f32 %v1281, 0.5
        %v1290 = vmul.f32 %v1282, 0.5
        %v1291 = vmul.f32 %v1283, 0.5
        %v1292 = vmul.f32 %v1284, 0.5
        %v1293 = vmul.f32 %v1285, 0.5
        %v1294 = vmul.f32 %v1286, 0.5
        %v1295 = vmul.f32 %v1287, 0.5
        %v1296 = vmul.f32 %v1288, 0.5
        %v1297 = vadd.f32 %v1289, 0.5
        %v1298 = vadd.f32 %v1290, 0.5
        %v1299 = vadd.f32 %v1291, 0.5
        %v1300 = vadd.f32 %v1292, 0.5
        %v1301 = vadd.f32 %v1293, 0.5
        %v1302 = vadd.f32 %v1294, 0.5
        %v1303 = vadd.f32 %v1295, 0.5
        %v1304 = vadd.f32 %v1296, 0.5
        %v1305 = vmul.f32 %v1226, %v1297
        %v1306 = vmul.f32 %v1264, %v1298
        %v1307 = vmul.f32 %v1228, %v1299
        %v1308 = vmul.f32 %v1266, %v1300
        %v1309 = vmul.f32 %v1231, %v1301
        %v1310 = vmul.f32 %v1269, %v1302
        %v1311 = vmul.f32 %v1233, %v1303
        %v1312 = vmul.f32 %v1271, %v1304
        %v1313 = vpack.c.bf16 %v1307, %v1305
        %v1314 = vpack.c.bf16 %v1308, %v1306
        %v1315 = vpack.c.bf16 %v1311, %v1309
        %v1316 = vpack.c.bf16 %v1312, %v1310
        %v1317 = vld [vmem:[#allocation14] sm:$0xff]
        %v1318 = vld [vmem:[#allocation14 + $0x8] sm:$0xf]
        %v1319 = vld [vmem:[#allocation14 + $0xc] sm:$0xff]
        %v1320 = vld [vmem:[#allocation14 + $0x14] sm:$0xf]
        %v1321 = vld [vmem:[#allocation14 + $0x18] sm:$0xff]
        %v1322 = vld [vmem:[#allocation14 + $0x20] sm:$0xf]
        %v1323 = vld [vmem:[#allocation14 + $0x24] sm:$0xff]
        %v1324 = vld [vmem:[#allocation14 + $0x2c] sm:$0xf]
        %v1325 = vld [vmem:[#allocation14 + $0x30] sm:$0xff]
        %v1326 = vld [vmem:[#allocation14 + $0x38] sm:$0xf]
        %v1327 = vld [vmem:[#allocation14 + $0x3c] sm:$0xff]
        %v1328 = vld [vmem:[#allocation14 + $0x44] sm:$0xf]
        %v1329 = vld [vmem:[#allocation14 + $0x48] sm:$0xff]
        %v1330 = vld [vmem:[#allocation14 + $0x50] sm:$0xf]
        %v1331 = vld [vmem:[#allocation14 + $0x54] sm:$0xff]
        %v1332 = vld [vmem:[#allocation14 + $0x5c] sm:$0xf]
        %v1333 = vld [vmem:[#allocation14 + $0x60] sm:$0xff]
        %v1334 = vld [vmem:[#allocation14 + $0x68] sm:$0xf]
        %v1335 = vld [vmem:[#allocation14 + $0x6c] sm:$0xff]
        %v1336 = vld [vmem:[#allocation14 + $0x74] sm:$0xf]
        %v1337 = vld [vmem:[#allocation14 + $0x78] sm:$0xff]
        %v1338 = vld [vmem:[#allocation14 + $0x80] sm:$0xf]
        %v1339 = vld [vmem:[#allocation14 + $0x84] sm:$0xff]
        %v1340 = vld [vmem:[#allocation14 + $0x8c] sm:$0xf]
        %v1341 = vld [vmem:[#allocation14 + $0x90] sm:$0xff]
        %v1342 = vld [vmem:[#allocation14 + $0x98] sm:$0xf]
        %v1343 = vld [vmem:[#allocation14 + $0x9c] sm:$0xff]
        %v1344 = vld [vmem:[#allocation14 + $0xa4] sm:$0xf]
        %v1345 = vld [vmem:[#allocation14 + $0xa8] sm:$0xff]
        %v1346 = vld [vmem:[#allocation14 + $0xb0] sm:$0xf]
        %v1347 = vld [vmem:[#allocation14 + $0xb4] sm:$0xff]
        %v1348 = vld [vmem:[#allocation14 + $0xbc] sm:$0xf]
        %v1349 = vld [vmem:[#allocation14 + $0xc0] sm:$0xff]
        %v1350 = vld [vmem:[#allocation14 + $0xc8] sm:$0xf]
        %v1351 = vld [vmem:[#allocation14 + $0xcc] sm:$0xff]
        %v1352 = vld [vmem:[#allocation14 + $0xd4] sm:$0xf]
        %v1353 = vld [vmem:[#allocation14 + $0xd8] sm:$0xff]
        %v1354 = vld [vmem:[#allocation14 + $0xe0] sm:$0xf]
        %v1355 = vld [vmem:[#allocation14 + $0xe4] sm:$0xff]
        %v1356 = vld [vmem:[#allocation14 + $0xec] sm:$0xf]
        %v1357 = vld [vmem:[#allocation14 + $0xf0] sm:$0xff]
        %v1358 = vld [vmem:[#allocation14 + $0xf8] sm:$0xf]
        %v1359 = vld [vmem:[#allocation14 + $0xfc] sm:$0xff]
        %v1360 = vld [vmem:[#allocation14 + $0x104] sm:$0xf]
        %v1361 = vld [vmem:[#allocation14 + $0x108] sm:$0xff]
        %v1362 = vld [vmem:[#allocation14 + $0x110] sm:$0xf]
        %v1363 = vld [vmem:[#allocation14 + $0x114] sm:$0xff]
        %v1364 = vld [vmem:[#allocation14 + $0x11c] sm:$0xf]
        %v1365 = vld [vmem:[#allocation14 + $0x120] sm:$0xff]
        %v1366 = vld [vmem:[#allocation14 + $0x128] sm:$0xf]
        %v1367 = vld [vmem:[#allocation14 + $0x12c] sm:$0xff]
        %v1368 = vld [vmem:[#allocation14 + $0x134] sm:$0xf]
        %v1369 = vld [vmem:[#allocation14 + $0x138] sm:$0xff]
        %v1370 = vld [vmem:[#allocation14 + $0x140] sm:$0xf]
        %v1371 = vld [vmem:[#allocation14 + $0x144] sm:$0xff]
        %v1372 = vld [vmem:[#allocation14 + $0x14c] sm:$0xf]
        %v1373 = vld [vmem:[#allocation14 + $0x150] sm:$0xff]
        %v1374 = vld [vmem:[#allocation14 + $0x158] sm:$0xf]
        %v1375 = vld [vmem:[#allocation14 + $0x15c] sm:$0xff]
        %v1376 = vld [vmem:[#allocation14 + $0x164] sm:$0xf]
        %v1377 = vld [vmem:[#allocation14 + $0x168] sm:$0xff]
        %v1378 = vld [vmem:[#allocation14 + $0x170] sm:$0xf]
        %v1379 = vld [vmem:[#allocation14 + $0x174] sm:$0xff]
        %v1380 = vld [vmem:[#allocation14 + $0x17c] sm:$0xf]
        %v1381 = vld [vmem:[%s10] sm:$0x7]
        %v1383 = vperm.slane %v1381, 0
        %v1384 = vperm.slane %v1381, 1
        %v1385 = vperm.slane %v1381, 2
        %v1453 = vunpack.c.l.b16 %v1317
        %v1454 = vunpack.c.h.b16 %v1317
        %v1455 = vunpack.c.l.b16 %v1318
        %v1456 = vunpack.c.l.b16 %v1319
        %v1457 = vunpack.c.h.b16 %v1319
        %v1458 = vunpack.c.l.b16 %v1320
        %v1459 = vunpack.c.l.b16 %v1321
        %v1460 = vunpack.c.h.b16 %v1321
        %v1461 = vunpack.c.l.b16 %v1322
        %v1462 = vunpack.c.l.b16 %v1323
        %v1463 = vunpack.c.h.b16 %v1323
        %v1464 = vunpack.c.l.b16 %v1324
        %v1465 = vunpack.c.l.b16 %v1325
        %v1466 = vunpack.c.h.b16 %v1325
        %v1467 = vunpack.c.l.b16 %v1326
        %v1468 = vunpack.c.l.b16 %v1327
        %v1469 = vunpack.c.h.b16 %v1327
        %v1470 = vunpack.c.l.b16 %v1328
        %v1471 = vunpack.c.l.b16 %v1329
        %v1472 = vunpack.c.h.b16 %v1329
        %v1473 = vunpack.c.l.b16 %v1330
        %v1474 = vunpack.c.l.b16 %v1331
        %v1475 = vunpack.c.h.b16 %v1331
        %v1476 = vunpack.c.l.b16 %v1332
        %v1477 = vunpack.c.l.b16 %v1333
        %v1478 = vunpack.c.h.b16 %v1333
        %v1479 = vunpack.c.l.b16 %v1334
        %v1480 = vunpack.c.l.b16 %v1335
        %v1481 = vunpack.c.h.b16 %v1335
        %v1482 = vunpack.c.l.b16 %v1336
        %v1483 = vunpack.c.l.b16 %v1337
        %v1484 = vunpack.c.h.b16 %v1337
        %v1485 = vunpack.c.l.b16 %v1338
        %v1486 = vunpack.c.l.b16 %v1339
        %v1487 = vunpack.c.h.b16 %v1339
        %v1488 = vunpack.c.l.b16 %v1340
        %v1489 = vunpack.c.l.b16 %v1341
        %v1490 = vunpack.c.h.b16 %v1341
        %v1491 = vunpack.c.l.b16 %v1342
        %v1492 = vunpack.c.l.b16 %v1343
        %v1493 = vunpack.c.h.b16 %v1343
        %v1494 = vunpack.c.l.b16 %v1344
        %v1495 = vunpack.c.l.b16 %v1345
        %v1496 = vunpack.c.h.b16 %v1345
        %v1497 = vunpack.c.l.b16 %v1346
        %v1498 = vunpack.c.l.b16 %v1347
        %v1499 = vunpack.c.h.b16 %v1347
        %v1500 = vunpack.c.l.b16 %v1348
        %v1501 = vunpack.c.l.b16 %v1349
        %v1502 = vunpack.c.h.b16 %v1349
        %v1503 = vunpack.c.l.b16 %v1350
        %v1504 = vunpack.c.l.b16 %v1351
        %v1505 = vunpack.c.h.b16 %v1351
        %v1506 = vunpack.c.l.b16 %v1352
        %v1507 = vunpack.c.l.b16 %v1353
        %v1508 = vunpack.c.h.b16 %v1353
        %v1509 = vunpack.c.l.b16 %v1354
        %v1510 = vunpack.c.l.b16 %v1355
        %v1511 = vunpack.c.h.b16 %v1355
        %v1512 = vunpack.c.l.b16 %v1356
        %v1513 = vunpack.c.l.b16 %v1357
        %v1514 = vunpack.c.h.b16 %v1357
        %v1515 = vunpack.c.l.b16 %v1358
        %v1516 = vunpack.c.l.b16 %v1359
        %v1517 = vunpack.c.h.b16 %v1359
        %v1518 = vunpack.c.l.b16 %v1360
        %v1519 = vunpack.c.l.b16 %v1361
        %v1520 = vunpack.c.h.b16 %v1361
        %v1521 = vunpack.c.l.b16 %v1362
        %v1522 = vunpack.c.l.b16 %v1363
        %v1523 = vunpack.c.h.b16 %v1363
        %v1524 = vunpack.c.l.b16 %v1364
        %v1525 = vunpack.c.l.b16 %v1365
        %v1526 = vunpack.c.h.b16 %v1365
        %v1527 = vunpack.c.l.b16 %v1366
        %v1528 = vunpack.c.l.b16 %v1367
        %v1529 = vunpack.c.h.b16 %v1367
        %v1530 = vunpack.c.l.b16 %v1368
        %v1531 = vunpack.c.l.b16 %v1369
        %v1532 = vunpack.c.h.b16 %v1369
        %v1533 = vunpack.c.l.b16 %v1370
        %v1534 = vunpack.c.l.b16 %v1371
        %v1535 = vunpack.c.h.b16 %v1371
        %v1536 = vunpack.c.l.b16 %v1372
        %v1537 = vunpack.c.l.b16 %v1373
        %v1538 = vunpack.c.h.b16 %v1373
        %v1539 = vunpack.c.l.b16 %v1374
        %v1540 = vunpack.c.l.b16 %v1375
        %v1541 = vunpack.c.h.b16 %v1375
        %v1542 = vunpack.c.l.b16 %v1376
        %v1543 = vunpack.c.l.b16 %v1377
        %v1544 = vunpack.c.h.b16 %v1377
        %v1545 = vunpack.c.l.b16 %v1378
        %v1546 = vunpack.c.l.b16 %v1379
        %v1547 = vunpack.c.h.b16 %v1379
        %v1548 = vunpack.c.l.b16 %v1380
        %v1549 = vpack.c.b16 %v1456, %v1453
        %v1550 = vpack.c.b16 %v1457, %v1454
        %v1551 = vpack.c.b16 %v1458, %v1455
        %v1552 = vpack.c.b16 %v1462, %v1459
        %v1553 = vpack.c.b16 %v1463, %v1460
        %v1554 = vpack.c.b16 %v1464, %v1461
        %v1555 = vpack.c.b16 %v1468, %v1465
        %v1556 = vpack.c.b16 %v1469, %v1466
        %v1557 = vpack.c.b16 %v1470, %v1467
        %v1558 = vpack.c.b16 %v1474, %v1471
        %v1559 = vpack.c.b16 %v1475, %v1472
        %v1560 = vpack.c.b16 %v1476, %v1473
        %v1561 = vpack.c.b16 %v1480, %v1477
        %v1562 = vpack.c.b16 %v1481, %v1478
        %v1563 = vpack.c.b16 %v1482, %v1479
        %v1564 = vpack.c.b16 %v1486, %v1483
        %v1565 = vpack.c.b16 %v1487, %v1484
        %v1566 = vpack.c.b16 %v1488, %v1485
        %v1567 = vpack.c.b16 %v1492, %v1489
        %v1568 = vpack.c.b16 %v1493, %v1490
        %v1569 = vpack.c.b16 %v1494, %v1491
        %v1570 = vpack.c.b16 %v1498, %v1495
        %v1571 = vpack.c.b16 %v1499, %v1496
        %v1572 = vpack.c.b16 %v1500, %v1497
        %v1573 = vpack.c.b16 %v1504, %v1501
        %v1574 = vpack.c.b16 %v1505, %v1502
        %v1575 = vpack.c.b16 %v1506, %v1503
        %v1576 = vpack.c.b16 %v1510, %v1507
        %v1577 = vpack.c.b16 %v1511, %v1508
        %v1578 = vpack.c.b16 %v1512, %v1509
        %v1579 = vpack.c.b16 %v1516, %v1513
        %v1580 = vpack.c.b16 %v1517, %v1514
        %v1581 = vpack.c.b16 %v1518, %v1515
        %v1582 = vpack.c.b16 %v1522, %v1519
        %v1583 = vpack.c.b16 %v1523, %v1520
        %v1584 = vpack.c.b16 %v1524, %v1521
        %v1585 = vpack.c.b16 %v1528, %v1525
        %v1586 = vpack.c.b16 %v1529, %v1526
        %v1587 = vpack.c.b16 %v1530, %v1527
        %v1588 = vpack.c.b16 %v1534, %v1531
        %v1589 = vpack.c.b16 %v1535, %v1532
        %v1590 = vpack.c.b16 %v1536, %v1533
        %v1591 = vpack.c.b16 %v1540, %v1537
        %v1592 = vpack.c.b16 %v1541, %v1538
        %v1593 = vpack.c.b16 %v1542, %v1539
        %v1594 = vpack.c.b16 %v1546, %v1543
        %v1595 = vpack.c.b16 %v1547, %v1544
        %v1596 = vpack.c.b16 %v1548, %v1545
        %1645 = vmatpush.bf16.msra.mxu0 %v1570
        %1646 = vmatpush.bf16.msra.mxu0 %v1567
        %1647 = vmatpush.bf16.msra.mxu0 %v1564
        %1648 = vmatpush.bf16.msra.mxu0 %v1561
        %1649 = vmatpush.bf16.msra.mxu0 %v1558
        %1650 = vmatpush.bf16.msra.mxu0 %v1555
        %1651 = vmatpush.bf16.msra.mxu0 %v1552
        %1652 = vmatpush.bf16.msra.mxu0 %v1549
        %1653 = vmatmul.bf16.gmra.mxu0 %v1313
        %v1654 = vpop.f32.mrf.mxu0
        %v1655 = vadd.f32 %v1383, %v1654
        %v1656 = vpop.f32.mrf.mxu0
        %v1657 = vadd.f32 %v1383, %v1656
        %1658 = vmatmul.bf16.gmra.mxu0 %v1315
        %v1659 = vpop.f32.mrf.mxu0
        %v1660 = vadd.f32 %v1383, %v1659
        %v1661 = vpop.f32.mrf.mxu0
        %v1662 = vadd.f32 %v1383, %v1661
        %1663 = vdwg.mxu0
        %1664 = vmatpush.bf16.msra.mxu0 %v1594
        %1665 = vmatpush.bf16.msra.mxu0 %v1591
        %1666 = vmatpush.bf16.msra.mxu0 %v1588
        %1667 = vmatpush.bf16.msra.mxu0 %v1585
        %1668 = vmatpush.bf16.msra.mxu0 %v1582
        %1669 = vmatpush.bf16.msra.mxu0 %v1579
        %1670 = vmatpush.bf16.msra.mxu0 %v1576
        %1671 = vmatpush.bf16.msra.mxu0 %v1573
        %1672 = vmatmul.bf16.gmra.mxu0 %v1314
        %v1673 = vpop.f32.mrf.mxu0
        %v1674 = vadd.f32 %v1655, %v1673
        %v1675 = vpop.f32.mrf.mxu0
        %v1676 = vadd.f32 %v1657, %v1675
        %1677 = vmatmul.bf16.gmra.mxu0 %v1316
        %v1678 = vpop.f32.mrf.mxu0
        %v1679 = vadd.f32 %v1660, %v1678
        %v1680 = vpop.f32.mrf.mxu0
        %v1681 = vadd.f32 %v1662, %v1680
        %1682 = vdwg.mxu0
        %1683 = vmatpush.bf16.msra.mxu0 %v1571
        %1684 = vmatpush.bf16.msra.mxu0 %v1568
        %1685 = vmatpush.bf16.msra.mxu0 %v1565
        %1686 = vmatpush.bf16.msra.mxu0 %v1562
        %1687 = vmatpush.bf16.msra.mxu0 %v1559
        %1688 = vmatpush.bf16.msra.mxu0 %v1556
        %1689 = vmatpush.bf16.msra.mxu0 %v1553
        %1690 = vmatpush.bf16.msra.mxu0 %v1550
        %1691 = vmatmul.bf16.gmra.mxu0 %v1313
        %v1692 = vpop.f32.mrf.mxu0
        %v1693 = vadd.f32 %v1384, %v1692
        %v1694 = vpop.f32.mrf.mxu0
        %v1695 = vadd.f32 %v1384, %v1694
        %1696 = vmatmul.bf16.gmra.mxu0 %v1315
        %v1697 = vpop.f32.mrf.mxu0
        %v1698 = vadd.f32 %v1384, %v1697
        %v1699 = vpop.f32.mrf.mxu0
        %v1700 = vadd.f32 %v1384, %v1699
        %1701 = vdwg.mxu0
        %1702 = vmatpush.bf16.msra.mxu0 %v1595
        %1703 = vmatpush.bf16.msra.mxu0 %v1592
        %1704 = vmatpush.bf16.msra.mxu0 %v1589
        %1705 = vmatpush.bf16.msra.mxu0 %v1586
        %1706 = vmatpush.bf16.msra.mxu0 %v1583
        %1707 = vmatpush.bf16.msra.mxu0 %v1580
        %1708 = vmatpush.bf16.msra.mxu0 %v1577
        %1709 = vmatpush.bf16.msra.mxu0 %v1574
        %1710 = vmatmul.bf16.gmra.mxu0 %v1314
        %v1711 = vpop.f32.mrf.mxu0
        %v1712 = vadd.f32 %v1693, %v1711
        %v1713 = vpop.f32.mrf.mxu0
        %v1714 = vadd.f32 %v1695, %v1713
        %1715 = vmatmul.bf16.gmra.mxu0 %v1316
        %v1716 = vpop.f32.mrf.mxu0
        %v1717 = vadd.f32 %v1698, %v1716
        %v1718 = vpop.f32.mrf.mxu0
        %v1719 = vadd.f32 %v1700, %v1718
        %1720 = vdwg.mxu0
        %1721 = vmatpush.bf16.msra.mxu0 %v1572
        %1722 = vmatpush.bf16.msra.mxu0 %v1569
        %1723 = vmatpush.bf16.msra.mxu0 %v1566
        %1724 = vmatpush.bf16.msra.mxu0 %v1563
        %1725 = vmatpush.bf16.msra.mxu0 %v1560
        %1726 = vmatpush.bf16.msra.mxu0 %v1557
        %1727 = vmatpush.bf16.msra.mxu0 %v1554
        %1728 = vmatpush.bf16.msra.mxu0 %v1551
        %1729 = vmatmul.bf16.gmra.mxu0 %v1313
        %v1730 = vpop.f32.mrf.mxu0
        %v1731 = vadd.f32 %v1385, %v1730
        %v1732 = vpop.f32.mrf.mxu0
        %v1733 = vadd.f32 %v1385, %v1732
        %1734 = vmatmul.bf16.gmra.mxu0 %v1315
        %v1735 = vpop.f32.mrf.mxu0
        %v1736 = vadd.f32 %v1385, %v1735
        %v1737 = vpop.f32.mrf.mxu0
        %v1738 = vadd.f32 %v1385, %v1737
        %1739 = vdwg.mxu0
        %1740 = vmatpush.bf16.msra.mxu0 %v1596
        %1741 = vmatpush.bf16.msra.mxu0 %v1593
        %1742 = vmatpush.bf16.msra.mxu0 %v1590
        %1743 = vmatpush.bf16.msra.mxu0 %v1587
        %1744 = vmatpush.bf16.msra.mxu0 %v1584
        %1745 = vmatpush.bf16.msra.mxu0 %v1581
        %1746 = vmatpush.bf16.msra.mxu0 %v1578
        %1747 = vmatpush.bf16.msra.mxu0 %v1575
        %1748 = vmatmul.bf16.gmra.mxu0 %v1314
        %v1749 = vpop.f32.mrf.mxu0
        %v1750 = vadd.f32 %v1731, %v1749
        %v1751 = vpop.f32.mrf.mxu0
        %v1752 = vadd.f32 %v1733, %v1751
        %1753 = vmatmul.bf16.gmra.mxu0 %v1316
        %v1754 = vpop.f32.mrf.mxu0
        %v1755 = vadd.f32 %v1736, %v1754
        %v1756 = vpop.f32.mrf.mxu0
        %v1757 = vadd.f32 %v1738, %v1756
        %1758 = vdwg.mxu0
        %v1759 = vmul.f32 %v1674, 0.5
        %v1760 = vmul.f32 %v1712, 0.5
        %v1761 = vmul.f32 %v1750, 0.5
        %v1762 = vmul.f32 %v1676, 0.5
        %v1763 = vmul.f32 %v1714, 0.5
        %v1764 = vmul.f32 %v1752, 0.5
        %v1765 = vmul.f32 %v1679, 0.5
        %v1766 = vmul.f32 %v1717, 0.5
        %v1767 = vmul.f32 %v1755, 0.5
        %v1768 = vmul.f32 %v1681, 0.5
        %v1769 = vmul.f32 %v1719, 0.5
        %v1770 = vmul.f32 %v1757, 0.5
        %v1771 = vtanh.pop %v1759
        %v1772 = vtanh.pop %v1760
        %v1773 = vtanh.pop %v1761
        %v1774 = vtanh.pop %v1762
        %v1775 = vtanh.pop %v1763
        %v1776 = vtanh.pop %v1764
        %v1777 = vtanh.pop %v1765
        %v1778 = vtanh.pop %v1766
        %v1779 = vtanh.pop %v1767
        %v1780 = vtanh.pop %v1768
        %v1781 = vtanh.pop %v1769
        %v1782 = vtanh.pop %v1770
        %v1783 = vmul.f32 %v1771, 0.5
        %v1784 = vmul.f32 %v1772, 0.5
        %v1785 = vmul.f32 %v1773, 0.5
        %v1786 = vmul.f32 %v1774, 0.5
        %v1787 = vmul.f32 %v1775, 0.5
        %v1788 = vmul.f32 %v1776, 0.5
        %v1789 = vmul.f32 %v1777, 0.5
        %v1790 = vmul.f32 %v1778, 0.5
        %v1791 = vmul.f32 %v1779, 0.5
        %v1792 = vmul.f32 %v1780, 0.5
        %v1793 = vmul.f32 %v1781, 0.5
        %v1794 = vmul.f32 %v1782, 0.5
        %v1795 = vadd.f32 %v1783, 0.5
        %v1796 = vadd.f32 %v1784, 0.5
        %v1797 = vadd.f32 %v1785, 0.5
        %v1798 = vadd.f32 %v1786, 0.5
        %v1799 = vadd.f32 %v1787, 0.5
        %v1800 = vadd.f32 %v1788, 0.5
        %v1801 = vadd.f32 %v1789, 0.5
        %v1802 = vadd.f32 %v1790, 0.5
        %v1803 = vadd.f32 %v1791, 0.5
        %v1804 = vadd.f32 %v1792, 0.5
        %v1805 = vadd.f32 %v1793, 0.5
        %v1806 = vadd.f32 %v1794, 0.5
        %v1807 = vmul.f32 %v1674, %v1795
        %v1808 = vmul.f32 %v1712, %v1796
        %v1809 = vmul.f32 %v1750, %v1797
        %v1810 = vmul.f32 %v1676, %v1798
        %v1811 = vmul.f32 %v1714, %v1799
        %v1812 = vmul.f32 %v1752, %v1800
        %v1813 = vmul.f32 %v1679, %v1801
        %v1814 = vmul.f32 %v1717, %v1802
        %v1815 = vmul.f32 %v1755, %v1803
        %v1816 = vmul.f32 %v1681, %v1804
        %v1817 = vmul.f32 %v1719, %v1805
        %v1818 = vmul.f32 %v1757, %v1806
        %v1819 = vpack.c.bf16 %v1810, %v1807
        %v1820 = vpack.c.bf16 %v1811, %v1808
        %v1821 = vpack.c.bf16 %v1812, %v1809
        %v1822 = vpack.c.bf16 %v1816, %v1813
        %v1823 = vpack.c.bf16 %v1817, %v1814
        %v1824 = vpack.c.bf16 %v1818, %v1815
        %v1825 = vld [vmem:[#allocation16] sm:$0xf]
        %v1826 = vld [vmem:[#allocation16 + $0x4] sm:$0xf]
        %v1827 = vld [vmem:[#allocation16 + $0x8] sm:$0xf]
        %v1828 = vld [vmem:[#allocation16 + $0xc] sm:$0xf]
        %v1829 = vld [vmem:[#allocation16 + $0x10] sm:$0xf]
        %v1830 = vld [vmem:[#allocation16 + $0x14] sm:$0xf]
        %v1831 = vld [vmem:[#allocation16 + $0x18] sm:$0xf]
        %v1832 = vld [vmem:[#allocation16 + $0x1c] sm:$0xf]
        %v1833 = vld [vmem:[#allocation16 + $0x20] sm:$0xf]
        %v1834 = vld [vmem:[#allocation16 + $0x24] sm:$0xf]
        %v1835 = vld [vmem:[#allocation16 + $0x28] sm:$0xf]
        %v1836 = vld [vmem:[#allocation16 + $0x2c] sm:$0xf]
        %v1837 = vld [vmem:[#allocation16 + $0x30] sm:$0xf]
        %v1838 = vld [vmem:[#allocation16 + $0x34] sm:$0xf]
        %v1839 = vld [vmem:[#allocation16 + $0x38] sm:$0xf]
        %v1840 = vld [vmem:[#allocation16 + $0x3c] sm:$0xf]
        %v1841 = vld [vmem:[#allocation16 + $0x40] sm:$0xf]
        %v1842 = vld [vmem:[#allocation16 + $0x44] sm:$0xf]
        %v1843 = vld [vmem:[#allocation16 + $0x48] sm:$0xf]
        %v1844 = vld [vmem:[#allocation16 + $0x4c] sm:$0xf]
        %v1845 = vld [vmem:[#allocation16 + $0x50] sm:$0xf]
        %v1846 = vld [vmem:[#allocation16 + $0x54] sm:$0xf]
        %v1847 = vld [vmem:[#allocation16 + $0x58] sm:$0xf]
        %v1848 = vld [vmem:[#allocation16 + $0x5c] sm:$0xf]
        %v1849 = vld [vmem:[#allocation16 + $0x60] sm:$0xf]
        %v1850 = vld [vmem:[#allocation16 + $0x64] sm:$0xf]
        %v1851 = vld [vmem:[#allocation16 + $0x68] sm:$0xf]
        %v1852 = vld [vmem:[#allocation16 + $0x6c] sm:$0xf]
        %v1853 = vld [vmem:[#allocation16 + $0x70] sm:$0xf]
        %v1854 = vld [vmem:[#allocation16 + $0x74] sm:$0xf]
        %v1855 = vld [vmem:[#allocation16 + $0x78] sm:$0xf]
        %v1856 = vld [vmem:[#allocation16 + $0x7c] sm:$0xf]
        %v1857 = vld [vmem:[#allocation16 + $0x80] sm:$0xf]
        %v1858 = vld [vmem:[#allocation16 + $0x84] sm:$0xf]
        %v1859 = vld [vmem:[#allocation16 + $0x88] sm:$0xf]
        %v1860 = vld [vmem:[#allocation16 + $0x8c] sm:$0xf]
        %v1861 = vld [vmem:[#allocation16 + $0x90] sm:$0xf]
        %v1862 = vld [vmem:[#allocation16 + $0x94] sm:$0xf]
        %v1863 = vld [vmem:[#allocation16 + $0x98] sm:$0xf]
        %v1864 = vld [vmem:[#allocation16 + $0x9c] sm:$0xf]
        %v1865 = vld [vmem:[#allocation16 + $0xa0] sm:$0xf]
        %v1866 = vld [vmem:[#allocation16 + $0xa4] sm:$0xf]
        %v1867 = vld [vmem:[#allocation16 + $0xa8] sm:$0xf]
        %v1868 = vld [vmem:[#allocation16 + $0xac] sm:$0xf]
        %v1869 = vld [vmem:[#allocation16 + $0xb0] sm:$0xf]
        %v1870 = vld [vmem:[#allocation16 + $0xb4] sm:$0xf]
        %v1871 = vld [vmem:[#allocation16 + $0xb8] sm:$0xf]
        %v1872 = vld [vmem:[#allocation16 + $0xbc] sm:$0xf]
        %v1873 = vld [vmem:[%s12] sm:$0x1]
        %v1875 = vperm.slane %v1873, 0
        %v1925 = vunpack.c.l.b16 %v1825
        %v1926 = vunpack.c.l.b16 %v1826
        %v1927 = vunpack.c.l.b16 %v1827
        %v1928 = vunpack.c.l.b16 %v1828
        %v1929 = vunpack.c.l.b16 %v1829
        %v1930 = vunpack.c.l.b16 %v1830
        %v1931 = vunpack.c.l.b16 %v1831
        %v1932 = vunpack.c.l.b16 %v1832
        %v1933 = vunpack.c.l.b16 %v1833
        %v1934 = vunpack.c.l.b16 %v1834
        %v1935 = vunpack.c.l.b16 %v1835
        %v1936 = vunpack.c.l.b16 %v1836
        %v1937 = vunpack.c.l.b16 %v1837
        %v1938 = vunpack.c.l.b16 %v1838
        %v1939 = vunpack.c.l.b16 %v1839
        %v1940 = vunpack.c.l.b16 %v1840
        %v1941 = vunpack.c.l.b16 %v1841
        %v1942 = vunpack.c.l.b16 %v1842
        %v1943 = vunpack.c.l.b16 %v1843
        %v1944 = vunpack.c.l.b16 %v1844
        %v1945 = vunpack.c.l.b16 %v1845
        %v1946 = vunpack.c.l.b16 %v1846
        %v1947 = vunpack.c.l.b16 %v1847
        %v1948 = vunpack.c.l.b16 %v1848
        %v1949 = vunpack.c.l.b16 %v1849
        %v1950 = vunpack.c.l.b16 %v1850
        %v1951 = vunpack.c.l.b16 %v1851
        %v1952 = vunpack.c.l.b16 %v1852
        %v1953 = vunpack.c.l.b16 %v1853
        %v1954 = vunpack.c.l.b16 %v1854
        %v1955 = vunpack.c.l.b16 %v1855
        %v1956 = vunpack.c.l.b16 %v1856
        %v1957 = vunpack.c.l.b16 %v1857
        %v1958 = vunpack.c.l.b16 %v1858
        %v1959 = vunpack.c.l.b16 %v1859
        %v1960 = vunpack.c.l.b16 %v1860
        %v1961 = vunpack.c.l.b16 %v1861
        %v1962 = vunpack.c.l.b16 %v1862
        %v1963 = vunpack.c.l.b16 %v1863
        %v1964 = vunpack.c.l.b16 %v1864
        %v1965 = vunpack.c.l.b16 %v1865
        %v1966 = vunpack.c.l.b16 %v1866
        %v1967 = vunpack.c.l.b16 %v1867
        %v1968 = vunpack.c.l.b16 %v1868
        %v1969 = vunpack.c.l.b16 %v1869
        %v1970 = vunpack.c.l.b16 %v1870
        %v1971 = vunpack.c.l.b16 %v1871
        %v1972 = vunpack.c.l.b16 %v1872
        %v1973 = vpack.c.b16 %v1926, %v1925
        %v1974 = vpack.c.b16 %v1928, %v1927
        %v1975 = vpack.c.b16 %v1930, %v1929
        %v1976 = vpack.c.b16 %v1932, %v1931
        %v1977 = vpack.c.b16 %v1934, %v1933
        %v1978 = vpack.c.b16 %v1936, %v1935
        %v1979 = vpack.c.b16 %v1938, %v1937
        %v1980 = vpack.c.b16 %v1940, %v1939
        %v1981 = vpack.c.b16 %v1942, %v1941
        %v1982 = vpack.c.b16 %v1944, %v1943
        %v1983 = vpack.c.b16 %v1946, %v1945
        %v1984 = vpack.c.b16 %v1948, %v1947
        %v1985 = vpack.c.b16 %v1950, %v1949
        %v1986 = vpack.c.b16 %v1952, %v1951
        %v1987 = vpack.c.b16 %v1954, %v1953
        %v1988 = vpack.c.b16 %v1956, %v1955
        %v1989 = vpack.c.b16 %v1958, %v1957
        %v1990 = vpack.c.b16 %v1960, %v1959
        %v1991 = vpack.c.b16 %v1962, %v1961
        %v1992 = vpack.c.b16 %v1964, %v1963
        %v1993 = vpack.c.b16 %v1966, %v1965
        %v1994 = vpack.c.b16 %v1968, %v1967
        %v1995 = vpack.c.b16 %v1970, %v1969
        %v1996 = vpack.c.b16 %v1972, %v1971
        %2021 = vmatpush.bf16.msra.mxu0 %v1980
        %2022 = vmatpush.bf16.msra.mxu0 %v1979
        %2023 = vmatpush.bf16.msra.mxu0 %v1978
        %2024 = vmatpush.bf16.msra.mxu0 %v1977
        %2025 = vmatpush.bf16.msra.mxu0 %v1976
        %2026 = vmatpush.bf16.msra.mxu0 %v1975
        %2027 = vmatpush.bf16.msra.mxu0 %v1974
        %2028 = vmatpush.bf16.msra.mxu0 %v1973
        %2029 = vmatmul.bf16.gmra.mxu0 %v1819
        %v2030 = vpop.f32.mrf.mxu0
        %v2031 = vadd.f32 %v1875, %v2030
        %v2032 = vpop.f32.mrf.mxu0
        %v2033 = vadd.f32 %v1875, %v2032
        %2034 = vmatmul.bf16.gmra.mxu0 %v1822
        %v2035 = vpop.f32.mrf.mxu0
        %v2036 = vadd.f32 %v1875, %v2035
        %v2037 = vpop.f32.mrf.mxu0
        %v2038 = vadd.f32 %v1875, %v2037
        %2039 = vdwg.mxu0
        %2040 = vmatpush.bf16.msra.mxu0 %v1988
        %2041 = vmatpush.bf16.msra.mxu0 %v1987
        %2042 = vmatpush.bf16.msra.mxu0 %v1986
        %2043 = vmatpush.bf16.msra.mxu0 %v1985
        %2044 = vmatpush.bf16.msra.mxu0 %v1984
        %2045 = vmatpush.bf16.msra.mxu0 %v1983
        %2046 = vmatpush.bf16.msra.mxu0 %v1982
        %2047 = vmatpush.bf16.msra.mxu0 %v1981
        %2048 = vmatmul.bf16.gmra.mxu0 %v1820
        %v2049 = vpop.f32.mrf.mxu0
        %v2050 = vadd.f32 %v2031, %v2049
        %v2051 = vpop.f32.mrf.mxu0
        %v2052 = vadd.f32 %v2033, %v2051
        %2053 = vmatmul.bf16.gmra.mxu0 %v1823
        %v2054 = vpop.f32.mrf.mxu0
        %v2055 = vadd.f32 %v2036, %v2054
        %v2056 = vpop.f32.mrf.mxu0
        %v2057 = vadd.f32 %v2038, %v2056
        %2058 = vdwg.mxu0
        %2059 = vmatpush.bf16.msra.mxu0 %v1996
        %2060 = vmatpush.bf16.msra.mxu0 %v1995
        %2061 = vmatpush.bf16.msra.mxu0 %v1994
        %2062 = vmatpush.bf16.msra.mxu0 %v1993
        %2063 = vmatpush.bf16.msra.mxu0 %v1992
        %2064 = vmatpush.bf16.msra.mxu0 %v1991
        %2065 = vmatpush.bf16.msra.mxu0 %v1990
        %2066 = vmatpush.bf16.msra.mxu0 %v1989
        %2067 = vmatmul.bf16.gmra.mxu0 %v1821
        %v2068 = vpop.f32.mrf.mxu0
        %v2069 = vadd.f32 %v2050, %v2068
        %v2070 = vpop.f32.mrf.mxu0
        %v2071 = vadd.f32 %v2052, %v2070
        %2072 = vmatmul.bf16.gmra.mxu0 %v1824
        %v2073 = vpop.f32.mrf.mxu0
        %v2074 = vadd.f32 %v2055, %v2073
        %v2075 = vpop.f32.mrf.mxu0
        %v2076 = vadd.f32 %v2057, %v2075
        %2077 = vdwg.mxu0
        %v2078 = vtanh.pop %v2069
        %v2079 = vtanh.pop %v2071
        %v2080 = vtanh.pop %v2074
        %v2081 = vtanh.pop %v2076
        %2082 = vst [vmem:[%s588] sm:$0xff] %v2078
        %2083 = vst [vmem:[%s588 + $0x8] sm:$0xff] %v2079
        %2084 = vst [vmem:[%s588 + $0x10] sm:$0xff] %v2080
        %2085 = vst [vmem:[%s588 + $0x18] sm:$0xff] %v2081
        %s2086 = sand.u32 %s320, 1
        %s2087 = scalar_lea.sflag [#allocation4], %s2086
        %s2088 = sand.u32 %s320, 1
        %s2089 = smul.addr %s2088, 32
        %s2090 = scalar_lea.vmem [#allocation17], %s2089
        // Predicated region
        $region109: #{tpu_custom_call.1} parent=71 // pred_check
          %p2091 = pneg %p330
        $region110: #{tpu_custom_call.1} parent=71 // pred_check_branch
          %2093 = sbr.rel (%p2091) target = $region112
        $region111: #{tpu_custom_call.1} parent=71 // pred_region
          %s2094 = smul.u32 4, %s34
          %2096 = vsyncadd %s2087, 0
          %s2097 = smul.addr %s2094, 8
          %s2098 = scalar_lea.hbm %s13, %s2097
          %s2099 = sshll.u32 %s2090, 4
          %s2100 = int_to_ptr.vmem [resolvable:$true] %s2099
          %s2101 = sshll.u32 %s2098, 4
          %s2102 = int_to_ptr.hbm [resolvable:$true] %s2101
          %2107 = dma.vmem_to_hbm [thread:$0]  %s2100, 512, %s2102, %s2087, 128, 128, 8
        $region112: #{tpu_custom_call.1} parent=71 // pred_fallthru
          _
      $region72: #{tpu_custom_call.1} parent=5 // pred_fallthru
        _
      %p2108 = scmp.le.s32.totalorder 2, %s29
      // Predicated region
      $region113: #{tpu_custom_call.1} parent=5 // pred_check
        %p2109 = pneg %p2108
      $region114: #{tpu_custom_call.1} parent=5 // pred_check_branch
        %2111 = sbr.rel (%p2109) target = $region116
      $region115: #{tpu_custom_call.1} parent=5 // pred_region
        %s2112 = ssub.s32 %s29, 2
        // Predicated region
        $region117: #{tpu_custom_call.1} parent=115 // pred_check
          %p2113 = pneg %p336
        $region118: #{tpu_custom_call.1} parent=115 // pred_check_branch
          %2115 = sbr.rel (%p2113) target = $region120
        $region119: #{tpu_custom_call.1} parent=115 // pred_region
          %s2116 = sand.u32 %s321, 1
          %s2117 = scalar_lea.sflag [#allocation4], %s2116
          %s2118 = sand.u32 %s321, 1
          %s2119 = smul.addr %s2118, 32
          %s2120 = scalar_lea.vmem [#allocation17], %s2119
          %2122 = dma.done %s2117, 512
        $region120: #{tpu_custom_call.1} parent=115 // pred_fallthru
          _
      $region116: #{tpu_custom_call.1} parent=5 // pred_fallthru
        _
    $region6: #{tpu_custom_call.1} parent=1 // loop_footer
      %s33 = sadd.s32 1, %s29
    $region7: #{tpu_custom_call.1} parent=1 // loop_footer_branch
      %28 = sbr.rel target = $region3
    $region8: #{tpu_custom_call.1} parent=1 // loop_exit
      _
    %2123 = vsyncpa [#allocation3], 1
    %s2124 = scalar_lea.sflag [#allocation3], 1
    %2125 = vsyncpa %s2124, 1
    %2126 = vsyncpa [#allocation6], 1
    %2127 = vsyncpa [#allocation9], 1
    %2128 = vsyncpa [#allocation12], 1
    %2129 = vsyncpa [#allocation15], 1
    %2130 = vsyncpa [#allocation4], 1
    %s2131 = scalar_lea.sflag [#allocation4], 1
    %2132 = vsyncpa %s2131, 1

// kernel: tpu_custom_call.1
$region0: #{tpu_custom_call.1}
  #allocation0 [shape = 'u32[]', space=smem, size = 0x4, offset = 0x4, fixed_abs, tag = 'smem constant byte address 0x4 - core index']
  #allocation1 [shape = 'u32[72,128]{1,0:T(1,128)}', space=vmem, size = 0x9000, scoped, tag = 'internal scratch']
  %s0 = inlined_call_operand.hbm [shape: f32[64,128], index: 0, kind: input, shape index: {}]
  %s1 = inlined_call_operand.hbm [shape: bf16[128,128], index: 1, kind: input, shape index: {}]
  %s2 = inlined_call_operand.hbm [shape: f32[1,128], index: 2, kind: input, shape index: {}]
  %s3 = inlined_call_operand.hbm [shape: bf16[128,128], index: 3, kind: input, shape index: {}]
  %s4 = inlined_call_operand.hbm [shape: f32[1,128], index: 4, kind: input, shape index: {}]
  %s5 = inlined_call_operand.hbm [shape: bf16[128,256], index: 5, kind: input, shape index: {}]
  %s6 = inlined_call_operand.vmem [shape: f32[1,256], index: 6, kind: input, shape index: {}]
  %s7 = inlined_call_operand.hbm [shape: bf16[256,256], index: 7, kind: input, shape index: {}]
  %s8 = inlined_call_operand.vmem [shape: f32[1,256], index: 8, kind: input, shape index: {}]
  %s9 = inlined_call_operand.hbm [shape: bf16[256,384], index: 9, kind: input, shape index: {}]
  %s10 = inlined_call_operand.vmem [shape: f32[1,384], index: 10, kind: input, shape index: {}]
  %s11 = inlined_call_operand.hbm [shape: bf16[384,128], index: 11, kind: input, shape index: {}]
  %s12 = inlined_call_operand.vmem [shape: f32[1,128], index: 12, kind: input, shape index: {}]
  %s13 = inlined_call_operand.hbm [shape: f32[64,128], index: 13, kind: output, shape index: {}]
  %s14 = sld [smem:[#allocation0]]
  $region121: #{tpu_custom_call.1} parent=0
    _
  %s16 = ssub.s32 1, %s14
  %s17 = scalar_select 0, %s16, %s14
  $region1: #{tpu_custom_call.1} parent=0
    #allocation2 [shape = 'u8[32768]{0}', space=vmem, size = 0x8000, scoped, tag = 'input window, operand 0']
    #allocation3 [shape = 's32[2]{0}', space=sflag, size = 0x8, scoped, tag = 'scoped memory for tpu_custom_call.1']
    #allocation4 [shape = 's32[2]{0}', space=sflag, size = 0x8, scoped, tag = 'scoped memory for tpu_custom_call.1']
    #allocation5 [shape = 'u8[32768]{0}', space=vmem, size = 0x8000, scoped, tag = 'input window, operand 1, single buffered']
    #allocation6 [shape = 's32[1]{0}', space=sflag, size = 0x4, scoped, tag = 'scoped memory for tpu_custom_call.1']
    #allocation7 [shape = 'u8[512]{0}', space=vmem, size = 0x400, scoped, tag = 'input window, operand 2, single buffered']
    #allocation8 [shape = 'u8[32768]{0}', space=vmem, size = 0x8000, scoped, tag = 'input window, operand 3, single buffered']
    #allocation9 [shape = 's32[1]{0}', space=sflag, size = 0x4, scoped, tag = 'scoped memory for tpu_custom_call.1']
    #allocation10 [shape = 'u8[512]{0}', space=vmem, size = 0x400, scoped, tag = 'input window, operand 4, single buffered']
    #allocation11 [shape = 'u8[65536]{0}', space=vmem, size = 0x10000, scoped, tag = 'input window, operand 5, single buffered']
    #allocation12 [shape = 's32[1]{0}', space=sflag, size = 0x4, scoped, tag = 'scoped memory for tpu_custom_call.1']
    #allocation13 [shape = 'u8[131072]{0}', space=vmem, size = 0x20000, scoped, tag = 'input window, operand 7, single buffered']
    #allocation14 [shape = 'u8[196608]{0}', space=vmem, size = 0x30000, scoped, tag = 'input window, operand 9, single buffered']
    #allocation15 [shape = 's32[1]{0}', space=sflag, size = 0x4, scoped, tag = 'scoped memory for tpu_custom_call.1']
    #allocation16 [shape = 'u8[98304]{0}', space=vmem, size = 0x18000, scoped, tag = 'input window, operand 11, single buffered']
    #allocation17 [shape = 'u8[32768]{0}', space=vmem, size = 0x8000, scoped, tag = 'output window, operand 0']
    %18 = vsyncpa [#allocation3], 0
    %s19 = scalar_lea.sflag [#allocation3], 1
    %20 = vsyncpa %s19, 0
    %21 = vsyncpa [#allocation6], 0
    %22 = vsyncpa [#allocation9], 0
    %23 = vsyncpa [#allocation12], 0
    %24 = vsyncpa [#allocation15], 0
    %25 = vsyncpa [#allocation4], 0
    %s26 = scalar_lea.sflag [#allocation4], 1
    %27 = vsyncpa %s26, 0
    loop: start=0, step=1, limit=4
    $region2: #{tpu_custom_call.1} parent=1 // loop_pre_header
      _
    $region3: #{tpu_custom_call.1} parent=1 // loop_header
      %s29 = sphi 0, %s33
      %p30 = scmp.ge.s32.totalorder %s29, 4
      %s39 = sphi 0, %s41
      %s42 = sphi 0, %s39
      %s43 = sphi 0, %s42
      %s59 = sphi 0, %s43
      %s63 = sphi 0, %s63
      %s65 = sphi 0, %s63
      %s66 = sphi 0, %s65
      %s80 = sphi 0, %s66
      %s84 = sphi 0, %s84
      %s86 = sphi 0, %s84
      %s87 = sphi 0, %s86
      %s101 = sphi 0, %s87
      %s105 = sphi 0, %s105
      %s107 = sphi 0, %s105
      %s108 = sphi 0, %s107
      %s122 = sphi 0, %s108
      %s126 = sphi 0, %s126
      %s128 = sphi 0, %s126
      %s129 = sphi 0, %s128
      %s143 = sphi 0, %s129
      %s147 = sphi 0, %s147
      %s149 = sphi 0, %s147
      %s150 = sphi 0, %s149
      %s164 = sphi 0, %s150
      %s168 = sphi 0, %s168
      %s170 = sphi 0, %s168
      %s171 = sphi 0, %s170
      %s185 = sphi 0, %s171
      %s189 = sphi 0, %s189
      %s191 = sphi 0, %s189
      %s192 = sphi 0, %s191
      %s206 = sphi 0, %s192
      %s210 = sphi 0, %s210
      %s212 = sphi 0, %s210
      %s213 = sphi 0, %s212
      %s227 = sphi 0, %s213
      %s231 = sphi 0, %s231
      %s233 = sphi 0, %s231
      %s234 = sphi 0, %s233
      %s248 = sphi 0, %s234
      %s252 = sphi 0, %s252
      %s254 = sphi 0, %s252
      %s255 = sphi 0, %s254
      %s269 = sphi 0, %s255
      %s273 = sphi 0, %s273
      %s275 = sphi 0, %s273
      %s276 = sphi 0, %s275
      %s290 = sphi 0, %s276
      %s294 = sphi 0, %s294
      %s296 = sphi 0, %s294
      %s297 = sphi 0, %s296
      %s311 = sphi 0, %s297
      %s317 = sphi 0, %s319
      %s320 = sphi 0, %s317
      %s321 = sphi 0, %s320
      %s337 = sphi 0, %s321
    $region4: #{tpu_custom_call.1} parent=1 // loop_header_branch
      %32 = sbr.rel (%p30) target = $region8
    $region5: #{tpu_custom_call.1} parent=1 // loop_body
      %s34 = ssub.s32 %s29, 1
      %s35 = ssub.s32 %s29, 2
      %s36 = sadd.s32 %s29, 1
      %s37 = ssub.s32 %s29, %s36
      %p38 = scmp.eq.s32.totalorder %s37, 0
      %s40 = sadd.s32 %s39, 1
      %s41 = scalar_select %p38, %s39, %s40
      %p44 = pneg %p38
      %p45 = scmp.eq.s32.totalorder %s29, 1
      %p46 = por %p44, %p45
      %p47 = scmp.ne.s32.totalorder %s39, %s42
      %p48 = scmp.eq.s32.totalorder %s29, 0
      %p49 = por %p47, %p48
      %p50 = scmp.ne.s32.totalorder %s39, %s42
      %p51 = scmp.eq.s32.totalorder %s34, 1
      %p52 = por %p50, %p51
      %p53 = scmp.ne.s32.totalorder %s42, %s43
      %p54 = scmp.eq.s32.totalorder %s34, 0
      %p55 = por %p53, %p54
      %p56 = scmp.ne.s32.totalorder %s42, %s43
      %p57 = scmp.eq.s32.totalorder %s35, 1
      %p58 = por %p56, %p57
      %p60 = scmp.ne.s32.totalorder %s43, %s59
      %p61 = scmp.eq.s32.totalorder %s35, 0
      %p62 = por %p60, %p61
      %s64 = sadd.s32 %s63, 1
      %p67 = scmp.eq.s32.totalorder %s29, 1
      %p68 = scmp.ne.s32.totalorder %s63, %s65
      %p69 = scmp.eq.s32.totalorder %s29, 0
      %p70 = por %p68, %p69
      %p71 = scmp.ne.s32.totalorder %s63, %s65
      %p72 = scmp.eq.s32.totalorder %s34, 1
      %p73 = por %p71, %p72
      %p74 = scmp.ne.s32.totalorder %s65, %s66
      %p75 = scmp.eq.s32.totalorder %s34, 0
      %p76 = por %p74, %p75
      %p77 = scmp.ne.s32.totalorder %s65, %s66
      %p78 = scmp.eq.s32.totalorder %s35, 1
      %p79 = por %p77, %p78
      %p81 = scmp.ne.s32.totalorder %s66, %s80
      %p82 = scmp.eq.s32.totalorder %s35, 0
      %p83 = por %p81, %p82
      %s85 = sadd.s32 %s84, 1
      %p88 = scmp.eq.s32.totalorder %s29, 1
      %p89 = scmp.ne.s32.totalorder %s84, %s86
      %p90 = scmp.eq.s32.totalorder %s29, 0
      %p91 = por %p89, %p90
      %p92 = scmp.ne.s32.totalorder %s84, %s86
      %p93 = scmp.eq.s32.totalorder %s34, 1
      %p94 = por %p92, %p93
      %p95 = scmp.ne.s32.totalorder %s86, %s87
      %p96 = scmp.eq.s32.totalorder %s34, 0
      %p97 = por %p95, %p96
      %p98 = scmp.ne.s32.totalorder %s86, %s87
      %p99 = scmp.eq.s32.totalorder %s35, 1
      %p100 = por %p98, %p99
      %p102 = scmp.ne.s32.totalorder %s87, %s101
      %p103 = scmp.eq.s32.totalorder %s35, 0
      %p104 = por %p102, %p103
      %s106 = sadd.s32 %s105, 1
      %p109 = scmp.eq.s32.totalorder %s29, 1
      %p110 = scmp.ne.s32.totalorder %s105, %s107
      %p111 = scmp.eq.s32.totalorder %s29, 0
      %p112 = por %p110, %p111
      %p113 = scmp.ne.s32.totalorder %s105, %s107
      %p114 = scmp.eq.s32.totalorder %s34, 1
      %p115 = por %p113, %p114
      %p116 = scmp.ne.s32.totalorder %s107, %s108
      %p117 = scmp.eq.s32.totalorder %s34, 0
      %p118 = por %p116, %p117
      %p119 = scmp.ne.s32.totalorder %s107, %s108
      %p120 = scmp.eq.s32.totalorder %s35, 1
      %p121 = por %p119, %p120
      %p123 = scmp.ne.s32.totalorder %s108, %s122
      %p124 = scmp.eq.s32.totalorder %s35, 0
      %p125 = por %p123, %p124
      %s127 = sadd.s32 %s126, 1
      %p130 = scmp.eq.s32.totalorder %s29, 1
      %p131 = scmp.ne.s32.totalorder %s126, %s128
      %p132 = scmp.eq.s32.totalorder %s29, 0
      %p133 = por %p131, %p132
      %p134 = scmp.ne.s32.totalorder %s126, %s128
      %p135 = scmp.eq.s32.totalorder %s34, 1
      %p136 = por %p134, %p135
      %p137 = scmp.ne.s32.totalorder %s128, %s129
      %p138 = scmp.eq.s32.totalorder %s34, 0
      %p139 = por %p137, %p138
      %p140 = scmp.ne.s32.totalorder %s128, %s129
      %p141 = scmp.eq.s32.totalorder %s35, 1
      %p142 = por %p140, %p141
      %p144 = scmp.ne.s32.totalorder %s129, %s143
      %p145 = scmp.eq.s32.totalorder %s35, 0
      %p146 = por %p144, %p145
      %s148 = sadd.s32 %s147, 1
      %p151 = scmp.eq.s32.totalorder %s29, 1
      %p152 = scmp.ne.s32.totalorder %s147, %s149
      %p153 = scmp.eq.s32.totalorder %s29, 0
      %p154 = por %p152, %p153
      %p155 = scmp.ne.s32.totalorder %s147, %s149
      %p156 = scmp.eq.s32.totalorder %s34, 1
      %p157 = por %p155, %p156
      %p158 = scmp.ne.s32.totalorder %s149, %s150
      %p159 = scmp.eq.s32.totalorder %s34, 0
      %p160 = por %p158, %p159
      %p161 = scmp.ne.s32.totalorder %s149, %s150
      %p162 = scmp.eq.s32.totalorder %s35, 1
      %p163 = por %p161, %p162
      %p165 = scmp.ne.s32.totalorder %s150, %s164
      %p166 = scmp.eq.s32.totalorder %s35, 0
      %p167 = por %p165, %p166
      %s169 = sadd.s32 %s168, 1
      %p172 = scmp.eq.s32.totalorder %s29, 1
      %p173 = scmp.ne.s32.totalorder %s168, %s170
      %p174 = scmp.eq.s32.totalorder %s29, 0
      %p175 = por %p173, %p174
      %p176 = scmp.ne.s32.totalorder %s168, %s170
      %p177 = scmp.eq.s32.totalorder %s34, 1
      %p178 = por %p176, %p177
      %p179 = scmp.ne.s32.totalorder %s170, %s171
      %p180 = scmp.eq.s32.totalorder %s34, 0
      %p181 = por %p179, %p180
      %p182 = scmp.ne.s32.totalorder %s170, %s171
      %p183 = scmp.eq.s32.totalorder %s35, 1
      %p184 = por %p182, %p183
      %p186 = scmp.ne.s32.totalorder %s171, %s185
      %p187 = scmp.eq.s32.totalorder %s35, 0
      %p188 = por %p186, %p187
      %s190 = sadd.s32 %s189, 1
      %p193 = scmp.eq.s32.totalorder %s29, 1
      %p194 = scmp.ne.s32.totalorder %s189, %s191
      %p195 = scmp.eq.s32.totalorder %s29, 0
      %p196 = por %p194, %p195
      %p197 = scmp.ne.s32.totalorder %s189, %s191
      %p198 = scmp.eq.s32.totalorder %s34, 1
      %p199 = por %p197, %p198
      %p200 = scmp.ne.s32.totalorder %s191, %s192
      %p201 = scmp.eq.s32.totalorder %s34, 0
      %p202 = por %p200, %p201
      %p203 = scmp.ne.s32.totalorder %s191, %s192
      %p204 = scmp.eq.s32.totalorder %s35, 1
      %p205 = por %p203, %p204
      %p207 = scmp.ne.s32.totalorder %s192, %s206
      %p208 = scmp.eq.s32.totalorder %s35, 0
      %p209 = por %p207, %p208
      %s211 = sadd.s32 %s210, 1
      %p214 = scmp.eq.s32.totalorder %s29, 1
      %p215 = scmp.ne.s32.totalorder %s210, %s212
      %p216 = scmp.eq.s32.totalorder %s29, 0
      %p217 = por %p215, %p216
      %p218 = scmp.ne.s32.totalorder %s210, %s212
      %p219 = scmp.eq.s32.totalorder %s34, 1
      %p220 = por %p218, %p219
      %p221 = scmp.ne.s32.totalorder %s212, %s213
      %p222 = scmp.eq.s32.totalorder %s34, 0
      %p223 = por %p221, %p222
      %p224 = scmp.ne.s32.totalorder %s212, %s213
      %p225 = scmp.eq.s32.totalorder %s35, 1
      %p226 = por %p224, %p225
      %p228 = scmp.ne.s32.totalorder %s213, %s227
      %p229 = scmp.eq.s32.totalorder %s35, 0
      %p230 = por %p228, %p229
      %s232 = sadd.s32 %s231, 1
      %p235 = scmp.eq.s32.totalorder %s29, 1
      %p236 = scmp.ne.s32.totalorder %s231, %s233
      %p237 = scmp.eq.s32.totalorder %s29, 0
      %p238 = por %p236, %p237
      %p239 = scmp.ne.s32.totalorder %s231, %s233
      %p240 = scmp.eq.s32.totalorder %s34, 1
      %p241 = por %p239, %p240
      %p242 = scmp.ne.s32.totalorder %s233, %s234
      %p243 = scmp.eq.s32.totalorder %s34, 0
      %p244 = por %p242, %p243
      %p245 = scmp.ne.s32.totalorder %s233, %s234
      %p246 = scmp.eq.s32.totalorder %s35, 1
      %p247 = por %p245, %p246
      %p249 = scmp.ne.s32.totalorder %s234, %s248
      %p250 = scmp.eq.s32.totalorder %s35, 0
      %p251 = por %p249, %p250
      %s253 = sadd.s32 %s252, 1
      %p256 = scmp.eq.s32.totalorder %s29, 1
      %p257 = scmp.ne.s32.totalorder %s252, %s254
      %p258 = scmp.eq.s32.totalorder %s29, 0
      %p259 = por %p257, %p258
      %p260 = scmp.ne.s32.totalorder %s252, %s254
      %p261 = scmp.eq.s32.totalorder %s34, 1
      %p262 = por %p260, %p261
      %p263 = scmp.ne.s32.totalorder %s254, %s255
      %p264 = scmp.eq.s32.totalorder %s34, 0
      %p265 = por %p263, %p264
      %p266 = scmp.ne.s32.totalorder %s254, %s255
      %p267 = scmp.eq.s32.totalorder %s35, 1
      %p268 = por %p266, %p267
      %p270 = scmp.ne.s32.totalorder %s255, %s269
      %p271 = scmp.eq.s32.totalorder %s35, 0
      %p272 = por %p270, %p271
      %s274 = sadd.s32 %s273, 1
      %p277 = scmp.eq.s32.totalorder %s29, 1
      %p278 = scmp.ne.s32.totalorder %s273, %s275
      %p279 = scmp.eq.s32.totalorder %s29, 0
      %p280 = por %p278, %p279
      %p281 = scmp.ne.s32.totalorder %s273, %s275
      %p282 = scmp.eq.s32.totalorder %s34, 1
      %p283 = por %p281, %p282
      %p284 = scmp.ne.s32.totalorder %s275, %s276
      %p285 = scmp.eq.s32.totalorder %s34, 0
      %p286 = por %p284, %p285
      %p287 = scmp.ne.s32.totalorder %s275, %s276
      %p288 = scmp.eq.s32.totalorder %s35, 1
      %p289 = por %p287, %p288
      %p291 = scmp.ne.s32.totalorder %s276, %s290
      %p292 = scmp.eq.s32.totalorder %s35, 0
      %p293 = por %p291, %p292
      %s295 = sadd.s32 %s294, 1
      %p298 = scmp.eq.s32.totalorder %s29, 1
      %p299 = scmp.ne.s32.totalorder %s294, %s296
      %p300 = scmp.eq.s32.totalorder %s29, 0
      %p301 = por %p299, %p300
      %p302 = scmp.ne.s32.totalorder %s294, %s296
      %p303 = scmp.eq.s32.totalorder %s34, 1
      %p304 = por %p302, %p303
      %p305 = scmp.ne.s32.totalorder %s296, %s297
      %p306 = scmp.eq.s32.totalorder %s34, 0
      %p307 = por %p305, %p306
      %p308 = scmp.ne.s32.totalorder %s296, %s297
      %p309 = scmp.eq.s32.totalorder %s35, 1
      %p310 = por %p308, %p309
      %p312 = scmp.ne.s32.totalorder %s297, %s311
      %p313 = scmp.eq.s32.totalorder %s35, 0
      %p314 = por %p312, %p313
      %s315 = ssub.s32 %s29, %s36
      %p316 = scmp.eq.s32.totalorder %s315, 0
      %s318 = sadd.s32 %s317, 1
      %s319 = scalar_select %p316, %s317, %s318
      %p322 = pneg %p316
      %p323 = scmp.eq.s32.totalorder %s29, 1
      %p324 = por %p322, %p323
      %p325 = scmp.ne.s32.totalorder %s317, %s320
      %p326 = scmp.eq.s32.totalorder %s29, 0
      %p327 = por %p325, %p326
      %p328 = scmp.ne.s32.totalorder %s317, %s320
      %p329 = scmp.eq.s32.totalorder %s34, 1
      %p330 = por %p328, %p329
      %p331 = scmp.ne.s32.totalorder %s320, %s321
      %p332 = scmp.eq.s32.totalorder %s34, 0
      %p333 = por %p331, %p332
      %p334 = scmp.ne.s32.totalorder %s320, %s321
      %p335 = scmp.eq.s32.totalorder %s35, 1
      %p336 = por %p334, %p335
      %p338 = scmp.ne.s32.totalorder %s321, %s337
      %p339 = scmp.eq.s32.totalorder %s35, 0
      %p340 = por %p338, %p339
      %p341 = scmp.le.s32.totalorder 1, %s29
      %p342 = scmp.lt.s32.totalorder %s29, 3
      %p343 = pnand %p341, %p342
      %p344 = pneg %p343
      // Predicated region
      $region9: #{tpu_custom_call.1} parent=5 // pred_check
        _
      $region10: #{tpu_custom_call.1} parent=5 // pred_check_branch
        %346 = sbr.rel (%p343) target = $region12
      $region11: #{tpu_custom_call.1} parent=5 // pred_region
        %s347 = ssub.s32 %s29, 1
        // Predicated region
        $region13: #{tpu_custom_call.1} parent=11 // pred_check
          %p348 = pneg %p76
        $region14: #{tpu_custom_call.1} parent=11 // pred_check_branch
          %350 = sbr.rel (%p348) target = $region16
        $region15: #{tpu_custom_call.1} parent=11 // pred_region
          %352 = vsyncadd [#allocation6], 0
          %s353 = sshll.u32 %s1, 4
          %s354 = int_to_ptr.hbm [resolvable:$true] %s353
          %s355 = sshll.u32 [#allocation5], 4
          %s356 = int_to_ptr.vmem [resolvable:$true] %s355
          %361 = dma.hbm_to_vmem [thread:$0]  %s354, 1024, %s356, [#allocation6], 64, 64, 4
        $region16: #{tpu_custom_call.1} parent=11 // pred_fallthru
          _
        // Predicated region
        $region17: #{tpu_custom_call.1} parent=11 // pred_check
          %p362 = pneg %p97
        $region18: #{tpu_custom_call.1} parent=11 // pred_check_branch
          %364 = sbr.rel (%p362) target = $region20
        $region19: #{tpu_custom_call.1} parent=11 // pred_region
          %366 = vsyncadd [#allocation6], 0
          %s368 = sshll.u32 %s2, 4
          %s369 = int_to_ptr.hbm [resolvable:$true] %s368
          %s370 = sshll.u32 [#allocation7], 4
          %s371 = int_to_ptr.vmem [resolvable:$true] %s370
          %373 = dma.hbm_to_vmem [thread:$0]  %s369, 16, %s371, [#allocation6]
        $region20: #{tpu_custom_call.1} parent=11 // pred_fallthru
          _
        // Predicated region
        $region21: #{tpu_custom_call.1} parent=11 // pred_check
          %p374 = pneg %p118
        $region22: #{tpu_custom_call.1} parent=11 // pred_check_branch
          %376 = sbr.rel (%p374) target = $region24
        $region23: #{tpu_custom_call.1} parent=11 // pred_region
          %378 = vsyncadd [#allocation9], 0
          %s379 = sshll.u32 %s3, 4
          %s380 = int_to_ptr.hbm [resolvable:$true] %s379
          %s381 = sshll.u32 [#allocation8], 4
          %s382 = int_to_ptr.vmem [resolvable:$true] %s381
          %387 = dma.hbm_to_vmem [thread:$0]  %s380, 1024, %s382, [#allocation9], 64, 64, 4
        $region24: #{tpu_custom_call.1} parent=11 // pred_fallthru
          _
        // Predicated region
        $region25: #{tpu_custom_call.1} parent=11 // pred_check
          %p388 = pneg %p139
        $region26: #{tpu_custom_call.1} parent=11 // pred_check_branch
          %390 = sbr.rel (%p388) target = $region28
        $region27: #{tpu_custom_call.1} parent=11 // pred_region
          %392 = vsyncadd [#allocation9], 0
          %s394 = sshll.u32 %s4, 4
          %s395 = int_to_ptr.hbm [resolvable:$true] %s394
          %s396 = sshll.u32 [#allocation10], 4
          %s397 = int_to_ptr.vmem [resolvable:$true] %s396
          %399 = dma.hbm_to_vmem [thread:$0]  %s395, 16, %s397, [#allocation9]
        $region28: #{tpu_custom_call.1} parent=11 // pred_fallthru
          _
        // Predicated region
        $region29: #{tpu_custom_call.1} parent=11 // pred_check
          %p400 = pneg %p160
        $region30: #{tpu_custom_call.1} parent=11 // pred_check_branch
          %402 = sbr.rel (%p400) target = $region32
        $region31: #{tpu_custom_call.1} parent=11 // pred_region
          %404 = vsyncadd [#allocation12], 0
          %s405 = sshll.u32 %s5, 4
          %s406 = int_to_ptr.hbm [resolvable:$true] %s405
          %s407 = sshll.u32 [#allocation11], 4
          %s408 = int_to_ptr.vmem [resolvable:$true] %s407
          %413 = dma.hbm_to_vmem [thread:$0]  %s406, 2048, %s408, [#allocation12], 128, 128, 8
        $region32: #{tpu_custom_call.1} parent=11 // pred_fallthru
          _
        // Predicated region
        $region33: #{tpu_custom_call.1} parent=11 // pred_check
          %p414 = pneg %p181
        $region34: #{tpu_custom_call.1} parent=11 // pred_check_branch
          %416 = sbr.rel (%p414) target = $region36
        $region35: #{tpu_custom_call.1} parent=11 // pred_region
          _
        $region36: #{tpu_custom_call.1} parent=11 // pred_fallthru
          _
        // Predicated region
        $region37: #{tpu_custom_call.1} parent=11 // pred_check
          %p417 = pneg %p202
        $region38: #{tpu_custom_call.1} parent=11 // pred_check_branch
          %419 = sbr.rel (%p417) target = $region40
        $region39: #{tpu_custom_call.1} parent=11 // pred_region
          %421 = vsyncadd [#allocation12], 0
          %s422 = sshll.u32 %s7, 4
          %s423 = int_to_ptr.hbm [resolvable:$true] %s422
          %s424 = sshll.u32 [#allocation13], 4
          %s425 = int_to_ptr.vmem [resolvable:$true] %s424
          %430 = dma.hbm_to_vmem [thread:$0]  %s423, 4096, %s425, [#allocation12], 128, 128, 8
        $region40: #{tpu_custom_call.1} parent=11 // pred_fallthru
          _
        // Predicated region
        $region41: #{tpu_custom_call.1} parent=11 // pred_check
          %p431 = pneg %p223
        $region42: #{tpu_custom_call.1} parent=11 // pred_check_branch
          %433 = sbr.rel (%p431) target = $region44
        $region43: #{tpu_custom_call.1} parent=11 // pred_region
          _
        $region44: #{tpu_custom_call.1} parent=11 // pred_fallthru
          _
        // Predicated region
        $region45: #{tpu_custom_call.1} parent=11 // pred_check
          %p434 = pneg %p244
        $region46: #{tpu_custom_call.1} parent=11 // pred_check_branch
          %436 = sbr.rel (%p434) target = $region48
        $region47: #{tpu_custom_call.1} parent=11 // pred_region
          %438 = vsyncadd [#allocation15], 0
          %s439 = sshll.u32 %s9, 4
          %s440 = int_to_ptr.hbm [resolvable:$true] %s439
          %s441 = sshll.u32 [#allocation14], 4
          %s442 = int_to_ptr.vmem [resolvable:$true] %s441
          %447 = dma.hbm_to_vmem [thread:$0]  %s440, 6144, %s442, [#allocation15], 192, 192, 12
        $region48: #{tpu_custom_call.1} parent=11 // pred_fallthru
          _
        // Predicated region
        $region49: #{tpu_custom_call.1} parent=11 // pred_check
          %p448 = pneg %p265
        $region50: #{tpu_custom_call.1} parent=11 // pred_check_branch
          %450 = sbr.rel (%p448) target = $region52
        $region51: #{tpu_custom_call.1} parent=11 // pred_region
          _
        $region52: #{tpu_custom_call.1} parent=11 // pred_fallthru
          _
        // Predicated region
        $region53: #{tpu_custom_call.1} parent=11 // pred_check
          %p451 = pneg %p286
        $region54: #{tpu_custom_call.1} parent=11 // pred_check_branch
          %453 = sbr.rel (%p451) target = $region56
        $region55: #{tpu_custom_call.1} parent=11 // pred_region
          %455 = vsyncadd [#allocation15], 0
          %s456 = sshll.u32 %s11, 4
          %s457 = int_to_ptr.hbm [resolvable:$true] %s456
          %s458 = sshll.u32 [#allocation16], 4
          %s459 = int_to_ptr.vmem [resolvable:$true] %s458
          %464 = dma.hbm_to_vmem [thread:$0]  %s457, 3072, %s459, [#allocation15], 64, 64, 4
        $region56: #{tpu_custom_call.1} parent=11 // pred_fallthru
          _
        // Predicated region
        $region57: #{tpu_custom_call.1} parent=11 // pred_check
          %p465 = pneg %p307
        $region58: #{tpu_custom_call.1} parent=11 // pred_check_branch
          %467 = sbr.rel (%p465) target = $region60
        $region59: #{tpu_custom_call.1} parent=11 // pred_region
          _
        $region60: #{tpu_custom_call.1} parent=11 // pred_fallthru
          _
      $region12: #{tpu_custom_call.1} parent=5 // pred_fallthru
        _
      %p468 = scmp.lt.s32.totalorder %s29, 2
      // Predicated region
      $region61: #{tpu_custom_call.1} parent=5 // pred_check
        %p469 = pneg %p468
      $region62: #{tpu_custom_call.1} parent=5 // pred_check_branch
        %471 = sbr.rel (%p469) target = $region64
      $region63: #{tpu_custom_call.1} parent=5 // pred_region
        // Predicated region
        $region65: #{tpu_custom_call.1} parent=63 // pred_check
          %p472 = pneg %p49
        $region66: #{tpu_custom_call.1} parent=63 // pred_check_branch
          %474 = sbr.rel (%p472) target = $region68
        $region67: #{tpu_custom_call.1} parent=63 // pred_region
          %s475 = sand.u32 %s39, 1
          %s476 = scalar_lea.sflag [#allocation3], %s475
          %s477 = sand.u32 %s39, 1
          %s478 = smul.addr %s477, 32
          %s479 = scalar_lea.vmem [#allocation2], %s478
          %s480 = smul.u32 4, %s29
          %482 = vsyncadd %s476, 0
          %s483 = smul.addr %s480, 8
          %s484 = scalar_lea.hbm %s0, %s483
          %s485 = sshll.u32 %s484, 4
          %s486 = int_to_ptr.hbm [resolvable:$true] %s485
          %s487 = sshll.u32 %s479, 4
          %s488 = int_to_ptr.vmem [resolvable:$true] %s487
          %493 = dma.hbm_to_vmem [thread:$0]  %s486, 512, %s488, %s476, 128, 128, 8
        $region68: #{tpu_custom_call.1} parent=63 // pred_fallthru
          _
      $region64: #{tpu_custom_call.1} parent=5 // pred_fallthru
        _
      %p494 = scmp.le.s32.totalorder 1, %s29
      %p495 = scmp.lt.s32.totalorder %s29, 3
      %p496 = pnand %p494, %p495
      %p497 = pneg %p496
      // Predicated region
      $region69: #{tpu_custom_call.1} parent=5 // pred_check
        _
      $region70: #{tpu_custom_call.1} parent=5 // pred_check_branch
        %499 = sbr.rel (%p496) target = $region72
      $region71: #{tpu_custom_call.1} parent=5 // pred_region
        %s500 = ssub.s32 %s29, 1
        %s501 = sand.u32 %s42, 1
        %s502 = scalar_lea.sflag [#allocation3], %s501
        %s503 = sand.u32 %s42, 1
        %s504 = smul.addr %s503, 32
        %s505 = scalar_lea.vmem [#allocation2], %s504
        // Predicated region
        $region73: #{tpu_custom_call.1} parent=71 // pred_check
          %p506 = pneg %p55
        $region74: #{tpu_custom_call.1} parent=71 // pred_check_branch
          %508 = sbr.rel (%p506) target = $region76
        $region75: #{tpu_custom_call.1} parent=71 // pred_region
          %510 = dma.done %s502, 512
        $region76: #{tpu_custom_call.1} parent=71 // pred_fallthru
          _
        // Predicated region
        $region77: #{tpu_custom_call.1} parent=71 // pred_check
          %p511 = pneg %p76
        $region78: #{tpu_custom_call.1} parent=71 // pred_check_branch
          %513 = sbr.rel (%p511) target = $region80
        $region79: #{tpu_custom_call.1} parent=71 // pred_region
          %515 = dma.done [#allocation6], 1024
        $region80: #{tpu_custom_call.1} parent=71 // pred_fallthru
          _
        // Predicated region
        $region81: #{tpu_custom_call.1} parent=71 // pred_check
          %p516 = pneg %p97
        $region82: #{tpu_custom_call.1} parent=71 // pred_check_branch
          %518 = sbr.rel (%p516) target = $region84
        $region83: #{tpu_custom_call.1} parent=71 // pred_region
          %520 = dma.done [#allocation6], 16
        $region84: #{tpu_custom_call.1} parent=71 // pred_fallthru
          _
        // Predicated region
        $region85: #{tpu_custom_call.1} parent=71 // pred_check
          %p521 = pneg %p118
        $region86: #{tpu_custom_call.1} parent=71 // pred_check_branch
          %523 = sbr.rel (%p521) target = $region88
        $region87: #{tpu_custom_call.1} parent=71 // pred_region
          %525 = dma.done [#allocation9], 1024
        $region88: #{tpu_custom_call.1} parent=71 // pred_fallthru
          _
        // Predicated region
        $region89: #{tpu_custom_call.1} parent=71 // pred_check
          %p526 = pneg %p139
        $region90: #{tpu_custom_call.1} parent=71 // pred_check_branch
          %528 = sbr.rel (%p526) target = $region92
        $region91: #{tpu_custom_call.1} parent=71 // pred_region
          %530 = dma.done [#allocation9], 16
        $region92: #{tpu_custom_call.1} parent=71 // pred_fallthru
          _
        // Predicated region
        $region93: #{tpu_custom_call.1} parent=71 // pred_check
          %p531 = pneg %p160
        $region94: #{tpu_custom_call.1} parent=71 // pred_check_branch
          %533 = sbr.rel (%p531) target = $region96
        $region95: #{tpu_custom_call.1} parent=71 // pred_region
          %535 = dma.done [#allocation12], 2048
        $region96: #{tpu_custom_call.1} parent=71 // pred_fallthru
          _
        // Predicated region
        $region97: #{tpu_custom_call.1} parent=71 // pred_check
          %p536 = pneg %p202
        $region98: #{tpu_custom_call.1} parent=71 // pred_check_branch
          %538 = sbr.rel (%p536) target = $region100
        $region99: #{tpu_custom_call.1} parent=71 // pred_region
          %540 = dma.done [#allocation12], 4096
        $region100: #{tpu_custom_call.1} parent=71 // pred_fallthru
          _
        // Predicated region
        $region101: #{tpu_custom_call.1} parent=71 // pred_check
          %p541 = pneg %p244
        $region102: #{tpu_custom_call.1} parent=71 // pred_check_branch
          %543 = sbr.rel (%p541) target = $region104
        $region103: #{tpu_custom_call.1} parent=71 // pred_region
          %545 = dma.done [#allocation15], 6144
        $region104: #{tpu_custom_call.1} parent=71 // pred_fallthru
          _
        // Predicated region
        $region105: #{tpu_custom_call.1} parent=71 // pred_check
          %p546 = pneg %p286
        $region106: #{tpu_custom_call.1} parent=71 // pred_check_branch
          %548 = sbr.rel (%p546) target = $region108
        $region107: #{tpu_custom_call.1} parent=71 // pred_region
          %550 = dma.done [#allocation15], 3072
        $region108: #{tpu_custom_call.1} parent=71 // pred_fallthru
          _
        %s551 = sand.u32 %s42, 1
        %s552 = scalar_lea.sflag [#allocation3], %s551
        %s553 = sand.u32 %s42, 1
        %s554 = smul.addr %s553, 32
        %s555 = scalar_lea.vmem [#allocation2], %s554
        %p556 = pneg %p55
        %p557 = pneg %p52
        %p558 = pneg %p76
        %p559 = pneg %p73
        %p560 = pneg %p97
        %p561 = pneg %p94
        %p562 = pneg %p118
        %p563 = pneg %p115
        %p564 = pneg %p139
        %p565 = pneg %p136
        %p566 = pneg %p160
        %p567 = pneg %p157
        %p568 = pneg %p181
        %p569 = pneg %p178
        %p570 = pneg %p202
        %p571 = pneg %p199
        %p572 = pneg %p223
        %p573 = pneg %p220
        %p574 = pneg %p244
        %p575 = pneg %p241
        %p576 = pneg %p265
        %p577 = pneg %p262
        %p578 = pneg %p286
        %p579 = pneg %p283
        %p580 = pneg %p307
        %p581 = pneg %p304
        %p582 = pneg %p333
        %p583 = pneg %p330
        %s584 = sand.u32 %s320, 1
        %s585 = scalar_lea.sflag [#allocation4], %s584
        %s586 = sand.u32 %s320, 1
        %s587 = smul.addr %s586, 32
        %s588 = scalar_lea.vmem [#allocation17], %s587
        %s589 = smul.u32 4, %s34
        %s590 = smul.u32 4, %s34
        %v591 = vld [vmem:[%s505] sm:$0xff]
        %v592 = vld [vmem:[%s505 + $0x8] sm:$0xff]
        %v593 = vld [vmem:[%s505 + $0x10] sm:$0xff]
        %v594 = vld [vmem:[%s505 + $0x18] sm:$0xff]
        %v595 = vld [vmem:[#allocation5] sm:$0xf]
        %v596 = vld [vmem:[#allocation5 + $0x4] sm:$0xf]
        %v597 = vld [vmem:[#allocation5 + $0x8] sm:$0xf]
        %v598 = vld [vmem:[#allocation5 + $0xc] sm:$0xf]
        %v599 = vld [vmem:[#allocation5 + $0x10] sm:$0xf]
        %v600 = vld [vmem:[#allocation5 + $0x14] sm:$0xf]
        %v601 = vld [vmem:[#allocation5 + $0x18] sm:$0xf]
        %v602 = vld [vmem:[#allocation5 + $0x1c] sm:$0xf]
        %v603 = vld [vmem:[#allocation5 + $0x20] sm:$0xf]
        %v604 = vld [vmem:[#allocation5 + $0x24] sm:$0xf]
        %v605 = vld [vmem:[#allocation5 + $0x28] sm:$0xf]
        %v606 = vld [vmem:[#allocation5 + $0x2c] sm:$0xf]
        %v607 = vld [vmem:[#allocation5 + $0x30] sm:$0xf]
        %v608 = vld [vmem:[#allocation5 + $0x34] sm:$0xf]
        %v609 = vld [vmem:[#allocation5 + $0x38] sm:$0xf]
        %v610 = vld [vmem:[#allocation5 + $0x3c] sm:$0xf]
        %v611 = vpack.c.bf16 %v592, %v591
        %v612 = vpack.c.bf16 %v594, %v593
        %v613 = vld [vmem:[#allocation7] sm:$0x1]
        %v615 = vperm.slane %v613, 0
        %v633 = vunpack.c.l.b16 %v595
        %v634 = vunpack.c.l.b16 %v596
        %v635 = vunpack.c.l.b16 %v597
        %v636 = vunpack.c.l.b16 %v598
        %v637 = vunpack.c.l.b16 %v599
        %v638 = vunpack.c.l.b16 %v600
        %v639 = vunpack.c.l.b16 %v601
        %v640 = vunpack.c.l.b16 %v602
        %v641 = vunpack.c.l.b16 %v603
        %v642 = vunpack.c.l.b16 %v604
        %v643 = vunpack.c.l.b16 %v605
        %v644 = vunpack.c.l.b16 %v606
        %v645 = vunpack.c.l.b16 %v607
        %v646 = vunpack.c.l.b16 %v608
        %v647 = vunpack.c.l.b16 %v609
        %v648 = vunpack.c.l.b16 %v610
        %v649 = vpack.c.b16 %v634, %v633
        %v650 = vpack.c.b16 %v636, %v635
        %v651 = vpack.c.b16 %v638, %v637
        %v652 = vpack.c.b16 %v640, %v639
        %v653 = vpack.c.b16 %v642, %v641
        %v654 = vpack.c.b16 %v644, %v643
        %v655 = vpack.c.b16 %v646, %v645
        %v656 = vpack.c.b16 %v648, %v647
        %665 = vmatpush.bf16.msra.mxu0 %v656
        %666 = vmatpush.bf16.msra.mxu0 %v655
        %667 = vmatpush.bf16.msra.mxu0 %v654
        %668 = vmatpush.bf16.msra.mxu0 %v653
        %669 = vmatpush.bf16.msra.mxu0 %v652
        %670 = vmatpush.bf16.msra.mxu0 %v651
        %671 = vmatpush.bf16.msra.mxu0 %v650
        %672 = vmatpush.bf16.msra.mxu0 %v649
        %673 = vmatmul.bf16.gmra.mxu0 %v611
        %v674 = vpop.f32.mrf.mxu0
        %v675 = vadd.f32 %v615, %v674
        %v676 = vpop.f32.mrf.mxu0
        %v677 = vadd.f32 %v615, %v676
        %678 = vmatmul.bf16.gmra.mxu0 %v612
        %v679 = vpop.f32.mrf.mxu0
        %v680 = vadd.f32 %v615, %v679
        %v681 = vpop.f32.mrf.mxu0
        %v682 = vadd.f32 %v615, %v681
        %683 = vdwg.mxu0
        %v684 = vmul.f32 %v675, 0.5
        %v685 = vmul.f32 %v677, 0.5
        %v686 = vmul.f32 %v680, 0.5
        %v687 = vmul.f32 %v682, 0.5
        %v688 = vtanh.pop %v684
        %v689 = vtanh.pop %v685
        %v690 = vtanh.pop %v686
        %v691 = vtanh.pop %v687
        %v692 = vmul.f32 %v688, 0.5
        %v693 = vmul.f32 %v689, 0.5
        %v694 = vmul.f32 %v690, 0.5
        %v695 = vmul.f32 %v691, 0.5
        %v696 = vadd.f32 %v692, 0.5
        %v697 = vadd.f32 %v693, 0.5
        %v698 = vadd.f32 %v694, 0.5
        %v699 = vadd.f32 %v695, 0.5
        %v700 = vmul.f32 %v675, %v696
        %v701 = vmul.f32 %v677, %v697
        %v702 = vmul.f32 %v680, %v698
        %v703 = vmul.f32 %v682, %v699
        %v704 = vpack.c.bf16 %v701, %v700
        %v705 = vpack.c.bf16 %v703, %v702
        %v706 = vld [vmem:[#allocation8] sm:$0xf]
        %v707 = vld [vmem:[#allocation8 + $0x4] sm:$0xf]
        %v708 = vld [vmem:[#allocation8 + $0x8] sm:$0xf]
        %v709 = vld [vmem:[#allocation8 + $0xc] sm:$0xf]
        %v710 = vld [vmem:[#allocation8 + $0x10] sm:$0xf]
        %v711 = vld [vmem:[#allocation8 + $0x14] sm:$0xf]
        %v712 = vld [vmem:[#allocation8 + $0x18] sm:$0xf]
        %v713 = vld [vmem:[#allocation8 + $0x1c] sm:$0xf]
        %v714 = vld [vmem:[#allocation8 + $0x20] sm:$0xf]
        %v715 = vld [vmem:[#allocation8 + $0x24] sm:$0xf]
        %v716 = vld [vmem:[#allocation8 + $0x28] sm:$0xf]
        %v717 = vld [vmem:[#allocation8 + $0x2c] sm:$0xf]
        %v718 = vld [vmem:[#allocation8 + $0x30] sm:$0xf]
        %v719 = vld [vmem:[#allocation8 + $0x34] sm:$0xf]
        %v720 = vld [vmem:[#allocation8 + $0x38] sm:$0xf]
        %v721 = vld [vmem:[#allocation8 + $0x3c] sm:$0xf]
        %v722 = vld [vmem:[#allocation10] sm:$0x1]
        %v724 = vperm.slane %v722, 0
        %v742 = vunpack.c.l.b16 %v706
        %v743 = vunpack.c.l.b16 %v707
        %v744 = vunpack.c.l.b16 %v708
        %v745 = vunpack.c.l.b16 %v709
        %v746 = vunpack.c.l.b16 %v710
        %v747 = vunpack.c.l.b16 %v711
        %v748 = vunpack.c.l.b16 %v712
        %v749 = vunpack.c.l.b16 %v713
        %v750 = vunpack.c.l.b16 %v714
        %v751 = vunpack.c.l.b16 %v715
        %v752 = vunpack.c.l.b16 %v716
        %v753 = vunpack.c.l.b16 %v717
        %v754 = vunpack.c.l.b16 %v718
        %v755 = vunpack.c.l.b16 %v719
        %v756 = vunpack.c.l.b16 %v720
        %v757 = vunpack.c.l.b16 %v721
        %v758 = vpack.c.b16 %v743, %v742
        %v759 = vpack.c.b16 %v745, %v744
        %v760 = vpack.c.b16 %v747, %v746
        %v761 = vpack.c.b16 %v749, %v748
        %v762 = vpack.c.b16 %v751, %v750
        %v763 = vpack.c.b16 %v753, %v752
        %v764 = vpack.c.b16 %v755, %v754
        %v765 = vpack.c.b16 %v757, %v756
        %774 = vmatpush.bf16.msra.mxu0 %v765
        %775 = vmatpush.bf16.msra.mxu0 %v764
        %776 = vmatpush.bf16.msra.mxu0 %v763
        %777 = vmatpush.bf16.msra.mxu0 %v762
        %778 = vmatpush.bf16.msra.mxu0 %v761
        %779 = vmatpush.bf16.msra.mxu0 %v760
        %780 = vmatpush.bf16.msra.mxu0 %v759
        %781 = vmatpush.bf16.msra.mxu0 %v758
        %782 = vmatmul.bf16.gmra.mxu0 %v704
        %v783 = vpop.f32.mrf.mxu0
        %v784 = vadd.f32 %v724, %v783
        %v785 = vpop.f32.mrf.mxu0
        %v786 = vadd.f32 %v724, %v785
        %787 = vmatmul.bf16.gmra.mxu0 %v705
        %v788 = vpop.f32.mrf.mxu0
        %v789 = vadd.f32 %v724, %v788
        %v790 = vpop.f32.mrf.mxu0
        %v791 = vadd.f32 %v724, %v790
        %792 = vdwg.mxu0
        %v793 = vmul.f32 %v784, 0.5
        %v794 = vmul.f32 %v786, 0.5
        %v795 = vmul.f32 %v789, 0.5
        %v796 = vmul.f32 %v791, 0.5
        %v797 = vtanh.pop %v793
        %v798 = vtanh.pop %v794
        %v799 = vtanh.pop %v795
        %v800 = vtanh.pop %v796
        %v801 = vmul.f32 %v797, 0.5
        %v802 = vmul.f32 %v798, 0.5
        %v803 = vmul.f32 %v799, 0.5
        %v804 = vmul.f32 %v800, 0.5
        %v805 = vadd.f32 %v801, 0.5
        %v806 = vadd.f32 %v802, 0.5
        %v807 = vadd.f32 %v803, 0.5
        %v808 = vadd.f32 %v804, 0.5
        %v809 = vmul.f32 %v784, %v805
        %v810 = vmul.f32 %v786, %v806
        %v811 = vmul.f32 %v789, %v807
        %v812 = vmul.f32 %v791, %v808
        %v813 = vpack.c.bf16 %v810, %v809
        %v814 = vpack.c.bf16 %v812, %v811
        %v815 = vld [vmem:[#allocation11] sm:$0xff]
        %v816 = vld [vmem:[#allocation11 + $0x8] sm:$0xff]
        %v817 = vld [vmem:[#allocation11 + $0x10] sm:$0xff]
        %v818 = vld [vmem:[#allocation11 + $0x18] sm:$0xff]
        %v819 = vld [vmem:[#allocation11 + $0x20] sm:$0xff]
        %v820 = vld [vmem:[#allocation11 + $0x28] sm:$0xff]
        %v821 = vld [vmem:[#allocation11 + $0x30] sm:$0xff]
        %v822 = vld [vmem:[#allocation11 + $0x38] sm:$0xff]
        %v823 = vld [vmem:[#allocation11 + $0x40] sm:$0xff]
        %v824 = vld [vmem:[#allocation11 + $0x48] sm:$0xff]
        %v825 = vld [vmem:[#allocation11 + $0x50] sm:$0xff]
        %v826 = vld [vmem:[#allocation11 + $0x58] sm:$0xff]
        %v827 = vld [vmem:[#allocation11 + $0x60] sm:$0xff]
        %v828 = vld [vmem:[#allocation11 + $0x68] sm:$0xff]
        %v829 = vld [vmem:[#allocation11 + $0x70] sm:$0xff]
        %v830 = vld [vmem:[#allocation11 + $0x78] sm:$0xff]
        %v831 = vld [vmem:[%s6] sm:$0x3]
        %v833 = vperm.slane %v831, 0
        %v834 = vperm.slane %v831, 1
        %v853 = vunpack.c.l.b16 %v815
        %v854 = vunpack.c.h.b16 %v815
        %v855 = vunpack.c.l.b16 %v816
        %v856 = vunpack.c.h.b16 %v816
        %v857 = vunpack.c.l.b16 %v817
        %v858 = vunpack.c.h.b16 %v817
        %v859 = vunpack.c.l.b16 %v818
        %v860 = vunpack.c.h.b16 %v818
        %v861 = vunpack.c.l.b16 %v819
        %v862 = vunpack.c.h.b16 %v819
        %v863 = vunpack.c.l.b16 %v820
        %v864 = vunpack.c.h.b16 %v820
        %v865 = vunpack.c.l.b16 %v821
        %v866 = vunpack.c.h.b16 %v821
        %v867 = vunpack.c.l.b16 %v822
        %v868 = vunpack.c.h.b16 %v822
        %v869 = vunpack.c.l.b16 %v823
        %v870 = vunpack.c.h.b16 %v823
        %v871 = vunpack.c.l.b16 %v824
        %v872 = vunpack.c.h.b16 %v824
        %v873 = vunpack.c.l.b16 %v825
        %v874 = vunpack.c.h.b16 %v825
        %v875 = vunpack.c.l.b16 %v826
        %v876 = vunpack.c.h.b16 %v826
        %v877 = vunpack.c.l.b16 %v827
        %v878 = vunpack.c.h.b16 %v827
        %v879 = vunpack.c.l.b16 %v828
        %v880 = vunpack.c.h.b16 %v828
        %v881 = vunpack.c.l.b16 %v829
        %v882 = vunpack.c.h.b16 %v829
        %v883 = vunpack.c.l.b16 %v830
        %v884 = vunpack.c.h.b16 %v830
        %v885 = vpack.c.b16 %v855, %v853
        %v886 = vpack.c.b16 %v856, %v854
        %v887 = vpack.c.b16 %v859, %v857
        %v888 = vpack.c.b16 %v860, %v858
        %v889 = vpack.c.b16 %v863, %v861
        %v890 = vpack.c.b16 %v864, %v862
        %v891 = vpack.c.b16 %v867, %v865
        %v892 = vpack.c.b16 %v868, %v866
        %v893 = vpack.c.b16 %v871, %v869
        %v894 = vpack.c.b16 %v872, %v870
        %v895 = vpack.c.b16 %v875, %v873
        %v896 = vpack.c.b16 %v876, %v874
        %v897 = vpack.c.b16 %v879, %v877
        %v898 = vpack.c.b16 %v880, %v878
        %v899 = vpack.c.b16 %v883, %v881
        %v900 = vpack.c.b16 %v884, %v882
        %917 = vmatpush.bf16.msra.mxu0 %v899
        %918 = vmatpush.bf16.msra.mxu0 %v897
        %919 = vmatpush.bf16.msra.mxu0 %v895
        %920 = vmatpush.bf16.msra.mxu0 %v893
        %921 = vmatpush.bf16.msra.mxu0 %v891
        %922 = vmatpush.bf16.msra.mxu0 %v889
        %923 = vmatpush.bf16.msra.mxu0 %v887
        %924 = vmatpush.bf16.msra.mxu0 %v885
        %925 = vmatmul.bf16.gmra.mxu0 %v813
        %v926 = vpop.f32.mrf.mxu0
        %v927 = vadd.f32 %v833, %v926
        %v928 = vpop.f32.mrf.mxu0
        %v929 = vadd.f32 %v833, %v928
        %930 = vmatmul.bf16.gmra.mxu0 %v814
        %v931 = vpop.f32.mrf.mxu0
        %v932 = vadd.f32 %v833, %v931
        %v933 = vpop.f32.mrf.mxu0
        %v934 = vadd.f32 %v833, %v933
        %935 = vdwg.mxu0
        %936 = vmatpush.bf16.msra.mxu0 %v900
        %937 = vmatpush.bf16.msra.mxu0 %v898
        %938 = vmatpush.bf16.msra.mxu0 %v896
        %939 = vmatpush.bf16.msra.mxu0 %v894
        %940 = vmatpush.bf16.msra.mxu0 %v892
        %941 = vmatpush.bf16.msra.mxu0 %v890
        %942 = vmatpush.bf16.msra.mxu0 %v888
        %943 = vmatpush.bf16.msra.mxu0 %v886
        %944 = vmatmul.bf16.gmra.mxu0 %v813
        %v945 = vpop.f32.mrf.mxu0
        %v946 = vadd.f32 %v834, %v945
        %v947 = vpop.f32.mrf.mxu0
        %v948 = vadd.f32 %v834, %v947
        %949 = vmatmul.bf16.gmra.mxu0 %v814
        %v950 = vpop.f32.mrf.mxu0
        %v951 = vadd.f32 %v834, %v950
        %v952 = vpop.f32.mrf.mxu0
        %v953 = vadd.f32 %v834, %v952
        %954 = vdwg.mxu0
        %v955 = vmul.f32 %v927, 0.5
        %v956 = vmul.f32 %v946, 0.5
        %v957 = vmul.f32 %v929, 0.5
        %v958 = vmul.f32 %v948, 0.5
        %v959 = vmul.f32 %v932, 0.5
        %v960 = vmul.f32 %v951, 0.5
        %v961 = vmul.f32 %v934, 0.5
        %v962 = vmul.f32 %v953, 0.5
        %v963 = vtanh.pop %v955
        %v964 = vtanh.pop %v956
        %v965 = vtanh.pop %v957
        %v966 = vtanh.pop %v958
        %v967 = vtanh.pop %v959
        %v968 = vtanh.pop %v960
        %v969 = vtanh.pop %v961
        %v970 = vtanh.pop %v962
        %v971 = vmul.f32 %v963, 0.5
        %v972 = vmul.f32 %v964, 0.5
        %v973 = vmul.f32 %v965, 0.5
        %v974 = vmul.f32 %v966, 0.5
        %v975 = vmul.f32 %v967, 0.5
        %v976 = vmul.f32 %v968, 0.5
        %v977 = vmul.f32 %v969, 0.5
        %v978 = vmul.f32 %v970, 0.5
        %v979 = vadd.f32 %v971, 0.5
        %v980 = vadd.f32 %v972, 0.5
        %v981 = vadd.f32 %v973, 0.5
        %v982 = vadd.f32 %v974, 0.5
        %v983 = vadd.f32 %v975, 0.5
        %v984 = vadd.f32 %v976, 0.5
        %v985 = vadd.f32 %v977, 0.5
        %v986 = vadd.f32 %v978, 0.5
        %v987 = vmul.f32 %v927, %v979
        %v988 = vmul.f32 %v946, %v980
        %v989 = vmul.f32 %v929, %v981
        %v990 = vmul.f32 %v948, %v982
        %v991 = vmul.f32 %v932, %v983
        %v992 = vmul.f32 %v951, %v984
        %v993 = vmul.f32 %v934, %v985
        %v994 = vmul.f32 %v953, %v986
        %v995 = vpack.c.bf16 %v989, %v987
        %v996 = vpack.c.bf16 %v990, %v988
        %v997 = vpack.c.bf16 %v993, %v991
        %v998 = vpack.c.bf16 %v994, %v992
        %v999 = vld [vmem:[#allocation13] sm:$0xff]
        %v1000 = vld [vmem:[#allocation13 + $0x8] sm:$0xff]
        %v1001 = vld [vmem:[#allocation13 + $0x10] sm:$0xff]
        %v1002 = vld [vmem:[#allocation13 + $0x18] sm:$0xff]
        %v1003 = vld [vmem:[#allocation13 + $0x20] sm:$0xff]
        %v1004 = vld [vmem:[#allocation13 + $0x28] sm:$0xff]
        %v1005 = vld [vmem:[#allocation13 + $0x30] sm:$0xff]
        %v1006 = vld [vmem:[#allocation13 + $0x38] sm:$0xff]
        %v1007 = vld [vmem:[#allocation13 + $0x40] sm:$0xff]
        %v1008 = vld [vmem:[#allocation13 + $0x48] sm:$0xff]
        %v1009 = vld [vmem:[#allocation13 + $0x50] sm:$0xff]
        %v1010 = vld [vmem:[#allocation13 + $0x58] sm:$0xff]
        %v1011 = vld [vmem:[#allocation13 + $0x60] sm:$0xff]
        %v1012 = vld [vmem:[#allocation13 + $0x68] sm:$0xff]
        %v1013 = vld [vmem:[#allocation13 + $0x70] sm:$0xff]
        %v1014 = vld [vmem:[#allocation13 + $0x78] sm:$0xff]
        %v1015 = vld [vmem:[#allocation13 + $0x80] sm:$0xff]
        %v1016 = vld [vmem:[#allocation13 + $0x88] sm:$0xff]
        %v1017 = vld [vmem:[#allocation13 + $0x90] sm:$0xff]
        %v1018 = vld [vmem:[#allocation13 + $0x98] sm:$0xff]
        %v1019 = vld [vmem:[#allocation13 + $0xa0] sm:$0xff]
        %v1020 = vld [vmem:[#allocation13 + $0xa8] sm:$0xff]
        %v1021 = vld [vmem:[#allocation13 + $0xb0] sm:$0xff]
        %v1022 = vld [vmem:[#allocation13 + $0xb8] sm:$0xff]
        %v1023 = vld [vmem:[#allocation13 + $0xc0] sm:$0xff]
        %v1024 = vld [vmem:[#allocation13 + $0xc8] sm:$0xff]
        %v1025 = vld [vmem:[#allocation13 + $0xd0] sm:$0xff]
        %v1026 = vld [vmem:[#allocation13 + $0xd8] sm:$0xff]
        %v1027 = vld [vmem:[#allocation13 + $0xe0] sm:$0xff]
        %v1028 = vld [vmem:[#allocation13 + $0xe8] sm:$0xff]
        %v1029 = vld [vmem:[#allocation13 + $0xf0] sm:$0xff]
        %v1030 = vld [vmem:[#allocation13 + $0xf8] sm:$0xff]
        %v1031 = vld [vmem:[%s8] sm:$0x3]
        %v1033 = vperm.slane %v1031, 0
        %v1034 = vperm.slane %v1031, 1
        %v1069 = vunpack.c.l.b16 %v999
        %v1070 = vunpack.c.h.b16 %v999
        %v1071 = vunpack.c.l.b16 %v1000
        %v1072 = vunpack.c.h.b16 %v1000
        %v1073 = vunpack.c.l.b16 %v1001
        %v1074 = vunpack.c.h.b16 %v1001
        %v1075 = vunpack.c.l.b16 %v1002
        %v1076 = vunpack.c.h.b16 %v1002
        %v1077 = vunpack.c.l.b16 %v1003
        %v1078 = vunpack.c.h.b16 %v1003
        %v1079 = vunpack.c.l.b16 %v1004
        %v1080 = vunpack.c.h.b16 %v1004
        %v1081 = vunpack.c.l.b16 %v1005
        %v1082 = vunpack.c.h.b16 %v1005
        %v1083 = vunpack.c.l.b16 %v1006
        %v1084 = vunpack.c.h.b16 %v1006
        %v1085 = vunpack.c.l.b16 %v1007
        %v1086 = vunpack.c.h.b16 %v1007
        %v1087 = vunpack.c.l.b16 %v1008
        %v1088 = vunpack.c.h.b16 %v1008
        %v1089 = vunpack.c.l.b16 %v1009
        %v1090 = vunpack.c.h.b16 %v1009
        %v1091 = vunpack.c.l.b16 %v1010
        %v1092 = vunpack.c.h.b16 %v1010
        %v1093 = vunpack.c.l.b16 %v1011
        %v1094 = vunpack.c.h.b16 %v1011
        %v1095 = vunpack.c.l.b16 %v1012
        %v1096 = vunpack.c.h.b16 %v1012
        %v1097 = vunpack.c.l.b16 %v1013
        %v1098 = vunpack.c.h.b16 %v1013
        %v1099 = vunpack.c.l.b16 %v1014
        %v1100 = vunpack.c.h.b16 %v1014
        %v1101 = vunpack.c.l.b16 %v1015
        %v1102 = vunpack.c.h.b16 %v1015
        %v1103 = vunpack.c.l.b16 %v1016
        %v1104 = vunpack.c.h.b16 %v1016
        %v1105 = vunpack.c.l.b16 %v1017
        %v1106 = vunpack.c.h.b16 %v1017
        %v1107 = vunpack.c.l.b16 %v1018
        %v1108 = vunpack.c.h.b16 %v1018
        %v1109 = vunpack.c.l.b16 %v1019
        %v1110 = vunpack.c.h.b16 %v1019
        %v1111 = vunpack.c.l.b16 %v1020
        %v1112 = vunpack.c.h.b16 %v1020
        %v1113 = vunpack.c.l.b16 %v1021
        %v1114 = vunpack.c.h.b16 %v1021
        %v1115 = vunpack.c.l.b16 %v1022
        %v1116 = vunpack.c.h.b16 %v1022
        %v1117 = vunpack.c.l.b16 %v1023
        %v1118 = vunpack.c.h.b16 %v1023
        %v1119 = vunpack.c.l.b16 %v1024
        %v1120 = vunpack.c.h.b16 %v1024
        %v1121 = vunpack.c.l.b16 %v1025
        %v1122 = vunpack.c.h.b16 %v1025
        %v1123 = vunpack.c.l.b16 %v1026
        %v1124 = vunpack.c.h.b16 %v1026
        %v1125 = vunpack.c.l.b16 %v1027
        %v1126 = vunpack.c.h.b16 %v1027
        %v1127 = vunpack.c.l.b16 %v1028
        %v1128 = vunpack.c.h.b16 %v1028
        %v1129 = vunpack.c.l.b16 %v1029
        %v1130 = vunpack.c.h.b16 %v1029
        %v1131 = vunpack.c.l.b16 %v1030
        %v1132 = vunpack.c.h.b16 %v1030
        %v1133 = vpack.c.b16 %v1071, %v1069
        %v1134 = vpack.c.b16 %v1072, %v1070
        %v1135 = vpack.c.b16 %v1075, %v1073
        %v1136 = vpack.c.b16 %v1076, %v1074
        %v1137 = vpack.c.b16 %v1079, %v1077
        %v1138 = vpack.c.b16 %v1080, %v1078
        %v1139 = vpack.c.b16 %v1083, %v1081
        %v1140 = vpack.c.b16 %v1084, %v1082
        %v1141 = vpack.c.b16 %v1087, %v1085
        %v1142 = vpack.c.b16 %v1088, %v1086
        %v1143 = vpack.c.b16 %v1091, %v1089
        %v1144 = vpack.c.b16 %v1092, %v1090
        %v1145 = vpack.c.b16 %v1095, %v1093
        %v1146 = vpack.c.b16 %v1096, %v1094
        %v1147 = vpack.c.b16 %v1099, %v1097
        %v1148 = vpack.c.b16 %v1100, %v1098
        %v1149 = vpack.c.b16 %v1103, %v1101
        %v1150 = vpack.c.b16 %v1104, %v1102
        %v1151 = vpack.c.b16 %v1107, %v1105
        %v1152 = vpack.c.b16 %v1108, %v1106
        %v1153 = vpack.c.b16 %v1111, %v1109
        %v1154 = vpack.c.b16 %v1112, %v1110
        %v1155 = vpack.c.b16 %v1115, %v1113
        %v1156 = vpack.c.b16 %v1116, %v1114
        %v1157 = vpack.c.b16 %v1119, %v1117
        %v1158 = vpack.c.b16 %v1120, %v1118
        %v1159 = vpack.c.b16 %v1123, %v1121
        %v1160 = vpack.c.b16 %v1124, %v1122
        %v1161 = vpack.c.b16 %v1127, %v1125
        %v1162 = vpack.c.b16 %v1128, %v1126
        %v1163 = vpack.c.b16 %v1131, %v1129
        %v1164 = vpack.c.b16 %v1132, %v1130
        %1197 = vmatpush.bf16.msra.mxu0 %v1147
        %1198 = vmatpush.bf16.msra.mxu0 %v1145
        %1199 = vmatpush.bf16.msra.mxu0 %v1143
        %1200 = vmatpush.bf16.msra.mxu0 %v1141
        %1201 = vmatpush.bf16.msra.mxu0 %v1139
        %1202 = vmatpush.bf16.msra.mxu0 %v1137
        %1203 = vmatpush.bf16.msra.mxu0 %v1135
        %1204 = vmatpush.bf16.msra.mxu0 %v1133
        %1205 = vmatmul.bf16.gmra.mxu0 %v995
        %v1206 = vpop.f32.mrf.mxu0
        %v1207 = vadd.f32 %v1033, %v1206
        %v1208 = vpop.f32.mrf.mxu0
        %v1209 = vadd.f32 %v1033, %v1208
        %1210 = vmatmul.bf16.gmra.mxu0 %v997
        %v1211 = vpop.f32.mrf.mxu0
        %v1212 = vadd.f32 %v1033, %v1211
        %v1213 = vpop.f32.mrf.mxu0
        %v1214 = vadd.f32 %v1033, %v1213
        %1215 = vdwg.mxu0
        %1216 = vmatpush.bf16.msra.mxu0 %v1163
        %1217 = vmatpush.bf16.msra.mxu0 %v1161
        %1218 = vmatpush.bf16.msra.mxu0 %v1159
        %1219 = vmatpush.bf16.msra.mxu0 %v1157
        %1220 = vmatpush.bf16.msra.mxu0 %v1155
        %1221 = vmatpush.bf16.msra.mxu0 %v1153
        %1222 = vmatpush.bf16.msra.mxu0 %v1151
        %1223 = vmatpush.bf16.msra.mxu0 %v1149
        %1224 = vmatmul.bf16.gmra.mxu0 %v996
        %v1225 = vpop.f32.mrf.mxu0
        %v1226 = vadd.f32 %v1207, %v1225
        %v1227 = vpop.f32.mrf.mxu0
        %v1228 = vadd.f32 %v1209, %v1227
        %1229 = vmatmul.bf16.gmra.mxu0 %v998
        %v1230 = vpop.f32.mrf.mxu0
        %v1231 = vadd.f32 %v1212, %v1230
        %v1232 = vpop.f32.mrf.mxu0
        %v1233 = vadd.f32 %v1214, %v1232
        %1234 = vdwg.mxu0
        %1235 = vmatpush.bf16.msra.mxu0 %v1148
        %1236 = vmatpush.bf16.msra.mxu0 %v1146
        %1237 = vmatpush.bf16.msra.mxu0 %v1144
        %1238 = vmatpush.bf16.msra.mxu0 %v1142
        %1239 = vmatpush.bf16.msra.mxu0 %v1140
        %1240 = vmatpush.bf16.msra.mxu0 %v1138
        %1241 = vmatpush.bf16.msra.mxu0 %v1136
        %1242 = vmatpush.bf16.msra.mxu0 %v1134
        %1243 = vmatmul.bf16.gmra.mxu0 %v995
        %v1244 = vpop.f32.mrf.mxu0
        %v1245 = vadd.f32 %v1034, %v1244
        %v1246 = vpop.f32.mrf.mxu0
        %v1247 = vadd.f32 %v1034, %v1246
        %1248 = vmatmul.bf16.gmra.mxu0 %v997
        %v1249 = vpop.f32.mrf.mxu0
        %v1250 = vadd.f32 %v1034, %v1249
        %v1251 = vpop.f32.mrf.mxu0
        %v1252 = vadd.f32 %v1034, %v1251
        %1253 = vdwg.mxu0
        %1254 = vmatpush.bf16.msra.mxu0 %v1164
        %1255 = vmatpush.bf16.msra.mxu0 %v1162
        %1256 = vmatpush.bf16.msra.mxu0 %v1160
        %1257 = vmatpush.bf16.msra.mxu0 %v1158
        %1258 = vmatpush.bf16.msra.mxu0 %v1156
        %1259 = vmatpush.bf16.msra.mxu0 %v1154
        %1260 = vmatpush.bf16.msra.mxu0 %v1152
        %1261 = vmatpush.bf16.msra.mxu0 %v1150
        %1262 = vmatmul.bf16.gmra.mxu0 %v996
        %v1263 = vpop.f32.mrf.mxu0
        %v1264 = vadd.f32 %v1245, %v1263
        %v1265 = vpop.f32.mrf.mxu0
        %v1266 = vadd.f32 %v1247, %v1265
        %1267 = vmatmul.bf16.gmra.mxu0 %v998
        %v1268 = vpop.f32.mrf.mxu0
        %v1269 = vadd.f32 %v1250, %v1268
        %v1270 = vpop.f32.mrf.mxu0
        %v1271 = vadd.f32 %v1252, %v1270
        %1272 = vdwg.mxu0
        %v1273 = vmul.f32 %v1226, 0.5
        %v1274 = vmul.f32 %v1264, 0.5
        %v1275 = vmul.f32 %v1228, 0.5
        %v1276 = vmul.f32 %v1266, 0.5
        %v1277 = vmul.f32 %v1231, 0.5
        %v1278 = vmul.f32 %v1269, 0.5
        %v1279 = vmul.f32 %v1233, 0.5
        %v1280 = vmul.f32 %v1271, 0.5
        %v1281 = vtanh.pop %v1273
        %v1282 = vtanh.pop %v1274
        %v1283 = vtanh.pop %v1275
        %v1284 = vtanh.pop %v1276
        %v1285 = vtanh.pop %v1277
        %v1286 = vtanh.pop %v1278
        %v1287 = vtanh.pop %v1279
        %v1288 = vtanh.pop %v1280
        %v1289 = vmul.f32 %v1281, 0.5
        %v1290 = vmul.f32 %v1282, 0.5
        %v1291 = vmul.f32 %v1283, 0.5
        %v1292 = vmul.f32 %v1284, 0.5
        %v1293 = vmul.f32 %v1285, 0.5
        %v1294 = vmul.f32 %v1286, 0.5
        %v1295 = vmul.f32 %v1287, 0.5
        %v1296 = vmul.f32 %v1288, 0.5
        %v1297 = vadd.f32 %v1289, 0.5
        %v1298 = vadd.f32 %v1290, 0.5
        %v1299 = vadd.f32 %v1291, 0.5
        %v1300 = vadd.f32 %v1292, 0.5
        %v1301 = vadd.f32 %v1293, 0.5
        %v1302 = vadd.f32 %v1294, 0.5
        %v1303 = vadd.f32 %v1295, 0.5
        %v1304 = vadd.f32 %v1296, 0.5
        %v1305 = vmul.f32 %v1226, %v1297
        %v1306 = vmul.f32 %v1264, %v1298
        %v1307 = vmul.f32 %v1228, %v1299
        %v1308 = vmul.f32 %v1266, %v1300
        %v1309 = vmul.f32 %v1231, %v1301
        %v1310 = vmul.f32 %v1269, %v1302
        %v1311 = vmul.f32 %v1233, %v1303
        %v1312 = vmul.f32 %v1271, %v1304
        %v1313 = vpack.c.bf16 %v1307, %v1305
        %v1314 = vpack.c.bf16 %v1308, %v1306
        %v1315 = vpack.c.bf16 %v1311, %v1309
        %v1316 = vpack.c.bf16 %v1312, %v1310
        %v1317 = vld [vmem:[#allocation14] sm:$0xff]
        %v1318 = vld [vmem:[#allocation14 + $0x8] sm:$0xf]
        %v1319 = vld [vmem:[#allocation14 + $0xc] sm:$0xff]
        %v1320 = vld [vmem:[#allocation14 + $0x14] sm:$0xf]
        %v1321 = vld [vmem:[#allocation14 + $0x18] sm:$0xff]
        %v1322 = vld [vmem:[#allocation14 + $0x20] sm:$0xf]
        %v1323 = vld [vmem:[#allocation14 + $0x24] sm:$0xff]
        %v1324 = vld [vmem:[#allocation14 + $0x2c] sm:$0xf]
        %v1325 = vld [vmem:[#allocation14 + $0x30] sm:$0xff]
        %v1326 = vld [vmem:[#allocation14 + $0x38] sm:$0xf]
        %v1327 = vld [vmem:[#allocation14 + $0x3c] sm:$0xff]
        %v1328 = vld [vmem:[#allocation14 + $0x44] sm:$0xf]
        %v1329 = vld [vmem:[#allocation14 + $0x48] sm:$0xff]
        %v1330 = vld [vmem:[#allocation14 + $0x50] sm:$0xf]
        %v1331 = vld [vmem:[#allocation14 + $0x54] sm:$0xff]
        %v1332 = vld [vmem:[#allocation14 + $0x5c] sm:$0xf]
        %v1333 = vld [vmem:[#allocation14 + $0x60] sm:$0xff]
        %v1334 = vld [vmem:[#allocation14 + $0x68] sm:$0xf]
        %v1335 = vld [vmem:[#allocation14 + $0x6c] sm:$0xff]
        %v1336 = vld [vmem:[#allocation14 + $0x74] sm:$0xf]
        %v1337 = vld [vmem:[#allocation14 + $0x78] sm:$0xff]
        %v1338 = vld [vmem:[#allocation14 + $0x80] sm:$0xf]
        %v1339 = vld [vmem:[#allocation14 + $0x84] sm:$0xff]
        %v1340 = vld [vmem:[#allocation14 + $0x8c] sm:$0xf]
        %v1341 = vld [vmem:[#allocation14 + $0x90] sm:$0xff]
        %v1342 = vld [vmem:[#allocation14 + $0x98] sm:$0xf]
        %v1343 = vld [vmem:[#allocation14 + $0x9c] sm:$0xff]
        %v1344 = vld [vmem:[#allocation14 + $0xa4] sm:$0xf]
        %v1345 = vld [vmem:[#allocation14 + $0xa8] sm:$0xff]
        %v1346 = vld [vmem:[#allocation14 + $0xb0] sm:$0xf]
        %v1347 = vld [vmem:[#allocation14 + $0xb4] sm:$0xff]
        %v1348 = vld [vmem:[#allocation14 + $0xbc] sm:$0xf]
        %v1349 = vld [vmem:[#allocation14 + $0xc0] sm:$0xff]
        %v1350 = vld [vmem:[#allocation14 + $0xc8] sm:$0xf]
        %v1351 = vld [vmem:[#allocation14 + $0xcc] sm:$0xff]
        %v1352 = vld [vmem:[#allocation14 + $0xd4] sm:$0xf]
        %v1353 = vld [vmem:[#allocation14 + $0xd8] sm:$0xff]
        %v1354 = vld [vmem:[#allocation14 + $0xe0] sm:$0xf]
        %v1355 = vld [vmem:[#allocation14 + $0xe4] sm:$0xff]
        %v1356 = vld [vmem:[#allocation14 + $0xec] sm:$0xf]
        %v1357 = vld [vmem:[#allocation14 + $0xf0] sm:$0xff]
        %v1358 = vld [vmem:[#allocation14 + $0xf8] sm:$0xf]
        %v1359 = vld [vmem:[#allocation14 + $0xfc] sm:$0xff]
        %v1360 = vld [vmem:[#allocation14 + $0x104] sm:$0xf]
        %v1361 = vld [vmem:[#allocation14 + $0x108] sm:$0xff]
        %v1362 = vld [vmem:[#allocation14 + $0x110] sm:$0xf]
        %v1363 = vld [vmem:[#allocation14 + $0x114] sm:$0xff]
        %v1364 = vld [vmem:[#allocation14 + $0x11c] sm:$0xf]
        %v1365 = vld [vmem:[#allocation14 + $0x120] sm:$0xff]
        %v1366 = vld [vmem:[#allocation14 + $0x128] sm:$0xf]
        %v1367 = vld [vmem:[#allocation14 + $0x12c] sm:$0xff]
        %v1368 = vld [vmem:[#allocation14 + $0x134] sm:$0xf]
        %v1369 = vld [vmem:[#allocation14 + $0x138] sm:$0xff]
        %v1370 = vld [vmem:[#allocation14 + $0x140] sm:$0xf]
        %v1371 = vld [vmem:[#allocation14 + $0x144] sm:$0xff]
        %v1372 = vld [vmem:[#allocation14 + $0x14c] sm:$0xf]
        %v1373 = vld [vmem:[#allocation14 + $0x150] sm:$0xff]
        %v1374 = vld [vmem:[#allocation14 + $0x158] sm:$0xf]
        %v1375 = vld [vmem:[#allocation14 + $0x15c] sm:$0xff]
        %v1376 = vld [vmem:[#allocation14 + $0x164] sm:$0xf]
        %v1377 = vld [vmem:[#allocation14 + $0x168] sm:$0xff]
        %v1378 = vld [vmem:[#allocation14 + $0x170] sm:$0xf]
        %v1379 = vld [vmem:[#allocation14 + $0x174] sm:$0xff]
        %v1380 = vld [vmem:[#allocation14 + $0x17c] sm:$0xf]
        %v1381 = vld [vmem:[%s10] sm:$0x7]
        %v1383 = vperm.slane %v1381, 0
        %v1384 = vperm.slane %v1381, 1
        %v1385 = vperm.slane %v1381, 2
        %v1453 = vunpack.c.l.b16 %v1317
        %v1454 = vunpack.c.h.b16 %v1317
        %v1455 = vunpack.c.l.b16 %v1318
        %v1456 = vunpack.c.l.b16 %v1319
        %v1457 = vunpack.c.h.b16 %v1319
        %v1458 = vunpack.c.l.b16 %v1320
        %v1459 = vunpack.c.l.b16 %v1321
        %v1460 = vunpack.c.h.b16 %v1321
        %v1461 = vunpack.c.l.b16 %v1322
        %v1462 = vunpack.c.l.b16 %v1323
        %v1463 = vunpack.c.h.b16 %v1323
        %v1464 = vunpack.c.l.b16 %v1324
        %v1465 = vunpack.c.l.b16 %v1325
        %v1466 = vunpack.c.h.b16 %v1325
        %v1467 = vunpack.c.l.b16 %v1326
        %v1468 = vunpack.c.l.b16 %v1327
        %v1469 = vunpack.c.h.b16 %v1327
        %v1470 = vunpack.c.l.b16 %v1328
        %v1471 = vunpack.c.l.b16 %v1329
        %v1472 = vunpack.c.h.b16 %v1329
        %v1473 = vunpack.c.l.b16 %v1330
        %v1474 = vunpack.c.l.b16 %v1331
        %v1475 = vunpack.c.h.b16 %v1331
        %v1476 = vunpack.c.l.b16 %v1332
        %v1477 = vunpack.c.l.b16 %v1333
        %v1478 = vunpack.c.h.b16 %v1333
        %v1479 = vunpack.c.l.b16 %v1334
        %v1480 = vunpack.c.l.b16 %v1335
        %v1481 = vunpack.c.h.b16 %v1335
        %v1482 = vunpack.c.l.b16 %v1336
        %v1483 = vunpack.c.l.b16 %v1337
        %v1484 = vunpack.c.h.b16 %v1337
        %v1485 = vunpack.c.l.b16 %v1338
        %v1486 = vunpack.c.l.b16 %v1339
        %v1487 = vunpack.c.h.b16 %v1339
        %v1488 = vunpack.c.l.b16 %v1340
        %v1489 = vunpack.c.l.b16 %v1341
        %v1490 = vunpack.c.h.b16 %v1341
        %v1491 = vunpack.c.l.b16 %v1342
        %v1492 = vunpack.c.l.b16 %v1343
        %v1493 = vunpack.c.h.b16 %v1343
        %v1494 = vunpack.c.l.b16 %v1344
        %v1495 = vunpack.c.l.b16 %v1345
        %v1496 = vunpack.c.h.b16 %v1345
        %v1497 = vunpack.c.l.b16 %v1346
        %v1498 = vunpack.c.l.b16 %v1347
        %v1499 = vunpack.c.h.b16 %v1347
        %v1500 = vunpack.c.l.b16 %v1348
        %v1501 = vunpack.c.l.b16 %v1349
        %v1502 = vunpack.c.h.b16 %v1349
        %v1503 = vunpack.c.l.b16 %v1350
        %v1504 = vunpack.c.l.b16 %v1351
        %v1505 = vunpack.c.h.b16 %v1351
        %v1506 = vunpack.c.l.b16 %v1352
        %v1507 = vunpack.c.l.b16 %v1353
        %v1508 = vunpack.c.h.b16 %v1353
        %v1509 = vunpack.c.l.b16 %v1354
        %v1510 = vunpack.c.l.b16 %v1355
        %v1511 = vunpack.c.h.b16 %v1355
        %v1512 = vunpack.c.l.b16 %v1356
        %v1513 = vunpack.c.l.b16 %v1357
        %v1514 = vunpack.c.h.b16 %v1357
        %v1515 = vunpack.c.l.b16 %v1358
        %v1516 = vunpack.c.l.b16 %v1359
        %v1517 = vunpack.c.h.b16 %v1359
        %v1518 = vunpack.c.l.b16 %v1360
        %v1519 = vunpack.c.l.b16 %v1361
        %v1520 = vunpack.c.h.b16 %v1361
        %v1521 = vunpack.c.l.b16 %v1362
        %v1522 = vunpack.c.l.b16 %v1363
        %v1523 = vunpack.c.h.b16 %v1363
        %v1524 = vunpack.c.l.b16 %v1364
        %v1525 = vunpack.c.l.b16 %v1365
        %v1526 = vunpack.c.h.b16 %v1365
        %v1527 = vunpack.c.l.b16 %v1366
        %v1528 = vunpack.c.l.b16 %v1367
        %v1529 = vunpack.c.h.b16 %v1367
        %v1530 = vunpack.c.l.b16 %v1368
        %v1531 = vunpack.c.l.b16 %v1369
        %v1532 = vunpack.c.h.b16 %v1369
        %v1533 = vunpack.c.l.b16 %v1370
        %v1534 = vunpack.c.l.b16 %v1371
        %v1535 = vunpack.c.h.b16 %v1371
        %v1536 = vunpack.c.l.b16 %v1372
        %v1537 = vunpack.c.l.b16 %v1373
        %v1538 = vunpack.c.h.b16 %v1373
        %v1539 = vunpack.c.l.b16 %v1374
        %v1540 = vunpack.c.l.b16 %v1375
        %v1541 = vunpack.c.h.b16 %v1375
        %v1542 = vunpack.c.l.b16 %v1376
        %v1543 = vunpack.c.l.b16 %v1377
        %v1544 = vunpack.c.h.b16 %v1377
        %v1545 = vunpack.c.l.b16 %v1378
        %v1546 = vunpack.c.l.b16 %v1379
        %v1547 = vunpack.c.h.b16 %v1379
        %v1548 = vunpack.c.l.b16 %v1380
        %v1549 = vpack.c.b16 %v1456, %v1453
        %v1550 = vpack.c.b16 %v1457, %v1454
        %v1551 = vpack.c.b16 %v1458, %v1455
        %v1552 = vpack.c.b16 %v1462, %v1459
        %v1553 = vpack.c.b16 %v1463, %v1460
        %v1554 = vpack.c.b16 %v1464, %v1461
        %v1555 = vpack.c.b16 %v1468, %v1465
        %v1556 = vpack.c.b16 %v1469, %v1466
        %v1557 = vpack.c.b16 %v1470, %v1467
        %v1558 = vpack.c.b16 %v1474, %v1471
        %v1559 = vpack.c.b16 %v1475, %v1472
        %v1560 = vpack.c.b16 %v1476, %v1473
        %v1561 = vpack.c.b16 %v1480, %v1477
        %v1562 = vpack.c.b16 %v1481, %v1478
        %v1563 = vpack.c.b16 %v1482, %v1479
        %v1564 = vpack.c.b16 %v1486, %v1483
        %v1565 = vpack.c.b16 %v1487, %v1484
        %v1566 = vpack.c.b16 %v1488, %v1485
        %v1567 = vpack.c.b16 %v1492, %v1489
        %v1568 = vpack.c.b16 %v1493, %v1490
        %v1569 = vpack.c.b16 %v1494, %v1491
        %v1570 = vpack.c.b16 %v1498, %v1495
        %v1571 = vpack.c.b16 %v1499, %v1496
        %v1572 = vpack.c.b16 %v1500, %v1497
        %v1573 = vpack.c.b16 %v1504, %v1501
        %v1574 = vpack.c.b16 %v1505, %v1502
        %v1575 = vpack.c.b16 %v1506, %v1503
        %v1576 = vpack.c.b16 %v1510, %v1507
        %v1577 = vpack.c.b16 %v1511, %v1508
        %v1578 = vpack.c.b16 %v1512, %v1509
        %v1579 = vpack.c.b16 %v1516, %v1513
        %v1580 = vpack.c.b16 %v1517, %v1514
        %v1581 = vpack.c.b16 %v1518, %v1515
        %v1582 = vpack.c.b16 %v1522, %v1519
        %v1583 = vpack.c.b16 %v1523, %v1520
        %v1584 = vpack.c.b16 %v1524, %v1521
        %v1585 = vpack.c.b16 %v1528, %v1525
        %v1586 = vpack.c.b16 %v1529, %v1526
        %v1587 = vpack.c.b16 %v1530, %v1527
        %v1588 = vpack.c.b16 %v1534, %v1531
        %v1589 = vpack.c.b16 %v1535, %v1532
        %v1590 = vpack.c.b16 %v1536, %v1533
        %v1591 = vpack.c.b16 %v1540, %v1537
        %v1592 = vpack.c.b16 %v1541, %v1538
        %v1593 = vpack.c.b16 %v1542, %v1539
        %v1594 = vpack.c.b16 %v1546, %v1543
        %v1595 = vpack.c.b16 %v1547, %v1544
        %v1596 = vpack.c.b16 %v1548, %v1545
        %1645 = vmatpush.bf16.msra.mxu0 %v1570
        %1646 = vmatpush.bf16.msra.mxu0 %v1567
        %1647 = vmatpush.bf16.msra.mxu0 %v1564
        %1648 = vmatpush.bf16.msra.mxu0 %v1561
        %1649 = vmatpush.bf16.msra.mxu0 %v1558
        %1650 = vmatpush.bf16.msra.mxu0 %v1555
        %1651 = vmatpush.bf16.msra.mxu0 %v1552
        %1652 = vmatpush.bf16.msra.mxu0 %v1549
        %1653 = vmatmul.bf16.gmra.mxu0 %v1313
        %v1654 = vpop.f32.mrf.mxu0
        %v1655 = vadd.f32 %v1383, %v1654
        %v1656 = vpop.f32.mrf.mxu0
        %v1657 = vadd.f32 %v1383, %v1656
        %1658 = vmatmul.bf16.gmra.mxu0 %v1315
        %v1659 = vpop.f32.mrf.mxu0
        %v1660 = vadd.f32 %v1383, %v1659
        %v1661 = vpop.f32.mrf.mxu0
        %v1662 = vadd.f32 %v1383, %v1661
        %1663 = vdwg.mxu0
        %1664 = vmatpush.bf16.msra.mxu0 %v1594
        %1665 = vmatpush.bf16.msra.mxu0 %v1591
        %1666 = vmatpush.bf16.msra.mxu0 %v1588
        %1667 = vmatpush.bf16.msra.mxu0 %v1585
        %1668 = vmatpush.bf16.msra.mxu0 %v1582
        %1669 = vmatpush.bf16.msra.mxu0 %v1579
        %1670 = vmatpush.bf16.msra.mxu0 %v1576
        %1671 = vmatpush.bf16.msra.mxu0 %v1573
        %1672 = vmatmul.bf16.gmra.mxu0 %v1314
        %v1673 = vpop.f32.mrf.mxu0
        %v1674 = vadd.f32 %v1655, %v1673
        %v1675 = vpop.f32.mrf.mxu0
        %v1676 = vadd.f32 %v1657, %v1675
        %1677 = vmatmul.bf16.gmra.mxu0 %v1316
        %v1678 = vpop.f32.mrf.mxu0
        %v1679 = vadd.f32 %v1660, %v1678
        %v1680 = vpop.f32.mrf.mxu0
        %v1681 = vadd.f32 %v1662, %v1680
        %1682 = vdwg.mxu0
        %1683 = vmatpush.bf16.msra.mxu0 %v1571
        %1684 = vmatpush.bf16.msra.mxu0 %v1568
        %1685 = vmatpush.bf16.msra.mxu0 %v1565
        %1686 = vmatpush.bf16.msra.mxu0 %v1562
        %1687 = vmatpush.bf16.msra.mxu0 %v1559
        %1688 = vmatpush.bf16.msra.mxu0 %v1556
        %1689 = vmatpush.bf16.msra.mxu0 %v1553
        %1690 = vmatpush.bf16.msra.mxu0 %v1550
        %1691 = vmatmul.bf16.gmra.mxu0 %v1313
        %v1692 = vpop.f32.mrf.mxu0
        %v1693 = vadd.f32 %v1384, %v1692
        %v1694 = vpop.f32.mrf.mxu0
        %v1695 = vadd.f32 %v1384, %v1694
        %1696 = vmatmul.bf16.gmra.mxu0 %v1315
        %v1697 = vpop.f32.mrf.mxu0
        %v1698 = vadd.f32 %v1384, %v1697
        %v1699 = vpop.f32.mrf.mxu0
        %v1700 = vadd.f32 %v1384, %v1699
        %1701 = vdwg.mxu0
        %1702 = vmatpush.bf16.msra.mxu0 %v1595
        %1703 = vmatpush.bf16.msra.mxu0 %v1592
        %1704 = vmatpush.bf16.msra.mxu0 %v1589
        %1705 = vmatpush.bf16.msra.mxu0 %v1586
        %1706 = vmatpush.bf16.msra.mxu0 %v1583
        %1707 = vmatpush.bf16.msra.mxu0 %v1580
        %1708 = vmatpush.bf16.msra.mxu0 %v1577
        %1709 = vmatpush.bf16.msra.mxu0 %v1574
        %1710 = vmatmul.bf16.gmra.mxu0 %v1314
        %v1711 = vpop.f32.mrf.mxu0
        %v1712 = vadd.f32 %v1693, %v1711
        %v1713 = vpop.f32.mrf.mxu0
        %v1714 = vadd.f32 %v1695, %v1713
        %1715 = vmatmul.bf16.gmra.mxu0 %v1316
        %v1716 = vpop.f32.mrf.mxu0
        %v1717 = vadd.f32 %v1698, %v1716
        %v1718 = vpop.f32.mrf.mxu0
        %v1719 = vadd.f32 %v1700, %v1718
        %1720 = vdwg.mxu0
        %1721 = vmatpush.bf16.msra.mxu0 %v1572
        %1722 = vmatpush.bf16.msra.mxu0 %v1569
        %1723 = vmatpush.bf16.msra.mxu0 %v1566
        %1724 = vmatpush.bf16.msra.mxu0 %v1563
        %1725 = vmatpush.bf16.msra.mxu0 %v1560
        %1726 = vmatpush.bf16.msra.mxu0 %v1557
        %1727 = vmatpush.bf16.msra.mxu0 %v1554
        %1728 = vmatpush.bf16.msra.mxu0 %v1551
        %1729 = vmatmul.bf16.gmra.mxu0 %v1313
        %v1730 = vpop.f32.mrf.mxu0
        %v1731 = vadd.f32 %v1385, %v1730
        %v1732 = vpop.f32.mrf.mxu0
        %v1733 = vadd.f32 %v1385, %v1732
        %1734 = vmatmul.bf16.gmra.mxu0 %v1315
        %v1735 = vpop.f32.mrf.mxu0
        %v1736 = vadd.f32 %v1385, %v1735
        %v1737 = vpop.f32.mrf.mxu0
        %v1738 = vadd.f32 %v1385, %v1737
        %1739 = vdwg.mxu0
        %1740 = vmatpush.bf16.msra.mxu0 %v1596
        %1741 = vmatpush.bf16.msra.mxu0 %v1593
        %1742 = vmatpush.bf16.msra.mxu0 %v1590
        %1743 = vmatpush.bf16.msra.mxu0 %v1587
        %1744 = vmatpush.bf16.msra.mxu0 %v1584
        %1745 = vmatpush.bf16.msra.mxu0 %v1581
        %1746 = vmatpush.bf16.msra.mxu0 %v1578
        %1747 = vmatpush.bf16.msra.mxu0 %v1575
        %1748 = vmatmul.bf16.gmra.mxu0 %v1314
        %v1749 = vpop.f32.mrf.mxu0
        %v1750 = vadd.f32 %v1731, %v1749
        %v1751 = vpop.f32.mrf.mxu0
        %v1752 = vadd.f32 %v1733, %v1751
        %1753 = vmatmul.bf16.gmra.mxu0 %v1316
        %v1754 = vpop.f32.mrf.mxu0
        %v1755 = vadd.f32 %v1736, %v1754
        %v1756 = vpop.f32.mrf.mxu0
        %v1757 = vadd.f32 %v1738, %v1756
        %1758 = vdwg.mxu0
        %v1759 = vmul.f32 %v1674, 0.5
        %v1760 = vmul.f32 %v1712, 0.5
        %v1761 = vmul.f32 %v1750, 0.5
        %v1762 = vmul.f32 %v1676, 0.5
        %v1763 = vmul.f32 %v1714, 0.5
        %v1764 = vmul.f32 %v1752, 0.5
        %v1765 = vmul.f32 %v1679, 0.5
        %v1766 = vmul.f32 %v1717, 0.5
        %v1767 = vmul.f32 %v1755, 0.5
        %v1768 = vmul.f32 %v1681, 0.5
        %v1769 = vmul.f32 %v1719, 0.5
        %v1770 = vmul.f32 %v1757, 0.5
        %v1771 = vtanh.pop %v1759
        %v1772 = vtanh.pop %v1760
        %v1773 = vtanh.pop %v1761
        %v1774 = vtanh.pop %v1762
        %v1775 = vtanh.pop %v1763
        %v1776 = vtanh.pop %v1764
        %v1777 = vtanh.pop %v1765
        %v1778 = vtanh.pop %v1766
        %v1779 = vtanh.pop %v1767
        %v1780 = vtanh.pop %v1768
        %v1781 = vtanh.pop %v1769
        %v1782 = vtanh.pop %v1770
        %v1783 = vmul.f32 %v1771, 0.5
        %v1784 = vmul.f32 %v1772, 0.5
        %v1785 = vmul.f32 %v1773, 0.5
        %v1786 = vmul.f32 %v1774, 0.5
        %v1787 = vmul.f32 %v1775, 0.5
        %v1788 = vmul.f32 %v1776, 0.5
        %v1789 = vmul.f32 %v1777, 0.5
        %v1790 = vmul.f32 %v1778, 0.5
        %v1791 = vmul.f32 %v1779, 0.5
        %v1792 = vmul.f32 %v1780, 0.5
        %v1793 = vmul.f32 %v1781, 0.5
        %v1794 = vmul.f32 %v1782, 0.5
        %v1795 = vadd.f32 %v1783, 0.5
        %v1796 = vadd.f32 %v1784, 0.5
        %v1797 = vadd.f32 %v1785, 0.5
        %v1798 = vadd.f32 %v1786, 0.5
        %v1799 = vadd.f32 %v1787, 0.5
        %v1800 = vadd.f32 %v1788, 0.5
        %v1801 = vadd.f32 %v1789, 0.5
        %v1802 = vadd.f32 %v1790, 0.5
        %v1803 = vadd.f32 %v1791, 0.5
        %v1804 = vadd.f32 %v1792, 0.5
        %v1805 = vadd.f32 %v1793, 0.5
        %v1806 = vadd.f32 %v1794, 0.5
        %v1807 = vmul.f32 %v1674, %v1795
        %v1808 = vmul.f32 %v1712, %v1796
        %v1809 = vmul.f32 %v1750, %v1797
        %v1810 = vmul.f32 %v1676, %v1798
        %v1811 = vmul.f32 %v1714, %v1799
        %v1812 = vmul.f32 %v1752, %v1800
        %v1813 = vmul.f32 %v1679, %v1801
        %v1814 = vmul.f32 %v1717, %v1802
        %v1815 = vmul.f32 %v1755, %v1803
        %v1816 = vmul.f32 %v1681, %v1804
        %v1817 = vmul.f32 %v1719, %v1805
        %v1818 = vmul.f32 %v1757, %v1806
        %v1819 = vpack.c.bf16 %v1810, %v1807
        %v1820 = vpack.c.bf16 %v1811, %v1808
        %v1821 = vpack.c.bf16 %v1812, %v1809
        %v1822 = vpack.c.bf16 %v1816, %v1813
        %v1823 = vpack.c.bf16 %v1817, %v1814
        %v1824 = vpack.c.bf16 %v1818, %v1815
        %v1825 = vld [vmem:[#allocation16] sm:$0xf]
        %v1826 = vld [vmem:[#allocation16 + $0x4] sm:$0xf]
        %v1827 = vld [vmem:[#allocation16 + $0x8] sm:$0xf]
        %v1828 = vld [vmem:[#allocation16 + $0xc] sm:$0xf]
        %v1829 = vld [vmem:[#allocation16 + $0x10] sm:$0xf]
        %v1830 = vld [vmem:[#allocation16 + $0x14] sm:$0xf]
        %v1831 = vld [vmem:[#allocation16 + $0x18] sm:$0xf]
        %v1832 = vld [vmem:[#allocation16 + $0x1c] sm:$0xf]
        %v1833 = vld [vmem:[#allocation16 + $0x20] sm:$0xf]
        %v1834 = vld [vmem:[#allocation16 + $0x24] sm:$0xf]
        %v1835 = vld [vmem:[#allocation16 + $0x28] sm:$0xf]
        %v1836 = vld [vmem:[#allocation16 + $0x2c] sm:$0xf]
        %v1837 = vld [vmem:[#allocation16 + $0x30] sm:$0xf]
        %v1838 = vld [vmem:[#allocation16 + $0x34] sm:$0xf]
        %v1839 = vld [vmem:[#allocation16 + $0x38] sm:$0xf]
        %v1840 = vld [vmem:[#allocation16 + $0x3c] sm:$0xf]
        %v1841 = vld [vmem:[#allocation16 + $0x40] sm:$0xf]
        %v1842 = vld [vmem:[#allocation16 + $0x44] sm:$0xf]
        %v1843 = vld [vmem:[#allocation16 + $0x48] sm:$0xf]
        %v1844 = vld [vmem:[#allocation16 + $0x4c] sm:$0xf]
        %v1845 = vld [vmem:[#allocation16 + $0x50] sm:$0xf]
        %v1846 = vld [vmem:[#allocation16 + $0x54] sm:$0xf]
        %v1847 = vld [vmem:[#allocation16 + $0x58] sm:$0xf]
        %v1848 = vld [vmem:[#allocation16 + $0x5c] sm:$0xf]
        %v1849 = vld [vmem:[#allocation16 + $0x60] sm:$0xf]
        %v1850 = vld [vmem:[#allocation16 + $0x64] sm:$0xf]
        %v1851 = vld [vmem:[#allocation16 + $0x68] sm:$0xf]
        %v1852 = vld [vmem:[#allocation16 + $0x6c] sm:$0xf]
        %v1853 = vld [vmem:[#allocation16 + $0x70] sm:$0xf]
        %v1854 = vld [vmem:[#allocation16 + $0x74] sm:$0xf]
        %v1855 = vld [vmem:[#allocation16 + $0x78] sm:$0xf]
        %v1856 = vld [vmem:[#allocation16 + $0x7c] sm:$0xf]
        %v1857 = vld [vmem:[#allocation16 + $0x80] sm:$0xf]
        %v1858 = vld [vmem:[#allocation16 + $0x84] sm:$0xf]
        %v1859 = vld [vmem:[#allocation16 + $0x88] sm:$0xf]
        %v1860 = vld [vmem:[#allocation16 + $0x8c] sm:$0xf]
        %v1861 = vld [vmem:[#allocation16 + $0x90] sm:$0xf]
        %v1862 = vld [vmem:[#allocation16 + $0x94] sm:$0xf]
        %v1863 = vld [vmem:[#allocation16 + $0x98] sm:$0xf]
        %v1864 = vld [vmem:[#allocation16 + $0x9c] sm:$0xf]
        %v1865 = vld [vmem:[#allocation16 + $0xa0] sm:$0xf]
        %v1866 = vld [vmem:[#allocation16 + $0xa4] sm:$0xf]
        %v1867 = vld [vmem:[#allocation16 + $0xa8] sm:$0xf]
        %v1868 = vld [vmem:[#allocation16 + $0xac] sm:$0xf]
        %v1869 = vld [vmem:[#allocation16 + $0xb0] sm:$0xf]
        %v1870 = vld [vmem:[#allocation16 + $0xb4] sm:$0xf]
        %v1871 = vld [vmem:[#allocation16 + $0xb8] sm:$0xf]
        %v1872 = vld [vmem:[#allocation16 + $0xbc] sm:$0xf]
        %v1873 = vld [vmem:[%s12] sm:$0x1]
        %v1875 = vperm.slane %v1873, 0
        %v1925 = vunpack.c.l.b16 %v1825
        %v1926 = vunpack.c.l.b16 %v1826
        %v1927 = vunpack.c.l.b16 %v1827
        %v1928 = vunpack.c.l.b16 %v1828
        %v1929 = vunpack.c.l.b16 %v1829
        %v1930 = vunpack.c.l.b16 %v1830
        %v1931 = vunpack.c.l.b16 %v1831
        %v1932 = vunpack.c.l.b16 %v1832
        %v1933 = vunpack.c.l.b16 %v1833
        %v1934 = vunpack.c.l.b16 %v1834
        %v1935 = vunpack.c.l.b16 %v1835
        %v1936 = vunpack.c.l.b16 %v1836
        %v1937 = vunpack.c.l.b16 %v1837
        %v1938 = vunpack.c.l.b16 %v1838
        %v1939 = vunpack.c.l.b16 %v1839
        %v1940 = vunpack.c.l.b16 %v1840
        %v1941 = vunpack.c.l.b16 %v1841
        %v1942 = vunpack.c.l.b16 %v1842
        %v1943 = vunpack.c.l.b16 %v1843
        %v1944 = vunpack.c.l.b16 %v1844
        %v1945 = vunpack.c.l.b16 %v1845
        %v1946 = vunpack.c.l.b16 %v1846
        %v1947 = vunpack.c.l.b16 %v1847
        %v1948 = vunpack.c.l.b16 %v1848
        %v1949 = vunpack.c.l.b16 %v1849
        %v1950 = vunpack.c.l.b16 %v1850
        %v1951 = vunpack.c.l.b16 %v1851
        %v1952 = vunpack.c.l.b16 %v1852
        %v1953 = vunpack.c.l.b16 %v1853
        %v1954 = vunpack.c.l.b16 %v1854
        %v1955 = vunpack.c.l.b16 %v1855
        %v1956 = vunpack.c.l.b16 %v1856
        %v1957 = vunpack.c.l.b16 %v1857
        %v1958 = vunpack.c.l.b16 %v1858
        %v1959 = vunpack.c.l.b16 %v1859
        %v1960 = vunpack.c.l.b16 %v1860
        %v1961 = vunpack.c.l.b16 %v1861
        %v1962 = vunpack.c.l.b16 %v1862
        %v1963 = vunpack.c.l.b16 %v1863
        %v1964 = vunpack.c.l.b16 %v1864
        %v1965 = vunpack.c.l.b16 %v1865
        %v1966 = vunpack.c.l.b16 %v1866
        %v1967 = vunpack.c.l.b16 %v1867
        %v1968 = vunpack.c.l.b16 %v1868
        %v1969 = vunpack.c.l.b16 %v1869
        %v1970 = vunpack.c.l.b16 %v1870
        %v1971 = vunpack.c.l.b16 %v1871
        %v1972 = vunpack.c.l.b16 %v1872
        %v1973 = vpack.c.b16 %v1926, %v1925
        %v1974 = vpack.c.b16 %v1928, %v1927
        %v1975 = vpack.c.b16 %v1930, %v1929
        %v1976 = vpack.c.b16 %v1932, %v1931
        %v1977 = vpack.c.b16 %v1934, %v1933
        %v1978 = vpack.c.b16 %v1936, %v1935
        %v1979 = vpack.c.b16 %v1938, %v1937
        %v1980 = vpack.c.b16 %v1940, %v1939
        %v1981 = vpack.c.b16 %v1942, %v1941
        %v1982 = vpack.c.b16 %v1944, %v1943
        %v1983 = vpack.c.b16 %v1946, %v1945
        %v1984 = vpack.c.b16 %v1948, %v1947
        %v1985 = vpack.c.b16 %v1950, %v1949
        %v1986 = vpack.c.b16 %v1952, %v1951
        %v1987 = vpack.c.b16 %v1954, %v1953
        %v1988 = vpack.c.b16 %v1956, %v1955
        %v1989 = vpack.c.b16 %v1958, %v1957
        %v1990 = vpack.c.b16 %v1960, %v1959
        %v1991 = vpack.c.b16 %v1962, %v1961
        %v1992 = vpack.c.b16 %v1964, %v1963
        %v1993 = vpack.c.b16 %v1966, %v1965
        %v1994 = vpack.c.b16 %v1968, %v1967
        %v1995 = vpack.c.b16 %v1970, %v1969
        %v1996 = vpack.c.b16 %v1972, %v1971
        %2021 = vmatpush.bf16.msra.mxu0 %v1980
        %2022 = vmatpush.bf16.msra.mxu0 %v1979
        %2023 = vmatpush.bf16.msra.mxu0 %v1978
        %2024 = vmatpush.bf16.msra.mxu0 %v1977
        %2025 = vmatpush.bf16.msra.mxu0 %v1976
        %2026 = vmatpush.bf16.msra.mxu0 %v1975
        %2027 = vmatpush.bf16.msra.mxu0 %v1974
        %2028 = vmatpush.bf16.msra.mxu0 %v1973
        %2029 = vmatmul.bf16.gmra.mxu0 %v1819
        %v2030 = vpop.f32.mrf.mxu0
        %v2031 = vadd.f32 %v1875, %v2030
        %v2032 = vpop.f32.mrf.mxu0
        %v2033 = vadd.f32 %v1875, %v2032
        %2034 = vmatmul.bf16.gmra.mxu0 %v1822
        %v2035 = vpop.f32.mrf.mxu0
        %v2036 = vadd.f32 %v1875, %v2035
        %v2037 = vpop.f32.mrf.mxu0
        %v2038 = vadd.f32 %v1875, %v2037
        %2039 = vdwg.mxu0
        %2040 = vmatpush.bf16.msra.mxu0 %v1988
        %2041 = vmatpush.bf16.msra.mxu0 %v1987
        %2042 = vmatpush.bf16.msra.mxu0 %v1986
        %2043 = vmatpush.bf16.msra.mxu0 %v1985
        %2044 = vmatpush.bf16.msra.mxu0 %v1984
        %2045 = vmatpush.bf16.msra.mxu0 %v1983
        %2046 = vmatpush.bf16.msra.mxu0 %v1982
        %2047 = vmatpush.bf16.msra.mxu0 %v1981
        %2048 = vmatmul.bf16.gmra.mxu0 %v1820
        %v2049 = vpop.f32.mrf.mxu0
        %v2050 = vadd.f32 %v2031, %v2049
        %v2051 = vpop.f32.mrf.mxu0
        %v2052 = vadd.f32 %v2033, %v2051
        %2053 = vmatmul.bf16.gmra.mxu0 %v1823
        %v2054 = vpop.f32.mrf.mxu0
        %v2055 = vadd.f32 %v2036, %v2054
        %v2056 = vpop.f32.mrf.mxu0
        %v2057 = vadd.f32 %v2038, %v2056
        %2058 = vdwg.mxu0
        %2059 = vmatpush.bf16.msra.mxu0 %v1996
        %2060 = vmatpush.bf16.msra.mxu0 %v1995
        %2061 = vmatpush.bf16.msra.mxu0 %v1994
        %2062 = vmatpush.bf16.msra.mxu0 %v1993
        %2063 = vmatpush.bf16.msra.mxu0 %v1992
        %2064 = vmatpush.bf16.msra.mxu0 %v1991
        %2065 = vmatpush.bf16.msra.mxu0 %v1990
        %2066 = vmatpush.bf16.msra.mxu0 %v1989
        %2067 = vmatmul.bf16.gmra.mxu0 %v1821
        %v2068 = vpop.f32.mrf.mxu0
        %v2069 = vadd.f32 %v2050, %v2068
        %v2070 = vpop.f32.mrf.mxu0
        %v2071 = vadd.f32 %v2052, %v2070
        %2072 = vmatmul.bf16.gmra.mxu0 %v1824
        %v2073 = vpop.f32.mrf.mxu0
        %v2074 = vadd.f32 %v2055, %v2073
        %v2075 = vpop.f32.mrf.mxu0
        %v2076 = vadd.f32 %v2057, %v2075
        %2077 = vdwg.mxu0
        %v2078 = vtanh.pop %v2069
        %v2079 = vtanh.pop %v2071
        %v2080 = vtanh.pop %v2074
        %v2081 = vtanh.pop %v2076
        %2082 = vst [vmem:[%s588] sm:$0xff] %v2078
        %2083 = vst [vmem:[%s588 + $0x8] sm:$0xff] %v2079
        %2084 = vst [vmem:[%s588 + $0x10] sm:$0xff] %v2080
        %2085 = vst [vmem:[%s588 + $0x18] sm:$0xff] %v2081
        %s2086 = sand.u32 %s320, 1
        %s2087 = scalar_lea.sflag [#allocation4], %s2086
        %s2088 = sand.u32 %s320, 1
        %s2089 = smul.addr %s2088, 32
        %s2090 = scalar_lea.vmem [#allocation17], %s2089
        // Predicated region
        $region109: #{tpu_custom_call.1} parent=71 // pred_check
          %p2091 = pneg %p330
        $region110: #{tpu_custom_call.1} parent=71 // pred_check_branch
          %2093 = sbr.rel (%p2091) target = $region112
        $region111: #{tpu_custom_call.1} parent=71 // pred_region
          %s2094 = smul.u32 4, %s34
          %2096 = vsyncadd %s2087, 0
          %s2097 = smul.addr %s2094, 8
          %s2098 = scalar_lea.hbm %s13, %s2097
          %s2099 = sshll.u32 %s2090, 4
          %s2100 = int_to_ptr.vmem [resolvable:$true] %s2099
          %s2101 = sshll.u32 %s2098, 4
          %s2102 = int_to_ptr.hbm [resolvable:$true] %s2101
          %2107 = dma.vmem_to_hbm [thread:$0]  %s2100, 512, %s2102, %s2087, 128, 128, 8
        $region112: #{tpu_custom_call.1} parent=71 // pred_fallthru
          _
      $region72: #{tpu_custom_call.1} parent=5 // pred_fallthru
        _
      %p2108 = scmp.le.s32.totalorder 2, %s29
      // Predicated region
      $region113: #{tpu_custom_call.1} parent=5 // pred_check
        %p2109 = pneg %p2108
      $region114: #{tpu_custom_call.1} parent=5 // pred_check_branch
        %2111 = sbr.rel (%p2109) target = $region116
      $region115: #{tpu_custom_call.1} parent=5 // pred_region
        %s2112 = ssub.s32 %s29, 2
        // Predicated region
        $region117: #{tpu_custom_call.1} parent=115 // pred_check
          %p2113 = pneg %p336
        $region118: #{tpu_custom_call.1} parent=115 // pred_check_branch
          %2115 = sbr.rel (%p2113) target = $region120
        $region119: #{tpu_custom_call.1} parent=115 // pred_region
          %s2116 = sand.u32 %s321, 1
          %s2117 = scalar_lea.sflag [#allocation4], %s2116
          %s2118 = sand.u32 %s321, 1
          %s2119 = smul.addr %s2118, 32
          %s2120 = scalar_lea.vmem [#allocation17], %s2119
          %2122 = dma.done %s2117, 512
        $region120: #{tpu_custom_call.1} parent=115 // pred_fallthru
          _
      $region116: #{tpu_custom_call.1} parent=5 // pred_fallthru
        _
    $region6: #{tpu_custom_call.1} parent=1 // loop_footer
      %s33 = sadd.s32 1, %s29
    $region7: #{tpu_custom_call.1} parent=1 // loop_footer_branch
      %28 = sbr.rel target = $region3
    $region8: #{tpu_custom_call.1} parent=1 // loop_exit
      _
    %2123 = vsyncpa [#allocation3], 1
    %s2124 = scalar_lea.sflag [#allocation3], 1
    %2125 = vsyncpa %s2124, 1
    %2126 = vsyncpa [#allocation6], 1
    %2127 = vsyncpa [#allocation9], 1
    %2128 = vsyncpa [#allocation12], 1
    %2129 = vsyncpa [#allocation15], 1
    %2130 = vsyncpa [#allocation4], 1
    %s2131 = scalar_lea.sflag [#allocation4], 1
    %2132 = vsyncpa %s2131, 1

</llo_original>
